<compile_context>
chip_gen: v5e
topology: v5e:2x2
jax: 0.10.0
libtpu: 0.0.40
codegen_flags: <defaults>
</compile_context>

<pallas_src>
import functools

import jax
import jax.numpy as jnp
from jax.experimental import pallas as pl
from jax.experimental.pallas import tpu as pltpu


# ----------------------------- in-kernel helpers -----------------------------

def _dot(a, b):
    return jnp.dot(a, b, preferred_element_type=jnp.float32)


def _cmm(ar, ai, br, bi):
    """Complex matmul (ar + i*ai) @ (br + i*bi) with 3 real MXU matmuls."""
    t1 = _dot(ar, br)
    t2 = _dot(ai, bi)
    t3 = _dot(ar + ai, br + bi)
    return t1 - t2, t3 - t1 - t2


def _stacked_conv3x3(x_stk, g_ref, swt_ref, b_ref):
    """3x3 'same' conv on a channel-row-stacked (IC*H, W) VMEM tile.

    out = sum_kw G[kw] @ x_stk @ SwT[kw] + bias, where G[kw] folds the three
    row shifts and the (OC, IC) channel mixing of column-tap kw into one
    precomputed matrix.  Only 2-D matmuls + broadcasts -> robust lowering.
    """
    out = None
    for kw in range(3):
        q = _dot(x_stk, swt_ref[kw])          # column shift           (IC*H, W)
        t = _dot(g_ref[kw], q)                # row shift + channel mix (OC*H, W)
        out = t if out is None else out + t
    return out + b_ref[...]                   # (OC*H, 1) broadcasts over lanes


# ----------------------------- Pallas kernels -----------------------------

def _ifft_combine_kernel(k_ref, s_ref, mh_ref, mwT_ref, out_ref, *, C, H, W):
    """Centered 2-D inverse DFT of all coils + coil-combine, fused per batch."""
    xr = k_ref[0, 0]                          # (C*H, W)  real
    xi = k_ref[0, 1]                          # (C*H, W)  imag
    # W-axis transform: one MXU matmul batched over all coils (M = C*H rows).
    yr, yi = _cmm(xr, xi, mwT_ref[0], mwT_ref[1])
    mh_r, mh_i = mh_ref[0], mh_ref[1]
    cr = jnp.zeros((H, W), jnp.float32)
    ci = jnp.zeros((H, W), jnp.float32)
    for c in range(C):                        # static unroll over coils
        # H-axis transform for coil c, then multiply by sensitivity & accumulate.
        zr, zi = _cmm(mh_r, mh_i, yr[c * H:(c + 1) * H], yi[c * H:(c + 1) * H])
        sr = s_ref[0, 0, c * H:(c + 1) * H]
        si = s_ref[0, 1, c * H:(c + 1) * H]
        cr = cr + (zr * sr - zi * si)
        ci = ci + (zr * si + zi * sr)
    out_ref[0, 0] = cr
    out_ref[0, 1] = ci


def _unet_expand_fft_kernel(comb_ref, s_ref, g1_ref, b1_ref, g2_ref, b2_ref,
                            swt_ref, mh_ref, mwT_ref, out_ref, tr_scr, ti_scr,
                            *, C, H):
    """Unet stand-in + coil-expand + centered 2-D forward DFT, fused per batch."""
    # --- conv3x3 -> ReLU -> conv3x3, intermediate activation stays in VMEM ---
    x_stk = comb_ref[0]                                     # (2H, W): [re; im]
    h1 = _stacked_conv3x3(x_stk, g1_ref, swt_ref, b1_ref)   # (F*H, W)
    h1 = jnp.maximum(h1, 0.0)
    y = _stacked_conv3x3(h1, g2_ref, swt_ref, b2_ref)       # (2H, W)
    ur, ui = y[:H], y[H:]                                   # (H, W) each

    # --- expand to coils + forward H-axis DFT per coil, staged in VMEM scratch
    mh_r, mh_i = mh_ref[0], mh_ref[1]
    for c in range(C):                                      # static unroll
        sr = s_ref[0, 0, c * H:(c + 1) * H]
        si = s_ref[0, 1, c * H:(c + 1) * H]
        er = sr * ur - si * ui
        ei = sr * ui + si * ur
        tr, ti = _cmm(mh_r, mh_i, er, ei)
        tr_scr[c * H:(c + 1) * H, :] = tr
        ti_scr[c * H:(c + 1) * H, :] = ti

    # --- forward W-axis DFT: one MXU matmul batched over all coils ---
    outr, outi = _cmm(tr_scr[...], ti_scr[...], mwT_ref[0], mwT_ref[1])
    out_ref[0, 0] = outr
    out_ref[0, 1] = outi


# ----------------------------- host-side operator tables -----------------------------

def _centered_dft_matrix(n, inverse):
    """Matrix M such that fftshift((i)fft(ifftshift(x), norm='ortho')) == M @ x."""
    eye = jnp.eye(n, dtype=jnp.complex64)
    shifted = jnp.fft.ifftshift(eye, axes=0)
    if inverse:
        f = jnp.fft.ifft(shifted, axis=0, norm="ortho")
    else:
        f = jnp.fft.fft(shifted, axis=0, norm="ortho")
    m = jnp.fft.fftshift(f, axes=0)
    return jnp.real(m).astype(jnp.float32), jnp.imag(m).astype(jnp.float32)


def _shift_matrix(n, d):
    """S[r, c] = 1 iff c == r + d (zero-padded shift by d)."""
    idx = jnp.arange(n)
    return (idx[None, :] == idx[:, None] + d).astype(jnp.float32)


def _conv_matrices(weight, bias, h, w):
    """Fold a 3x3 'same' conv (OIHW) into 3 kron(weight-tap, row-shift) matrices.

    conv(x)_stacked = sum_kw G[kw] @ x_stacked @ SwT[kw] + bias_stacked,
    with x stacked channel-major along rows: row index = i*H + r.
    """
    oc, ic = weight.shape[0], weight.shape[1]
    g, swt = [], []
    for kw in range(3):
        gk = jnp.zeros((oc * h, ic * h), jnp.float32)
        for kh in range(3):
            gk = gk + jnp.kron(weight[:, :, kh, kw], _shift_matrix(h, kh - 1))
        g.append(gk)
        swt.append(_shift_matrix(w, kw - 1).T)
    g = jnp.stack(g)                              # (3, OC*H, IC*H)
    swt = jnp.stack(swt)                          # (3, W, W)
    bs = jnp.repeat(bias, h).reshape(oc * h, 1)   # (OC*H, 1)
    return g, swt, bs


# ----------------------------- module forward -----------------------------

def varnet_block(kr, ki, sr, si, w1, b1, w2, b2):
    """Pallas implementation of VarnetBlock.forward.

    kr, ki : real/imag of k-space `images`        [B, C, H, W] float32
    sr, si : real/imag of `sensetivities`         [B, C, H, W] float32
    returns real/imag of output k-space           [B, C, H, W] float32
    """
    b, c, h, w = kr.shape
    f = w1.shape[0]

    # --- operator tables (trace-time glue) ---
    mh_inv = jnp.stack(_centered_dft_matrix(h, inverse=True))         # (2,H,H)
    mwr_i, mwi_i = _centered_dft_matrix(w, inverse=True)
    mwT_inv = jnp.stack([mwr_i.T, mwi_i.T])                           # (2,W,W)
    mh_fwd = jnp.stack(_centered_dft_matrix(h, inverse=False))        # (2,H,H)
    mwr_f, mwi_f = _centered_dft_matrix(w, inverse=False)
    mwT_fwd = jnp.stack([mwr_f.T, mwi_f.T])                           # (2,W,W)
    g1, swt, b1s = _conv_matrices(w1, b1, h, w)
    g2, _, b2s = _conv_matrices(w2, b2, h, w)

    # --- pack real/imag on one axis, merge (C, H) so the lane dim is W ---
    k_pack = jnp.stack([kr, ki], axis=1).reshape(b, 2, c * h, w)
    s_pack = jnp.stack([sr, si], axis=1).reshape(b, 2, c * h, w)

    parallel = pltpu.CompilerParams(dimension_semantics=("parallel",))

    # ---- kernel A: ifft2c(all coils) + coil-combine ----
    comb = pl.pallas_call(
        functools.partial(_ifft_combine_kernel, C=c, H=h, W=w),
        out_shape=jax.ShapeDtypeStruct((b, 2, h, w), jnp.float32),
        grid=(b,),
        in_specs=[
            pl.BlockSpec((1, 2, c * h, w), lambda i: (i, 0, 0, 0)),
            pl.BlockSpec((1, 2, c * h, w), lambda i: (i, 0, 0, 0)),
            pl.BlockSpec((2, h, h), lambda i: (0, 0, 0)),
            pl.BlockSpec((2, w, w), lambda i: (0, 0, 0)),
        ],
        out_specs=pl.BlockSpec((1, 2, h, w), lambda i: (i, 0, 0, 0)),
        compiler_params=parallel,
    )(k_pack, s_pack, mh_inv, mwT_inv)

    # ---- kernel B: conv -> ReLU -> conv -> expand -> fft2c ----
    comb_stk = comb.reshape(b, 2 * h, w)          # rows: [real(H); imag(H)]
    out = pl.pallas_call(
        functools.partial(_unet_expand_fft_kernel, C=c, H=h),
        out_shape=jax.ShapeDtypeStruct((b, 2, c * h, w), jnp.float32),
        grid=(b,),
        in_specs=[
            pl.BlockSpec((1, 2 * h, w), lambda i: (i, 0, 0)),
            pl.BlockSpec((1, 2, c * h, w), lambda i: (i, 0, 0, 0)),
            pl.BlockSpec((3, f * h, 2 * h), lambda i: (0, 0, 0)),
            pl.BlockSpec((f * h, 1), lambda i: (0, 0)),
            pl.BlockSpec((3, 2 * h, f * h), lambda i: (0, 0, 0)),
            pl.BlockSpec((2 * h, 1), lambda i: (0, 0)),
            pl.BlockSpec((3, w, w), lambda i: (0, 0, 0)),
            pl.BlockSpec((2, h, h), lambda i: (0, 0, 0)),
            pl.BlockSpec((2, w, w), lambda i: (0, 0, 0)),
        ],
        out_specs=pl.BlockSpec((1, 2, c * h, w), lambda i: (i, 0, 0, 0)),
        scratch_shapes=[pltpu.VMEM((c * h, w), jnp.float32),
                        pltpu.VMEM((c * h, w), jnp.float32)],
        compiler_params=parallel,
    )(comb_stk, s_pack, g1, b1s, g2, b2s, swt, mh_fwd, mwT_fwd)

    out = out.reshape(b, 2, c, h, w)
    return out[:, 0], out[:, 1]


# ----------------------------- reference (pure JAX) -----------------------------

def _ifft2c(x):
    return jnp.fft.fftshift(
        jnp.fft.ifft2(jnp.fft.ifftshift(x, axes=(2, 3)), axes=(2, 3), norm="ortho"),
        axes=(2, 3))


def _fft2c(x):
    return jnp.fft.fftshift(
        jnp.fft.fft2(jnp.fft.ifftshift(x, axes=(2, 3)), axes=(2, 3), norm="ortho"),
        axes=(2, 3))


def _reference(kr, ki, sr, si, w1, b1, w2, b2):
    x = kr + 1j * ki
    s = sr + 1j * si
    img = _ifft2c(x)
    comb = jnp.sum(img * s, axis=1, keepdims=True)                 # [B,1,H,W]
    real = jnp.stack([jnp.real(comb[:, 0]), jnp.imag(comb[:, 0])], axis=1)
    dn = ("NCHW", "OIHW", "NCHW")
    hmid = jax.lax.conv_general_dilated(
        real, w1, (1, 1), [(1, 1), (1, 1)], dimension_numbers=dn,
        precision=jax.lax.Precision.HIGHEST) + b1.reshape(1, -1, 1, 1)
    hmid = jnp.maximum(hmid, 0.0)
    y = jax.lax.conv_general_dilated(
        hmid, w2, (1, 1), [(1, 1), (1, 1)], dimension_numbers=dn,
        precision=jax.lax.Precision.HIGHEST) + b2.reshape(1, -1, 1, 1)
    comb2 = (y[:, 0] + 1j * y[:, 1])[:, None]                      # [B,1,H,W]
    return _fft2c(s * comb2)


# ----------------------------- main -----------------------------

if __name__ == "__main__":
    key = jax.random.PRNGKey(0)
    B, C, H, W, F = 2, 4, 16, 16, 8
    ks = jax.random.split(key, 8)

    kr = jax.random.normal(ks[0], (B, C, H, W), jnp.float32)
    ki = jax.random.normal(ks[1], (B, C, H, W), jnp.float32)
    sr = jax.random.normal(ks[2], (B, C, H, W), jnp.float32) * 0.5
    si = jax.random.normal(ks[3], (B, C, H, W), jnp.float32) * 0.5

    # deterministic synthetic "Unet" parameters (2-layer conv stand-in)
    w1 = jax.random.normal(ks[4], (F, 2, 3, 3), jnp.float32) * 0.2
    b1 = jax.random.normal(ks[5], (F,), jnp.float32) * 0.1
    w2 = jax.random.normal(ks[6], (2, F, 3, 3), jnp.float32) * 0.2
    b2 = jax.random.normal(ks[7], (2,), jnp.float32) * 0.1

    fwd = jax.jit(varnet_block)
    out_r, out_i = fwd(kr, ki, sr, si, w1, b1, w2, b2)
    jax.block_until_ready((out_r, out_i))

    ref = _reference(kr, ki, sr, si, w1, b1, w2, b2)
    ref_r = jnp.real(ref).astype(jnp.float32)
    ref_i = jnp.imag(ref).astype(jnp.float32)
    scale = float(jnp.maximum(jnp.max(jnp.abs(ref_r)), jnp.max(jnp.abs(ref_i))))
    err = float(jnp.maximum(jnp.max(jnp.abs(out_r - ref_r)),
                            jnp.max(jnp.abs(out_i - ref_i))))
    # tolerance covers MXU default-precision DFT matmuls + Karatsuba form
    assert err <= 3e-2 * scale, (err, scale)

    print("KERNEL_OK")
</pallas_src>

<mosaic_0001>
module attributes {stable_mosaic.version = 11 : i64} {
  func.func @_ifft_combine_kernel(%arg0: i32, %arg1: memref<1x2x64x16xf32, #tpu.memory_space<vmem>>, %arg2: memref<1x2x64x16xf32, #tpu.memory_space<vmem>>, %arg3: memref<2x16x16xf32, #tpu.memory_space<vmem>>, %arg4: memref<2x16x16xf32, #tpu.memory_space<vmem>>, %arg5: memref<1x2x16x16xf32, #tpu.memory_space<vmem>>) attributes {dimension_semantics = [#tpu.dimension_semantics<parallel>], iteration_bounds = array<i64: 2>, scalar_prefetch = 0 : i64, scratch_operands = 0 : i64, tpu.core_type = #tpu.core_type<tc>, window_params = [{transform_indices = @transform_0, window_bounds = array<i64: 1, 2, 64, 16>}, {transform_indices = @transform_1, window_bounds = array<i64: 1, 2, 64, 16>}, {pipeline_mode = #tpu.pipeline_mode<synchronous>, transform_indices = @transform_2, window_bounds = array<i64: 2, 16, 16>}, {pipeline_mode = #tpu.pipeline_mode<synchronous>, transform_indices = @transform_3, window_bounds = array<i64: 2, 16, 16>}, {transform_indices = @transform_4, window_bounds = array<i64: 1, 2, 16, 16>}]} {
    %c0 = arith.constant 0 : index
    %c0_0 = arith.constant 0 : index
    %c0_1 = arith.constant 0 : index
    %c0_2 = arith.constant 0 : index
    %0 = vector.load %arg1[%c0, %c0_0, %c0_1, %c0_2] : memref<1x2x64x16xf32, #tpu.memory_space<vmem>>, vector<1x1x64x16xf32>
    %1 = vector.shape_cast %0 : vector<1x1x64x16xf32> to vector<64x16xf32>
    %c0_3 = arith.constant 0 : index
    %c1 = arith.constant 1 : index
    %c0_4 = arith.constant 0 : index
    %c0_5 = arith.constant 0 : index
    %2 = vector.load %arg1[%c0_3, %c1, %c0_4, %c0_5] : memref<1x2x64x16xf32, #tpu.memory_space<vmem>>, vector<1x1x64x16xf32>
    %3 = vector.shape_cast %2 : vector<1x1x64x16xf32> to vector<64x16xf32>
    %c0_6 = arith.constant 0 : index
    %c0_7 = arith.constant 0 : index
    %c0_8 = arith.constant 0 : index
    %4 = vector.load %arg4[%c0_6, %c0_7, %c0_8] : memref<2x16x16xf32, #tpu.memory_space<vmem>>, vector<1x16x16xf32>
    %5 = vector.shape_cast %4 : vector<1x16x16xf32> to vector<16x16xf32>
    %c1_9 = arith.constant 1 : index
    %c0_10 = arith.constant 0 : index
    %c0_11 = arith.constant 0 : index
    %6 = vector.load %arg4[%c1_9, %c0_10, %c0_11] : memref<2x16x16xf32, #tpu.memory_space<vmem>>, vector<1x16x16xf32>
    %7 = vector.shape_cast %6 : vector<1x16x16xf32> to vector<16x16xf32>
    %cst = arith.constant dense<0.000000e+00> : vector<64x16xf32>
    %8 = tpu.matmul %1, %5, %cst {dimension_numbers = #tpu.dot_dimension_numbers<[1], [0], [0], [1], [0, 0, 1, 1], [], []>} : vector<64x16xf32>, vector<16x16xf32>, vector<64x16xf32> -> vector<64x16xf32>
    %cst_12 = arith.constant dense<0.000000e+00> : vector<64x16xf32>
    %9 = tpu.matmul %3, %7, %cst_12 {dimension_numbers = #tpu.dot_dimension_numbers<[1], [0], [0], [1], [0, 0, 1, 1], [], []>} : vector<64x16xf32>, vector<16x16xf32>, vector<64x16xf32> -> vector<64x16xf32>
    %10 = arith.addf %1, %3 : vector<64x16xf32>
    %11 = arith.addf %5, %7 : vector<16x16xf32>
    %cst_13 = arith.constant dense<0.000000e+00> : vector<64x16xf32>
    %12 = tpu.matmul %10, %11, %cst_13 {dimension_numbers = #tpu.dot_dimension_numbers<[1], [0], [0], [1], [0, 0, 1, 1], [], []>} : vector<64x16xf32>, vector<16x16xf32>, vector<64x16xf32> -> vector<64x16xf32>
    %13 = arith.subf %8, %9 : vector<64x16xf32>
    %14 = arith.subf %12, %8 : vector<64x16xf32>
    %15 = arith.subf %14, %9 : vector<64x16xf32>
    %c0_14 = arith.constant 0 : index
    %c0_15 = arith.constant 0 : index
    %c0_16 = arith.constant 0 : index
    %16 = vector.load %arg3[%c0_14, %c0_15, %c0_16] : memref<2x16x16xf32, #tpu.memory_space<vmem>>, vector<1x16x16xf32>
    %17 = vector.shape_cast %16 : vector<1x16x16xf32> to vector<16x16xf32>
    %c1_17 = arith.constant 1 : index
    %c0_18 = arith.constant 0 : index
    %c0_19 = arith.constant 0 : index
    %18 = vector.load %arg3[%c1_17, %c0_18, %c0_19] : memref<2x16x16xf32, #tpu.memory_space<vmem>>, vector<1x16x16xf32>
    %19 = vector.shape_cast %18 : vector<1x16x16xf32> to vector<16x16xf32>
    %cst_20 = arith.constant 0.000000e+00 : f32
    %20 = vector.broadcast %cst_20 : f32 to vector<16x16xf32>
    %cst_21 = arith.constant 0.000000e+00 : f32
    %21 = vector.broadcast %cst_21 : f32 to vector<16x16xf32>
    %22 = vector.extract_strided_slice %13 {offsets = [0, 0], sizes = [16, 16], strides = [1, 1]} : vector<64x16xf32> to vector<16x16xf32>
    %23 = vector.extract_strided_slice %15 {offsets = [0, 0], sizes = [16, 16], strides = [1, 1]} : vector<64x16xf32> to vector<16x16xf32>
    %cst_22 = arith.constant dense<0.000000e+00> : vector<16x16xf32>
    %24 = tpu.matmul %17, %22, %cst_22 {dimension_numbers = #tpu.dot_dimension_numbers<[1], [0], [0], [1], [0, 0, 1, 1], [], []>} : vector<16x16xf32>, vector<16x16xf32>, vector<16x16xf32> -> vector<16x16xf32>
    %cst_23 = arith.constant dense<0.000000e+00> : vector<16x16xf32>
    %25 = tpu.matmul %19, %23, %cst_23 {dimension_numbers = #tpu.dot_dimension_numbers<[1], [0], [0], [1], [0, 0, 1, 1], [], []>} : vector<16x16xf32>, vector<16x16xf32>, vector<16x16xf32> -> vector<16x16xf32>
    %26 = arith.addf %17, %19 : vector<16x16xf32>
    %27 = arith.addf %22, %23 : vector<16x16xf32>
    %cst_24 = arith.constant dense<0.000000e+00> : vector<16x16xf32>
    %28 = tpu.matmul %26, %27, %cst_24 {dimension_numbers = #tpu.dot_dimension_numbers<[1], [0], [0], [1], [0, 0, 1, 1], [], []>} : vector<16x16xf32>, vector<16x16xf32>, vector<16x16xf32> -> vector<16x16xf32>
    %29 = arith.subf %24, %25 : vector<16x16xf32>
    %30 = arith.subf %28, %24 : vector<16x16xf32>
    %31 = arith.subf %30, %25 : vector<16x16xf32>
    %c0_25 = arith.constant 0 : index
    %c0_26 = arith.constant 0 : index
    %c0_27 = arith.constant 0 : index
    %c0_28 = arith.constant 0 : index
    %32 = vector.load %arg2[%c0_25, %c0_26, %c0_27, %c0_28] : memref<1x2x64x16xf32, #tpu.memory_space<vmem>>, vector<1x1x16x16xf32>
    %33 = vector.shape_cast %32 : vector<1x1x16x16xf32> to vector<16x16xf32>
    %c0_29 = arith.constant 0 : index
    %c1_30 = arith.constant 1 : index
    %c0_31 = arith.constant 0 : index
    %c0_32 = arith.constant 0 : index
    %34 = vector.load %arg2[%c0_29, %c1_30, %c0_31, %c0_32] : memref<1x2x64x16xf32, #tpu.memory_space<vmem>>, vector<1x1x16x16xf32>
    %35 = vector.shape_cast %34 : vector<1x1x16x16xf32> to vector<16x16xf32>
    %36 = arith.mulf %29, %33 : vector<16x16xf32>
    %37 = arith.mulf %31, %35 : vector<16x16xf32>
    %38 = arith.subf %36, %37 : vector<16x16xf32>
    %39 = arith.addf %20, %38 : vector<16x16xf32>
    %40 = arith.mulf %29, %35 : vector<16x16xf32>
    %41 = arith.mulf %31, %33 : vector<16x16xf32>
    %42 = arith.addf %40, %41 : vector<16x16xf32>
    %43 = arith.addf %21, %42 : vector<16x16xf32>
    %44 = vector.extract_strided_slice %13 {offsets = [16, 0], sizes = [16, 16], strides = [1, 1]} : vector<64x16xf32> to vector<16x16xf32>
    %45 = vector.extract_strided_slice %15 {offsets = [16, 0], sizes = [16, 16], strides = [1, 1]} : vector<64x16xf32> to vector<16x16xf32>
    %cst_33 = arith.constant dense<0.000000e+00> : vector<16x16xf32>
    %46 = tpu.matmul %17, %44, %cst_33 {dimension_numbers = #tpu.dot_dimension_numbers<[1], [0], [0], [1], [0, 0, 1, 1], [], []>} : vector<16x16xf32>, vector<16x16xf32>, vector<16x16xf32> -> vector<16x16xf32>
    %cst_34 = arith.constant dense<0.000000e+00> : vector<16x16xf32>
    %47 = tpu.matmul %19, %45, %cst_34 {dimension_numbers = #tpu.dot_dimension_numbers<[1], [0], [0], [1], [0, 0, 1, 1], [], []>} : vector<16x16xf32>, vector<16x16xf32>, vector<16x16xf32> -> vector<16x16xf32>
    %48 = arith.addf %17, %19 : vector<16x16xf32>
    %49 = arith.addf %44, %45 : vector<16x16xf32>
    %cst_35 = arith.constant dense<0.000000e+00> : vector<16x16xf32>
    %50 = tpu.matmul %48, %49, %cst_35 {dimension_numbers = #tpu.dot_dimension_numbers<[1], [0], [0], [1], [0, 0, 1, 1], [], []>} : vector<16x16xf32>, vector<16x16xf32>, vector<16x16xf32> -> vector<16x16xf32>
    %51 = arith.subf %46, %47 : vector<16x16xf32>
    %52 = arith.subf %50, %46 : vector<16x16xf32>
    %53 = arith.subf %52, %47 : vector<16x16xf32>
    %c0_36 = arith.constant 0 : index
    %c0_37 = arith.constant 0 : index
    %c16 = arith.constant 16 : index
    %c0_38 = arith.constant 0 : index
    %54 = vector.load %arg2[%c0_36, %c0_37, %c16, %c0_38] : memref<1x2x64x16xf32, #tpu.memory_space<vmem>>, vector<1x1x16x16xf32>
    %55 = vector.shape_cast %54 : vector<1x1x16x16xf32> to vector<16x16xf32>
    %c0_39 = arith.constant 0 : index
    %c1_40 = arith.constant 1 : index
    %c16_41 = arith.constant 16 : index
    %c0_42 = arith.constant 0 : index
    %56 = vector.load %arg2[%c0_39, %c1_40, %c16_41, %c0_42] : memref<1x2x64x16xf32, #tpu.memory_space<vmem>>, vector<1x1x16x16xf32>
    %57 = vector.shape_cast %56 : vector<1x1x16x16xf32> to vector<16x16xf32>
    %58 = arith.mulf %51, %55 : vector<16x16xf32>
    %59 = arith.mulf %53, %57 : vector<16x16xf32>
    %60 = arith.subf %58, %59 : vector<16x16xf32>
    %61 = arith.addf %39, %60 : vector<16x16xf32>
    %62 = arith.mulf %51, %57 : vector<16x16xf32>
    %63 = arith.mulf %53, %55 : vector<16x16xf32>
    %64 = arith.addf %62, %63 : vector<16x16xf32>
    %65 = arith.addf %43, %64 : vector<16x16xf32>
    %66 = vector.extract_strided_slice %13 {offsets = [32, 0], sizes = [16, 16], strides = [1, 1]} : vector<64x16xf32> to vector<16x16xf32>
    %67 = vector.extract_strided_slice %15 {offsets = [32, 0], sizes = [16, 16], strides = [1, 1]} : vector<64x16xf32> to vector<16x16xf32>
    %cst_43 = arith.constant dense<0.000000e+00> : vector<16x16xf32>
    %68 = tpu.matmul %17, %66, %cst_43 {dimension_numbers = #tpu.dot_dimension_numbers<[1], [0], [0], [1], [0, 0, 1, 1], [], []>} : vector<16x16xf32>, vector<16x16xf32>, vector<16x16xf32> -> vector<16x16xf32>
    %cst_44 = arith.constant dense<0.000000e+00> : vector<16x16xf32>
    %69 = tpu.matmul %19, %67, %cst_44 {dimension_numbers = #tpu.dot_dimension_numbers<[1], [0], [0], [1], [0, 0, 1, 1], [], []>} : vector<16x16xf32>, vector<16x16xf32>, vector<16x16xf32> -> vector<16x16xf32>
    %70 = arith.addf %17, %19 : vector<16x16xf32>
    %71 = arith.addf %66, %67 : vector<16x16xf32>
    %cst_45 = arith.constant dense<0.000000e+00> : vector<16x16xf32>
    %72 = tpu.matmul %70, %71, %cst_45 {dimension_numbers = #tpu.dot_dimension_numbers<[1], [0], [0], [1], [0, 0, 1, 1], [], []>} : vector<16x16xf32>, vector<16x16xf32>, vector<16x16xf32> -> vector<16x16xf32>
    %73 = arith.subf %68, %69 : vector<16x16xf32>
    %74 = arith.subf %72, %68 : vector<16x16xf32>
    %75 = arith.subf %74, %69 : vector<16x16xf32>
    %c0_46 = arith.constant 0 : index
    %c0_47 = arith.constant 0 : index
    %c32 = arith.constant 32 : index
    %c0_48 = arith.constant 0 : index
    %76 = vector.load %arg2[%c0_46, %c0_47, %c32, %c0_48] : memref<1x2x64x16xf32, #tpu.memory_space<vmem>>, vector<1x1x16x16xf32>
    %77 = vector.shape_cast %76 : vector<1x1x16x16xf32> to vector<16x16xf32>
    %c0_49 = arith.constant 0 : index
    %c1_50 = arith.constant 1 : index
    %c32_51 = arith.constant 32 : index
    %c0_52 = arith.constant 0 : index
    %78 = vector.load %arg2[%c0_49, %c1_50, %c32_51, %c0_52] : memref<1x2x64x16xf32, #tpu.memory_space<vmem>>, vector<1x1x16x16xf32>
    %79 = vector.shape_cast %78 : vector<1x1x16x16xf32> to vector<16x16xf32>
    %80 = arith.mulf %73, %77 : vector<16x16xf32>
    %81 = arith.mulf %75, %79 : vector<16x16xf32>
    %82 = arith.subf %80, %81 : vector<16x16xf32>
    %83 = arith.addf %61, %82 : vector<16x16xf32>
    %84 = arith.mulf %73, %79 : vector<16x16xf32>
    %85 = arith.mulf %75, %77 : vector<16x16xf32>
    %86 = arith.addf %84, %85 : vector<16x16xf32>
    %87 = arith.addf %65, %86 : vector<16x16xf32>
    %88 = vector.extract_strided_slice %13 {offsets = [48, 0], sizes = [16, 16], strides = [1, 1]} : vector<64x16xf32> to vector<16x16xf32>
    %89 = vector.extract_strided_slice %15 {offsets = [48, 0], sizes = [16, 16], strides = [1, 1]} : vector<64x16xf32> to vector<16x16xf32>
    %cst_53 = arith.constant dense<0.000000e+00> : vector<16x16xf32>
    %90 = tpu.matmul %17, %88, %cst_53 {dimension_numbers = #tpu.dot_dimension_numbers<[1], [0], [0], [1], [0, 0, 1, 1], [], []>} : vector<16x16xf32>, vector<16x16xf32>, vector<16x16xf32> -> vector<16x16xf32>
    %cst_54 = arith.constant dense<0.000000e+00> : vector<16x16xf32>
    %91 = tpu.matmul %19, %89, %cst_54 {dimension_numbers = #tpu.dot_dimension_numbers<[1], [0], [0], [1], [0, 0, 1, 1], [], []>} : vector<16x16xf32>, vector<16x16xf32>, vector<16x16xf32> -> vector<16x16xf32>
    %92 = arith.addf %17, %19 : vector<16x16xf32>
    %93 = arith.addf %88, %89 : vector<16x16xf32>
    %cst_55 = arith.constant dense<0.000000e+00> : vector<16x16xf32>
    %94 = tpu.matmul %92, %93, %cst_55 {dimension_numbers = #tpu.dot_dimension_numbers<[1], [0], [0], [1], [0, 0, 1, 1], [], []>} : vector<16x16xf32>, vector<16x16xf32>, vector<16x16xf32> -> vector<16x16xf32>
    %95 = arith.subf %90, %91 : vector<16x16xf32>
    %96 = arith.subf %94, %90 : vector<16x16xf32>
    %97 = arith.subf %96, %91 : vector<16x16xf32>
    %c0_56 = arith.constant 0 : index
    %c0_57 = arith.constant 0 : index
    %c48 = arith.constant 48 : index
    %c0_58 = arith.constant 0 : index
    %98 = vector.load %arg2[%c0_56, %c0_57, %c48, %c0_58] : memref<1x2x64x16xf32, #tpu.memory_space<vmem>>, vector<1x1x16x16xf32>
    %99 = vector.shape_cast %98 : vector<1x1x16x16xf32> to vector<16x16xf32>
    %c0_59 = arith.constant 0 : index
    %c1_60 = arith.constant 1 : index
    %c48_61 = arith.constant 48 : index
    %c0_62 = arith.constant 0 : index
    %100 = vector.load %arg2[%c0_59, %c1_60, %c48_61, %c0_62] : memref<1x2x64x16xf32, #tpu.memory_space<vmem>>, vector<1x1x16x16xf32>
    %101 = vector.shape_cast %100 : vector<1x1x16x16xf32> to vector<16x16xf32>
    %102 = arith.mulf %95, %99 : vector<16x16xf32>
    %103 = arith.mulf %97, %101 : vector<16x16xf32>
    %104 = arith.subf %102, %103 : vector<16x16xf32>
    %105 = arith.addf %83, %104 : vector<16x16xf32>
    %106 = arith.mulf %95, %101 : vector<16x16xf32>
    %107 = arith.mulf %97, %99 : vector<16x16xf32>
    %108 = arith.addf %106, %107 : vector<16x16xf32>
    %109 = arith.addf %87, %108 : vector<16x16xf32>
    %c0_63 = arith.constant 0 : index
    %c0_64 = arith.constant 0 : index
    %c0_65 = arith.constant 0 : index
    %c0_66 = arith.constant 0 : index
    %110 = vector.load %arg5[%c0_63, %c0_64, %c0_65, %c0_66] : memref<1x2x16x16xf32, #tpu.memory_space<vmem>>, vector<1x1x16x16xf32>
    %111 = vector.shape_cast %110 : vector<1x1x16x16xf32> to vector<16x16xf32>
    %112 = vector.shape_cast %105 : vector<16x16xf32> to vector<1x1x16x16xf32>
    tpu.vector_store %arg5[%c0_63, %c0_64, %c0_65, %c0_66], %112 {strides = array<i32>} : memref<1x2x16x16xf32, #tpu.memory_space<vmem>>, vector<1x1x16x16xf32>,
    %c0_67 = arith.constant 0 : index
    %c1_68 = arith.constant 1 : index
    %c0_69 = arith.constant 0 : index
    %c0_70 = arith.constant 0 : index
    %113 = vector.load %arg5[%c0_67, %c1_68, %c0_69, %c0_70] : memref<1x2x16x16xf32, #tpu.memory_space<vmem>>, vector<1x1x16x16xf32>
    %114 = vector.shape_cast %113 : vector<1x1x16x16xf32> to vector<16x16xf32>
    %115 = vector.shape_cast %109 : vector<16x16xf32> to vector<1x1x16x16xf32>
    tpu.vector_store %arg5[%c0_67, %c1_68, %c0_69, %c0_70], %115 {strides = array<i32>} : memref<1x2x16x16xf32, #tpu.memory_space<vmem>>, vector<1x1x16x16xf32>,
    return
  }
  func.func @transform_0(%arg0: i32) -> (i32, i32, i32, i32) {
    %c0_i32 = arith.constant 0 : i32
    %c0_i32_0 = arith.constant 0 : i32
    %c0_i32_1 = arith.constant 0 : i32
    %c0_i32_2 = arith.constant 0 : i32
    return %arg0, %c0_i32, %c0_i32_0, %c0_i32_1 : i32, i32, i32, i32
  }
  func.func @transform_1(%arg0: i32) -> (i32, i32, i32, i32) {
    %c0_i32 = arith.constant 0 : i32
    %c0_i32_0 = arith.constant 0 : i32
    %c0_i32_1 = arith.constant 0 : i32
    %c0_i32_2 = arith.constant 0 : i32
    return %arg0, %c0_i32, %c0_i32_0, %c0_i32_1 : i32, i32, i32, i32
  }
  func.func @transform_2(%arg0: i32) -> (i32, i32, i32) {
    %c0_i32 = arith.constant 0 : i32
    %c0_i32_0 = arith.constant 0 : i32
    %c0_i32_1 = arith.constant 0 : i32
    %c0_i32_2 = arith.constant 0 : i32
    return %c0_i32, %c0_i32_0, %c0_i32_1 : i32, i32, i32
  }
  func.func @transform_3(%arg0: i32) -> (i32, i32, i32) {
    %c0_i32 = arith.constant 0 : i32
    %c0_i32_0 = arith.constant 0 : i32
    %c0_i32_1 = arith.constant 0 : i32
    %c0_i32_2 = arith.constant 0 : i32
    return %c0_i32, %c0_i32_0, %c0_i32_1 : i32, i32, i32
  }
  func.func @transform_4(%arg0: i32) -> (i32, i32, i32, i32) {
    %c0_i32 = arith.constant 0 : i32
    %c0_i32_0 = arith.constant 0 : i32
    %c0_i32_1 = arith.constant 0 : i32
    %c0_i32_2 = arith.constant 0 : i32
    return %arg0, %c0_i32, %c0_i32_0, %c0_i32_1 : i32, i32, i32, i32
  }
}

module attributes {stable_mosaic.version = 11 : i64} {
  func.func @_unet_expand_fft_kernel(%arg0: i32, %arg1: memref<1x32x16xf32, #tpu.memory_space<vmem>>, %arg2: memref<1x2x64x16xf32, #tpu.memory_space<vmem>>, %arg3: memref<3x128x32xf32, #tpu.memory_space<vmem>>, %arg4: memref<128x1xf32, #tpu.memory_space<vmem>>, %arg5: memref<3x32x128xf32, #tpu.memory_space<vmem>>, %arg6: memref<32x1xf32, #tpu.memory_space<vmem>>, %arg7: memref<3x16x16xf32, #tpu.memory_space<vmem>>, %arg8: memref<2x16x16xf32, #tpu.memory_space<vmem>>, %arg9: memref<2x16x16xf32, #tpu.memory_space<vmem>>, %arg10: memref<1x2x64x16xf32, #tpu.memory_space<vmem>>, %arg11: memref<64x16xf32, #tpu.memory_space<vmem>>, %arg12: memref<64x16xf32, #tpu.memory_space<vmem>>) attributes {dimension_semantics = [#tpu.dimension_semantics<parallel>], iteration_bounds = array<i64: 2>, scalar_prefetch = 0 : i64, scratch_operands = 2 : i64, tpu.core_type = #tpu.core_type<tc>, window_params = [{transform_indices = @transform_0, window_bounds = array<i64: 1, 32, 16>}, {transform_indices = @transform_1, window_bounds = array<i64: 1, 2, 64, 16>}, {pipeline_mode = #tpu.pipeline_mode<synchronous>, transform_indices = @transform_2, window_bounds = array<i64: 3, 128, 32>}, {pipeline_mode = #tpu.pipeline_mode<synchronous>, transform_indices = @transform_3, window_bounds = array<i64: 128, 1>}, {pipeline_mode = #tpu.pipeline_mode<synchronous>, transform_indices = @transform_4, window_bounds = array<i64: 3, 32, 128>}, {pipeline_mode = #tpu.pipeline_mode<synchronous>, transform_indices = @transform_5, window_bounds = array<i64: 32, 1>}, {pipeline_mode = #tpu.pipeline_mode<synchronous>, transform_indices = @transform_6, window_bounds = array<i64: 3, 16, 16>}, {pipeline_mode = #tpu.pipeline_mode<synchronous>, transform_indices = @transform_7, window_bounds = array<i64: 2, 16, 16>}, {pipeline_mode = #tpu.pipeline_mode<synchronous>, transform_indices = @transform_8, window_bounds = array<i64: 2, 16, 16>}, {transform_indices = @transform_9, window_bounds = array<i64: 1, 2, 64, 16>}]} {
    %c0 = arith.constant 0 : index
    %c0_0 = arith.constant 0 : index
    %c0_1 = arith.constant 0 : index
    %0 = vector.load %arg1[%c0, %c0_0, %c0_1] : memref<1x32x16xf32, #tpu.memory_space<vmem>>, vector<1x32x16xf32>
    %1 = vector.shape_cast %0 : vector<1x32x16xf32> to vector<32x16xf32>
    %c0_2 = arith.constant 0 : index
    %c0_3 = arith.constant 0 : index
    %c0_4 = arith.constant 0 : index
    %2 = vector.load %arg7[%c0_2, %c0_3, %c0_4] : memref<3x16x16xf32, #tpu.memory_space<vmem>>, vector<1x16x16xf32>
    %3 = vector.shape_cast %2 : vector<1x16x16xf32> to vector<16x16xf32>
    %cst = arith.constant dense<0.000000e+00> : vector<32x16xf32>
    %4 = tpu.matmul %1, %3, %cst {dimension_numbers = #tpu.dot_dimension_numbers<[1], [0], [0], [1], [0, 0, 1, 1], [], []>} : vector<32x16xf32>, vector<16x16xf32>, vector<32x16xf32> -> vector<32x16xf32>
    %c0_5 = arith.constant 0 : index
    %c0_6 = arith.constant 0 : index
    %c0_7 = arith.constant 0 : index
    %5 = vector.load %arg3[%c0_5, %c0_6, %c0_7] : memref<3x128x32xf32, #tpu.memory_space<vmem>>, vector<1x128x32xf32>
    %6 = vector.shape_cast %5 : vector<1x128x32xf32> to vector<128x32xf32>
    %cst_8 = arith.constant dense<0.000000e+00> : vector<128x16xf32>
    %7 = tpu.matmul %6, %4, %cst_8 {dimension_numbers = #tpu.dot_dimension_numbers<[1], [0], [0], [1], [0, 0, 1, 1], [], []>} : vector<128x32xf32>, vector<32x16xf32>, vector<128x16xf32> -> vector<128x16xf32>
    %c1 = arith.constant 1 : index
    %c0_9 = arith.constant 0 : index
    %c0_10 = arith.constant 0 : index
    %8 = vector.load %arg7[%c1, %c0_9, %c0_10] : memref<3x16x16xf32, #tpu.memory_space<vmem>>, vector<1x16x16xf32>
    %9 = vector.shape_cast %8 : vector<1x16x16xf32> to vector<16x16xf32>
    %cst_11 = arith.constant dense<0.000000e+00> : vector<32x16xf32>
    %10 = tpu.matmul %1, %9, %cst_11 {dimension_numbers = #tpu.dot_dimension_numbers<[1], [0], [0], [1], [0, 0, 1, 1], [], []>} : vector<32x16xf32>, vector<16x16xf32>, vector<32x16xf32> -> vector<32x16xf32>
    %c1_12 = arith.constant 1 : index
    %c0_13 = arith.constant 0 : index
    %c0_14 = arith.constant 0 : index
    %11 = vector.load %arg3[%c1_12, %c0_13, %c0_14] : memref<3x128x32xf32, #tpu.memory_space<vmem>>, vector<1x128x32xf32>
    %12 = vector.shape_cast %11 : vector<1x128x32xf32> to vector<128x32xf32>
    %cst_15 = arith.constant dense<0.000000e+00> : vector<128x16xf32>
    %13 = tpu.matmul %12, %10, %cst_15 {dimension_numbers = #tpu.dot_dimension_numbers<[1], [0], [0], [1], [0, 0, 1, 1], [], []>} : vector<128x32xf32>, vector<32x16xf32>, vector<128x16xf32> -> vector<128x16xf32>
    %14 = arith.addf %7, %13 : vector<128x16xf32>
    %c2 = arith.constant 2 : index
    %c0_16 = arith.constant 0 : index
    %c0_17 = arith.constant 0 : index
    %15 = vector.load %arg7[%c2, %c0_16, %c0_17] : memref<3x16x16xf32, #tpu.memory_space<vmem>>, vector<1x16x16xf32>
    %16 = vector.shape_cast %15 : vector<1x16x16xf32> to vector<16x16xf32>
    %cst_18 = arith.constant dense<0.000000e+00> : vector<32x16xf32>
    %17 = tpu.matmul %1, %16, %cst_18 {dimension_numbers = #tpu.dot_dimension_numbers<[1], [0], [0], [1], [0, 0, 1, 1], [], []>} : vector<32x16xf32>, vector<16x16xf32>, vector<32x16xf32> -> vector<32x16xf32>
    %c2_19 = arith.constant 2 : index
    %c0_20 = arith.constant 0 : index
    %c0_21 = arith.constant 0 : index
    %18 = vector.load %arg3[%c2_19, %c0_20, %c0_21] : memref<3x128x32xf32, #tpu.memory_space<vmem>>, vector<1x128x32xf32>
    %19 = vector.shape_cast %18 : vector<1x128x32xf32> to vector<128x32xf32>
    %cst_22 = arith.constant dense<0.000000e+00> : vector<128x16xf32>
    %20 = tpu.matmul %19, %17, %cst_22 {dimension_numbers = #tpu.dot_dimension_numbers<[1], [0], [0], [1], [0, 0, 1, 1], [], []>} : vector<128x32xf32>, vector<32x16xf32>, vector<128x16xf32> -> vector<128x16xf32>
    %21 = arith.addf %14, %20 : vector<128x16xf32>
    %c0_23 = arith.constant 0 : index
    %c0_24 = arith.constant 0 : index
    %22 = vector.load %arg4[%c0_23, %c0_24] : memref<128x1xf32, #tpu.memory_space<vmem>>, vector<128x1xf32>
    %23 = vector.broadcast %22 : vector<128x1xf32> to vector<128x16xf32>
    %24 = arith.addf %21, %23 : vector<128x16xf32>
    %cst_25 = arith.constant 0.000000e+00 : f32
    %25 = vector.broadcast %cst_25 : f32 to vector<128x16xf32>
    %26 = arith.maximumf %24, %25 : vector<128x16xf32>
    %c0_26 = arith.constant 0 : index
    %c0_27 = arith.constant 0 : index
    %c0_28 = arith.constant 0 : index
    %27 = vector.load %arg7[%c0_26, %c0_27, %c0_28] : memref<3x16x16xf32, #tpu.memory_space<vmem>>, vector<1x16x16xf32>
    %28 = vector.shape_cast %27 : vector<1x16x16xf32> to vector<16x16xf32>
    %cst_29 = arith.constant dense<0.000000e+00> : vector<128x16xf32>
    %29 = tpu.matmul %26, %28, %cst_29 {dimension_numbers = #tpu.dot_dimension_numbers<[1], [0], [0], [1], [0, 0, 1, 1], [], []>} : vector<128x16xf32>, vector<16x16xf32>, vector<128x16xf32> -> vector<128x16xf32>
    %c0_30 = arith.constant 0 : index
    %c0_31 = arith.constant 0 : index
    %c0_32 = arith.constant 0 : index
    %30 = vector.load %arg5[%c0_30, %c0_31, %c0_32] : memref<3x32x128xf32, #tpu.memory_space<vmem>>, vector<1x32x128xf32>
    %31 = vector.shape_cast %30 : vector<1x32x128xf32> to vector<32x128xf32>
    %cst_33 = arith.constant dense<0.000000e+00> : vector<32x16xf32>
    %32 = tpu.matmul %31, %29, %cst_33 {dimension_numbers = #tpu.dot_dimension_numbers<[1], [0], [0], [1], [0, 0, 1, 1], [], []>} : vector<32x128xf32>, vector<128x16xf32>, vector<32x16xf32> -> vector<32x16xf32>
    %c1_34 = arith.constant 1 : index
    %c0_35 = arith.constant 0 : index
    %c0_36 = arith.constant 0 : index
    %33 = vector.load %arg7[%c1_34, %c0_35, %c0_36] : memref<3x16x16xf32, #tpu.memory_space<vmem>>, vector<1x16x16xf32>
    %34 = vector.shape_cast %33 : vector<1x16x16xf32> to vector<16x16xf32>
    %cst_37 = arith.constant dense<0.000000e+00> : vector<128x16xf32>
    %35 = tpu.matmul %26, %34, %cst_37 {dimension_numbers = #tpu.dot_dimension_numbers<[1], [0], [0], [1], [0, 0, 1, 1], [], []>} : vector<128x16xf32>, vector<16x16xf32>, vector<128x16xf32> -> vector<128x16xf32>
    %c1_38 = arith.constant 1 : index
    %c0_39 = arith.constant 0 : index
    %c0_40 = arith.constant 0 : index
    %36 = vector.load %arg5[%c1_38, %c0_39, %c0_40] : memref<3x32x128xf32, #tpu.memory_space<vmem>>, vector<1x32x128xf32>
    %37 = vector.shape_cast %36 : vector<1x32x128xf32> to vector<32x128xf32>
    %cst_41 = arith.constant dense<0.000000e+00> : vector<32x16xf32>
    %38 = tpu.matmul %37, %35, %cst_41 {dimension_numbers = #tpu.dot_dimension_numbers<[1], [0], [0], [1], [0, 0, 1, 1], [], []>} : vector<32x128xf32>, vector<128x16xf32>, vector<32x16xf32> -> vector<32x16xf32>
    %39 = arith.addf %32, %38 : vector<32x16xf32>
    %c2_42 = arith.constant 2 : index
    %c0_43 = arith.constant 0 : index
    %c0_44 = arith.constant 0 : index
    %40 = vector.load %arg7[%c2_42, %c0_43, %c0_44] : memref<3x16x16xf32, #tpu.memory_space<vmem>>, vector<1x16x16xf32>
    %41 = vector.shape_cast %40 : vector<1x16x16xf32> to vector<16x16xf32>
    %cst_45 = arith.constant dense<0.000000e+00> : vector<128x16xf32>
    %42 = tpu.matmul %26, %41, %cst_45 {dimension_numbers = #tpu.dot_dimension_numbers<[1], [0], [0], [1], [0, 0, 1, 1], [], []>} : vector<128x16xf32>, vector<16x16xf32>, vector<128x16xf32> -> vector<128x16xf32>
    %c2_46 = arith.constant 2 : index
    %c0_47 = arith.constant 0 : index
    %c0_48 = arith.constant 0 : index
    %43 = vector.load %arg5[%c2_46, %c0_47, %c0_48] : memref<3x32x128xf32, #tpu.memory_space<vmem>>, vector<1x32x128xf32>
    %44 = vector.shape_cast %43 : vector<1x32x128xf32> to vector<32x128xf32>
    %cst_49 = arith.constant dense<0.000000e+00> : vector<32x16xf32>
    %45 = tpu.matmul %44, %42, %cst_49 {dimension_numbers = #tpu.dot_dimension_numbers<[1], [0], [0], [1], [0, 0, 1, 1], [], []>} : vector<32x128xf32>, vector<128x16xf32>, vector<32x16xf32> -> vector<32x16xf32>
    %46 = arith.addf %39, %45 : vector<32x16xf32>
    %c0_50 = arith.constant 0 : index
    %c0_51 = arith.constant 0 : index
    %47 = vector.load %arg6[%c0_50, %c0_51] : memref<32x1xf32, #tpu.memory_space<vmem>>, vector<32x1xf32>
    %48 = vector.broadcast %47 : vector<32x1xf32> to vector<32x16xf32>
    %49 = arith.addf %46, %48 : vector<32x16xf32>
    %50 = vector.extract_strided_slice %49 {offsets = [0, 0], sizes = [16, 16], strides = [1, 1]} : vector<32x16xf32> to vector<16x16xf32>
    %51 = vector.extract_strided_slice %49 {offsets = [16, 0], sizes = [16, 16], strides = [1, 1]} : vector<32x16xf32> to vector<16x16xf32>
    %c0_52 = arith.constant 0 : index
    %c0_53 = arith.constant 0 : index
    %c0_54 = arith.constant 0 : index
    %52 = vector.load %arg8[%c0_52, %c0_53, %c0_54] : memref<2x16x16xf32, #tpu.memory_space<vmem>>, vector<1x16x16xf32>
    %53 = vector.shape_cast %52 : vector<1x16x16xf32> to vector<16x16xf32>
    %c1_55 = arith.constant 1 : index
    %c0_56 = arith.constant 0 : index
    %c0_57 = arith.constant 0 : index
    %54 = vector.load %arg8[%c1_55, %c0_56, %c0_57] : memref<2x16x16xf32, #tpu.memory_space<vmem>>, vector<1x16x16xf32>
    %55 = vector.shape_cast %54 : vector<1x16x16xf32> to vector<16x16xf32>
    %c0_58 = arith.constant 0 : index
    %c0_59 = arith.constant 0 : index
    %c0_60 = arith.constant 0 : index
    %c0_61 = arith.constant 0 : index
    %56 = vector.load %arg2[%c0_58, %c0_59, %c0_60, %c0_61] : memref<1x2x64x16xf32, #tpu.memory_space<vmem>>, vector<1x1x16x16xf32>
    %57 = vector.shape_cast %56 : vector<1x1x16x16xf32> to vector<16x16xf32>
    %c0_62 = arith.constant 0 : index
    %c1_63 = arith.constant 1 : index
    %c0_64 = arith.constant 0 : index
    %c0_65 = arith.constant 0 : index
    %58 = vector.load %arg2[%c0_62, %c1_63, %c0_64, %c0_65] : memref<1x2x64x16xf32, #tpu.memory_space<vmem>>, vector<1x1x16x16xf32>
    %59 = vector.shape_cast %58 : vector<1x1x16x16xf32> to vector<16x16xf32>
    %60 = arith.mulf %57, %50 : vector<16x16xf32>
    %61 = arith.mulf %59, %51 : vector<16x16xf32>
    %62 = arith.subf %60, %61 : vector<16x16xf32>
    %63 = arith.mulf %57, %51 : vector<16x16xf32>
    %64 = arith.mulf %59, %50 : vector<16x16xf32>
    %65 = arith.addf %63, %64 : vector<16x16xf32>
    %cst_66 = arith.constant dense<0.000000e+00> : vector<16x16xf32>
    %66 = tpu.matmul %53, %62, %cst_66 {dimension_numbers = #tpu.dot_dimension_numbers<[1], [0], [0], [1], [0, 0, 1, 1], [], []>} : vector<16x16xf32>, vector<16x16xf32>, vector<16x16xf32> -> vector<16x16xf32>
    %cst_67 = arith.constant dense<0.000000e+00> : vector<16x16xf32>
    %67 = tpu.matmul %55, %65, %cst_67 {dimension_numbers = #tpu.dot_dimension_numbers<[1], [0], [0], [1], [0, 0, 1, 1], [], []>} : vector<16x16xf32>, vector<16x16xf32>, vector<16x16xf32> -> vector<16x16xf32>
    %68 = arith.addf %53, %55 : vector<16x16xf32>
    %69 = arith.addf %62, %65 : vector<16x16xf32>
    %cst_68 = arith.constant dense<0.000000e+00> : vector<16x16xf32>
    %70 = tpu.matmul %68, %69, %cst_68 {dimension_numbers = #tpu.dot_dimension_numbers<[1], [0], [0], [1], [0, 0, 1, 1], [], []>} : vector<16x16xf32>, vector<16x16xf32>, vector<16x16xf32> -> vector<16x16xf32>
    %71 = arith.subf %66, %67 : vector<16x16xf32>
    %72 = arith.subf %70, %66 : vector<16x16xf32>
    %73 = arith.subf %72, %67 : vector<16x16xf32>
    %c0_69 = arith.constant 0 : index
    %c0_70 = arith.constant 0 : index
    %74 = vector.load %arg11[%c0_69, %c0_70] : memref<64x16xf32, #tpu.memory_space<vmem>>, vector<16x16xf32>
    tpu.vector_store %arg11[%c0_69, %c0_70], %71 {strides = array<i32>} : memref<64x16xf32, #tpu.memory_space<vmem>>, vector<16x16xf32>,
    %c0_71 = arith.constant 0 : index
    %c0_72 = arith.constant 0 : index
    %75 = vector.load %arg12[%c0_71, %c0_72] : memref<64x16xf32, #tpu.memory_space<vmem>>, vector<16x16xf32>
    tpu.vector_store %arg12[%c0_71, %c0_72], %73 {strides = array<i32>} : memref<64x16xf32, #tpu.memory_space<vmem>>, vector<16x16xf32>,
    %c0_73 = arith.constant 0 : index
    %c0_74 = arith.constant 0 : index
    %c16 = arith.constant 16 : index
    %c0_75 = arith.constant 0 : index
    %76 = vector.load %arg2[%c0_73, %c0_74, %c16, %c0_75] : memref<1x2x64x16xf32, #tpu.memory_space<vmem>>, vector<1x1x16x16xf32>
    %77 = vector.shape_cast %76 : vector<1x1x16x16xf32> to vector<16x16xf32>
    %c0_76 = arith.constant 0 : index
    %c1_77 = arith.constant 1 : index
    %c16_78 = arith.constant 16 : index
    %c0_79 = arith.constant 0 : index
    %78 = vector.load %arg2[%c0_76, %c1_77, %c16_78, %c0_79] : memref<1x2x64x16xf32, #tpu.memory_space<vmem>>, vector<1x1x16x16xf32>
    %79 = vector.shape_cast %78 : vector<1x1x16x16xf32> to vector<16x16xf32>
    %80 = arith.mulf %77, %50 : vector<16x16xf32>
    %81 = arith.mulf %79, %51 : vector<16x16xf32>
    %82 = arith.subf %80, %81 : vector<16x16xf32>
    %83 = arith.mulf %77, %51 : vector<16x16xf32>
    %84 = arith.mulf %79, %50 : vector<16x16xf32>
    %85 = arith.addf %83, %84 : vector<16x16xf32>
    %cst_80 = arith.constant dense<0.000000e+00> : vector<16x16xf32>
    %86 = tpu.matmul %53, %82, %cst_80 {dimension_numbers = #tpu.dot_dimension_numbers<[1], [0], [0], [1], [0, 0, 1, 1], [], []>} : vector<16x16xf32>, vector<16x16xf32>, vector<16x16xf32> -> vector<16x16xf32>
    %cst_81 = arith.constant dense<0.000000e+00> : vector<16x16xf32>
    %87 = tpu.matmul %55, %85, %cst_81 {dimension_numbers = #tpu.dot_dimension_numbers<[1], [0], [0], [1], [0, 0, 1, 1], [], []>} : vector<16x16xf32>, vector<16x16xf32>, vector<16x16xf32> -> vector<16x16xf32>
    %88 = arith.addf %53, %55 : vector<16x16xf32>
    %89 = arith.addf %82, %85 : vector<16x16xf32>
    %cst_82 = arith.constant dense<0.000000e+00> : vector<16x16xf32>
    %90 = tpu.matmul %88, %89, %cst_82 {dimension_numbers = #tpu.dot_dimension_numbers<[1], [0], [0], [1], [0, 0, 1, 1], [], []>} : vector<16x16xf32>, vector<16x16xf32>, vector<16x16xf32> -> vector<16x16xf32>
    %91 = arith.subf %86, %87 : vector<16x16xf32>
    %92 = arith.subf %90, %86 : vector<16x16xf32>
    %93 = arith.subf %92, %87 : vector<16x16xf32>
    %c16_83 = arith.constant 16 : index
    %c0_84 = arith.constant 0 : index
    %94 = vector.load %arg11[%c16_83, %c0_84] : memref<64x16xf32, #tpu.memory_space<vmem>>, vector<16x16xf32>
    tpu.vector_store %arg11[%c16_83, %c0_84], %91 {strides = array<i32>} : memref<64x16xf32, #tpu.memory_space<vmem>>, vector<16x16xf32>,
    %c16_85 = arith.constant 16 : index
    %c0_86 = arith.constant 0 : index
    %95 = vector.load %arg12[%c16_85, %c0_86] : memref<64x16xf32, #tpu.memory_space<vmem>>, vector<16x16xf32>
    tpu.vector_store %arg12[%c16_85, %c0_86], %93 {strides = array<i32>} : memref<64x16xf32, #tpu.memory_space<vmem>>, vector<16x16xf32>,
    %c0_87 = arith.constant 0 : index
    %c0_88 = arith.constant 0 : index
    %c32 = arith.constant 32 : index
    %c0_89 = arith.constant 0 : index
    %96 = vector.load %arg2[%c0_87, %c0_88, %c32, %c0_89] : memref<1x2x64x16xf32, #tpu.memory_space<vmem>>, vector<1x1x16x16xf32>
    %97 = vector.shape_cast %96 : vector<1x1x16x16xf32> to vector<16x16xf32>
    %c0_90 = arith.constant 0 : index
    %c1_91 = arith.constant 1 : index
    %c32_92 = arith.constant 32 : index
    %c0_93 = arith.constant 0 : index
    %98 = vector.load %arg2[%c0_90, %c1_91, %c32_92, %c0_93] : memref<1x2x64x16xf32, #tpu.memory_space<vmem>>, vector<1x1x16x16xf32>
    %99 = vector.shape_cast %98 : vector<1x1x16x16xf32> to vector<16x16xf32>
    %100 = arith.mulf %97, %50 : vector<16x16xf32>
    %101 = arith.mulf %99, %51 : vector<16x16xf32>
    %102 = arith.subf %100, %101 : vector<16x16xf32>
    %103 = arith.mulf %97, %51 : vector<16x16xf32>
    %104 = arith.mulf %99, %50 : vector<16x16xf32>
    %105 = arith.addf %103, %104 : vector<16x16xf32>
    %cst_94 = arith.constant dense<0.000000e+00> : vector<16x16xf32>
    %106 = tpu.matmul %53, %102, %cst_94 {dimension_numbers = #tpu.dot_dimension_numbers<[1], [0], [0], [1], [0, 0, 1, 1], [], []>} : vector<16x16xf32>, vector<16x16xf32>, vector<16x16xf32> -> vector<16x16xf32>
    %cst_95 = arith.constant dense<0.000000e+00> : vector<16x16xf32>
    %107 = tpu.matmul %55, %105, %cst_95 {dimension_numbers = #tpu.dot_dimension_numbers<[1], [0], [0], [1], [0, 0, 1, 1], [], []>} : vector<16x16xf32>, vector<16x16xf32>, vector<16x16xf32> -> vector<16x16xf32>
    %108 = arith.addf %53, %55 : vector<16x16xf32>
    %109 = arith.addf %102, %105 : vector<16x16xf32>
    %cst_96 = arith.constant dense<0.000000e+00> : vector<16x16xf32>
    %110 = tpu.matmul %108, %109, %cst_96 {dimension_numbers = #tpu.dot_dimension_numbers<[1], [0], [0], [1], [0, 0, 1, 1], [], []>} : vector<16x16xf32>, vector<16x16xf32>, vector<16x16xf32> -> vector<16x16xf32>
    %111 = arith.subf %106, %107 : vector<16x16xf32>
    %112 = arith.subf %110, %106 : vector<16x16xf32>
    %113 = arith.subf %112, %107 : vector<16x16xf32>
    %c32_97 = arith.constant 32 : index
    %c0_98 = arith.constant 0 : index
    %114 = vector.load %arg11[%c32_97, %c0_98] : memref<64x16xf32, #tpu.memory_space<vmem>>, vector<16x16xf32>
    tpu.vector_store %arg11[%c32_97, %c0_98], %111 {strides = array<i32>} : memref<64x16xf32, #tpu.memory_space<vmem>>, vector<16x16xf32>,
    %c32_99 = arith.constant 32 : index
    %c0_100 = arith.constant 0 : index
    %115 = vector.load %arg12[%c32_99, %c0_100] : memref<64x16xf32, #tpu.memory_space<vmem>>, vector<16x16xf32>
    tpu.vector_store %arg12[%c32_99, %c0_100], %113 {strides = array<i32>} : memref<64x16xf32, #tpu.memory_space<vmem>>, vector<16x16xf32>,
    %c0_101 = arith.constant 0 : index
    %c0_102 = arith.constant 0 : index
    %c48 = arith.constant 48 : index
    %c0_103 = arith.constant 0 : index
    %116 = vector.load %arg2[%c0_101, %c0_102, %c48, %c0_103] : memref<1x2x64x16xf32, #tpu.memory_space<vmem>>, vector<1x1x16x16xf32>
    %117 = vector.shape_cast %116 : vector<1x1x16x16xf32> to vector<16x16xf32>
    %c0_104 = arith.constant 0 : index
    %c1_105 = arith.constant 1 : index
    %c48_106 = arith.constant 48 : index
    %c0_107 = arith.constant 0 : index
    %118 = vector.load %arg2[%c0_104, %c1_105, %c48_106, %c0_107] : memref<1x2x64x16xf32, #tpu.memory_space<vmem>>, vector<1x1x16x16xf32>
    %119 = vector.shape_cast %118 : vector<1x1x16x16xf32> to vector<16x16xf32>
    %120 = arith.mulf %117, %50 : vector<16x16xf32>
    %121 = arith.mulf %119, %51 : vector<16x16xf32>
    %122 = arith.subf %120, %121 : vector<16x16xf32>
    %123 = arith.mulf %117, %51 : vector<16x16xf32>
    %124 = arith.mulf %119, %50 : vector<16x16xf32>
    %125 = arith.addf %123, %124 : vector<16x16xf32>
    %cst_108 = arith.constant dense<0.000000e+00> : vector<16x16xf32>
    %126 = tpu.matmul %53, %122, %cst_108 {dimension_numbers = #tpu.dot_dimension_numbers<[1], [0], [0], [1], [0, 0, 1, 1], [], []>} : vector<16x16xf32>, vector<16x16xf32>, vector<16x16xf32> -> vector<16x16xf32>
    %cst_109 = arith.constant dense<0.000000e+00> : vector<16x16xf32>
    %127 = tpu.matmul %55, %125, %cst_109 {dimension_numbers = #tpu.dot_dimension_numbers<[1], [0], [0], [1], [0, 0, 1, 1], [], []>} : vector<16x16xf32>, vector<16x16xf32>, vector<16x16xf32> -> vector<16x16xf32>
    %128 = arith.addf %53, %55 : vector<16x16xf32>
    %129 = arith.addf %122, %125 : vector<16x16xf32>
    %cst_110 = arith.constant dense<0.000000e+00> : vector<16x16xf32>
    %130 = tpu.matmul %128, %129, %cst_110 {dimension_numbers = #tpu.dot_dimension_numbers<[1], [0], [0], [1], [0, 0, 1, 1], [], []>} : vector<16x16xf32>, vector<16x16xf32>, vector<16x16xf32> -> vector<16x16xf32>
    %131 = arith.subf %126, %127 : vector<16x16xf32>
    %132 = arith.subf %130, %126 : vector<16x16xf32>
    %133 = arith.subf %132, %127 : vector<16x16xf32>
    %c48_111 = arith.constant 48 : index
    %c0_112 = arith.constant 0 : index
    %134 = vector.load %arg11[%c48_111, %c0_112] : memref<64x16xf32, #tpu.memory_space<vmem>>, vector<16x16xf32>
    tpu.vector_store %arg11[%c48_111, %c0_112], %131 {strides = array<i32>} : memref<64x16xf32, #tpu.memory_space<vmem>>, vector<16x16xf32>,
    %c48_113 = arith.constant 48 : index
    %c0_114 = arith.constant 0 : index
    %135 = vector.load %arg12[%c48_113, %c0_114] : memref<64x16xf32, #tpu.memory_space<vmem>>, vector<16x16xf32>
    tpu.vector_store %arg12[%c48_113, %c0_114], %133 {strides = array<i32>} : memref<64x16xf32, #tpu.memory_space<vmem>>, vector<16x16xf32>,
    %c0_115 = arith.constant 0 : index
    %c0_116 = arith.constant 0 : index
    %136 = vector.load %arg11[%c0_115, %c0_116] : memref<64x16xf32, #tpu.memory_space<vmem>>, vector<64x16xf32>
    %c0_117 = arith.constant 0 : index
    %c0_118 = arith.constant 0 : index
    %137 = vector.load %arg12[%c0_117, %c0_118] : memref<64x16xf32, #tpu.memory_space<vmem>>, vector<64x16xf32>
    %c0_119 = arith.constant 0 : index
    %c0_120 = arith.constant 0 : index
    %c0_121 = arith.constant 0 : index
    %138 = vector.load %arg9[%c0_119, %c0_120, %c0_121] : memref<2x16x16xf32, #tpu.memory_space<vmem>>, vector<1x16x16xf32>
    %139 = vector.shape_cast %138 : vector<1x16x16xf32> to vector<16x16xf32>
    %c1_122 = arith.constant 1 : index
    %c0_123 = arith.constant 0 : index
    %c0_124 = arith.constant 0 : index
    %140 = vector.load %arg9[%c1_122, %c0_123, %c0_124] : memref<2x16x16xf32, #tpu.memory_space<vmem>>, vector<1x16x16xf32>
    %141 = vector.shape_cast %140 : vector<1x16x16xf32> to vector<16x16xf32>
    %cst_125 = arith.constant dense<0.000000e+00> : vector<64x16xf32>
    %142 = tpu.matmul %136, %139, %cst_125 {dimension_numbers = #tpu.dot_dimension_numbers<[1], [0], [0], [1], [0, 0, 1, 1], [], []>} : vector<64x16xf32>, vector<16x16xf32>, vector<64x16xf32> -> vector<64x16xf32>
    %cst_126 = arith.constant dense<0.000000e+00> : vector<64x16xf32>
    %143 = tpu.matmul %137, %141, %cst_126 {dimension_numbers = #tpu.dot_dimension_numbers<[1], [0], [0], [1], [0, 0, 1, 1], [], []>} : vector<64x16xf32>, vector<16x16xf32>, vector<64x16xf32> -> vector<64x16xf32>
    %144 = arith.addf %136, %137 : vector<64x16xf32>
    %145 = arith.addf %139, %141 : vector<16x16xf32>
    %cst_127 = arith.constant dense<0.000000e+00> : vector<64x16xf32>
    %146 = tpu.matmul %144, %145, %cst_127 {dimension_numbers = #tpu.dot_dimension_numbers<[1], [0], [0], [1], [0, 0, 1, 1], [], []>} : vector<64x16xf32>, vector<16x16xf32>, vector<64x16xf32> -> vector<64x16xf32>
    %147 = arith.subf %142, %143 : vector<64x16xf32>
    %148 = arith.subf %146, %142 : vector<64x16xf32>
    %149 = arith.subf %148, %143 : vector<64x16xf32>
    %c0_128 = arith.constant 0 : index
    %c0_129 = arith.constant 0 : index
    %c0_130 = arith.constant 0 : index
    %c0_131 = arith.constant 0 : index
    %150 = vector.load %arg10[%c0_128, %c0_129, %c0_130, %c0_131] : memref<1x2x64x16xf32, #tpu.memory_space<vmem>>, vector<1x1x64x16xf32>
    %151 = vector.shape_cast %150 : vector<1x1x64x16xf32> to vector<64x16xf32>
    %152 = vector.shape_cast %147 : vector<64x16xf32> to vector<1x1x64x16xf32>
    tpu.vector_store %arg10[%c0_128, %c0_129, %c0_130, %c0_131], %152 {strides = array<i32>} : memref<1x2x64x16xf32, #tpu.memory_space<vmem>>, vector<1x1x64x16xf32>,
    %c0_132 = arith.constant 0 : index
    %c1_133 = arith.constant 1 : index
    %c0_134 = arith.constant 0 : index
    %c0_135 = arith.constant 0 : index
    %153 = vector.load %arg10[%c0_132, %c1_133, %c0_134, %c0_135] : memref<1x2x64x16xf32, #tpu.memory_space<vmem>>, vector<1x1x64x16xf32>
    %154 = vector.shape_cast %153 : vector<1x1x64x16xf32> to vector<64x16xf32>
    %155 = vector.shape_cast %149 : vector<64x16xf32> to vector<1x1x64x16xf32>
    tpu.vector_store %arg10[%c0_132, %c1_133, %c0_134, %c0_135], %155 {strides = array<i32>} : memref<1x2x64x16xf32, #tpu.memory_space<vmem>>, vector<1x1x64x16xf32>,
    return
  }
  func.func @transform_0(%arg0: i32) -> (i32, i32, i32) {
    %c0_i32 = arith.constant 0 : i32
    %c0_i32_0 = arith.constant 0 : i32
    %c0_i32_1 = arith.constant 0 : i32
    return %arg0, %c0_i32, %c0_i32_0 : i32, i32, i32
  }
  func.func @transform_1(%arg0: i32) -> (i32, i32, i32, i32) {
    %c0_i32 = arith.constant 0 : i32
    %c0_i32_0 = arith.constant 0 : i32
    %c0_i32_1 = arith.constant 0 : i32
    %c0_i32_2 = arith.constant 0 : i32
    return %arg0, %c0_i32, %c0_i32_0, %c0_i32_1 : i32, i32, i32, i32
  }
  func.func @transform_2(%arg0: i32) -> (i32, i32, i32) {
    %c0_i32 = arith.constant 0 : i32
    %c0_i32_0 = arith.constant 0 : i32
    %c0_i32_1 = arith.constant 0 : i32
    %c0_i32_2 = arith.constant 0 : i32
    return %c0_i32, %c0_i32_0, %c0_i32_1 : i32, i32, i32
  }
  func.func @transform_3(%arg0: i32) -> (i32, i32) {
    %c0_i32 = arith.constant 0 : i32
    %c0_i32_0 = arith.constant 0 : i32
    %c0_i32_1 = arith.constant 0 : i32
    return %c0_i32, %c0_i32_0 : i32, i32
  }
  func.func @transform_4(%arg0: i32) -> (i32, i32, i32) {
    %c0_i32 = arith.constant 0 : i32
    %c0_i32_0 = arith.constant 0 : i32
    %c0_i32_1 = arith.constant 0 : i32
    %c0_i32_2 = arith.constant 0 : i32
    return %c0_i32, %c0_i32_0, %c0_i32_1 : i32, i32, i32
  }
  func.func @transform_5(%arg0: i32) -> (i32, i32) {
    %c0_i32 = arith.constant 0 : i32
    %c0_i32_0 = arith.constant 0 : i32
    %c0_i32_1 = arith.constant 0 : i32
    return %c0_i32, %c0_i32_0 : i32, i32
  }
  func.func @transform_6(%arg0: i32) -> (i32, i32, i32) {
    %c0_i32 = arith.constant 0 : i32
    %c0_i32_0 = arith.constant 0 : i32
    %c0_i32_1 = arith.constant 0 : i32
    %c0_i32_2 = arith.constant 0 : i32
    return %c0_i32, %c0_i32_0, %c0_i32_1 : i32, i32, i32
  }
  func.func @transform_7(%arg0: i32) -> (i32, i32, i32) {
    %c0_i32 = arith.constant 0 : i32
    %c0_i32_0 = arith.constant 0 : i32
    %c0_i32_1 = arith.constant 0 : i32
    %c0_i32_2 = arith.constant 0 : i32
    return %c0_i32, %c0_i32_0, %c0_i32_1 : i32, i32, i32
  }
  func.func @transform_8(%arg0: i32) -> (i32, i32, i32) {
    %c0_i32 = arith.constant 0 : i32
    %c0_i32_0 = arith.constant 0 : i32
    %c0_i32_1 = arith.constant 0 : i32
    %c0_i32_2 = arith.constant 0 : i32
    return %c0_i32, %c0_i32_0, %c0_i32_1 : i32, i32, i32
  }
  func.func @transform_9(%arg0: i32) -> (i32, i32, i32, i32) {
    %c0_i32 = arith.constant 0 : i32
    %c0_i32_0 = arith.constant 0 : i32
    %c0_i32_1 = arith.constant 0 : i32
    %c0_i32_2 = arith.constant 0 : i32
    return %arg0, %c0_i32, %c0_i32_0, %c0_i32_1 : i32, i32, i32, i32
  }
}

</mosaic_0001>

<llo_original>
// kernel: varnet_block.2
$region0: #{varnet_block.2}
  #allocation0 [shape = 'u32[]', space=smem, size = 0x4, offset = 0x4, fixed_abs, tag = 'smem constant byte address 0x4 - core index']
  #allocation1 [shape = 'u32[72,128]{1,0:T(1,128)}', space=vmem, size = 0x9000, scoped, tag = 'internal scratch']
  %s0 = inlined_call_operand.vmem [shape: f32[2,2,64,16], index: 0, kind: input, shape index: {}]
  %s1 = inlined_call_operand.vmem [shape: f32[2,2,64,16], index: 1, kind: input, shape index: {}]
  %s2 = inlined_call_operand.vmem [shape: f32[2,16,16], index: 2, kind: input, shape index: {}]
  %s3 = inlined_call_operand.vmem [shape: f32[2,16,16], index: 3, kind: input, shape index: {}]
  %s4 = inlined_call_operand.vmem [shape: f32[2,2,16,16], index: 4, kind: output, shape index: {}]
  %s5 = sld [smem:[#allocation0]]
  $region49: #{varnet_block.2} parent=0
    _
  %s7 = ssub.s32 1, %s5
  %s8 = scalar_select 0, %s7, %s5
  loop: start=0, step=1, limit=4
  $region2: #{varnet_block.2} parent=0 // loop_pre_header
    _
  $region3: #{varnet_block.2} parent=0 // loop_header
    %s10 = sphi 0, %s14
    %p11 = scmp.ge.s32.totalorder %s10, 4
    %s20 = sphi 0, %s22
    %s23 = sphi 0, %s20
    %s24 = sphi 0, %s23
    %s40 = sphi 0, %s24
    %s46 = sphi 0, %s48
    %s49 = sphi 0, %s46
    %s50 = sphi 0, %s49
    %s66 = sphi 0, %s50
    %s70 = sphi 0, %s70
    %s72 = sphi 0, %s70
    %s73 = sphi 0, %s72
    %s87 = sphi 0, %s73
    %s91 = sphi 0, %s91
    %s93 = sphi 0, %s91
    %s94 = sphi 0, %s93
    %s108 = sphi 0, %s94
    %s114 = sphi 0, %s116
    %s117 = sphi 0, %s114
    %s118 = sphi 0, %s117
    %s134 = sphi 0, %s118
  $region4: #{varnet_block.2} parent=0 // loop_header_branch
    %13 = sbr.rel (%p11) target = $region8
  $region5: #{varnet_block.2} parent=0 // loop_body
    %s15 = ssub.s32 %s10, 1
    %s16 = ssub.s32 %s10, 2
    %s17 = sadd.s32 %s10, 1
    %s18 = ssub.s32 %s10, %s17
    %p19 = scmp.eq.s32.totalorder %s18, 0
    %s21 = sadd.s32 %s20, 1
    %s22 = scalar_select %p19, %s20, %s21
    %p25 = pneg %p19
    %p26 = scmp.eq.s32.totalorder %s10, 1
    %p27 = por %p25, %p26
    %p28 = scmp.ne.s32.totalorder %s20, %s23
    %p29 = scmp.eq.s32.totalorder %s10, 0
    %p30 = por %p28, %p29
    %p31 = scmp.ne.s32.totalorder %s20, %s23
    %p32 = scmp.eq.s32.totalorder %s15, 1
    %p33 = por %p31, %p32
    %p34 = scmp.ne.s32.totalorder %s23, %s24
    %p35 = scmp.eq.s32.totalorder %s15, 0
    %p36 = por %p34, %p35
    %p37 = scmp.ne.s32.totalorder %s23, %s24
    %p38 = scmp.eq.s32.totalorder %s16, 1
    %p39 = por %p37, %p38
    %p41 = scmp.ne.s32.totalorder %s24, %s40
    %p42 = scmp.eq.s32.totalorder %s16, 0
    %p43 = por %p41, %p42
    %s44 = ssub.s32 %s10, %s17
    %p45 = scmp.eq.s32.totalorder %s44, 0
    %s47 = sadd.s32 %s46, 1
    %s48 = scalar_select %p45, %s46, %s47
    %p51 = pneg %p45
    %p52 = scmp.eq.s32.totalorder %s10, 1
    %p53 = por %p51, %p52
    %p54 = scmp.ne.s32.totalorder %s46, %s49
    %p55 = scmp.eq.s32.totalorder %s10, 0
    %p56 = por %p54, %p55
    %p57 = scmp.ne.s32.totalorder %s46, %s49
    %p58 = scmp.eq.s32.totalorder %s15, 1
    %p59 = por %p57, %p58
    %p60 = scmp.ne.s32.totalorder %s49, %s50
    %p61 = scmp.eq.s32.totalorder %s15, 0
    %p62 = por %p60, %p61
    %p63 = scmp.ne.s32.totalorder %s49, %s50
    %p64 = scmp.eq.s32.totalorder %s16, 1
    %p65 = por %p63, %p64
    %p67 = scmp.ne.s32.totalorder %s50, %s66
    %p68 = scmp.eq.s32.totalorder %s16, 0
    %p69 = por %p67, %p68
    %s71 = sadd.s32 %s70, 1
    %p74 = scmp.eq.s32.totalorder %s10, 1
    %p75 = scmp.ne.s32.totalorder %s70, %s72
    %p76 = scmp.eq.s32.totalorder %s10, 0
    %p77 = por %p75, %p76
    %p78 = scmp.ne.s32.totalorder %s70, %s72
    %p79 = scmp.eq.s32.totalorder %s15, 1
    %p80 = por %p78, %p79
    %p81 = scmp.ne.s32.totalorder %s72, %s73
    %p82 = scmp.eq.s32.totalorder %s15, 0
    %p83 = por %p81, %p82
    %p84 = scmp.ne.s32.totalorder %s72, %s73
    %p85 = scmp.eq.s32.totalorder %s16, 1
    %p86 = por %p84, %p85
    %p88 = scmp.ne.s32.totalorder %s73, %s87
    %p89 = scmp.eq.s32.totalorder %s16, 0
    %p90 = por %p88, %p89
    %s92 = sadd.s32 %s91, 1
    %p95 = scmp.eq.s32.totalorder %s10, 1
    %p96 = scmp.ne.s32.totalorder %s91, %s93
    %p97 = scmp.eq.s32.totalorder %s10, 0
    %p98 = por %p96, %p97
    %p99 = scmp.ne.s32.totalorder %s91, %s93
    %p100 = scmp.eq.s32.totalorder %s15, 1
    %p101 = por %p99, %p100
    %p102 = scmp.ne.s32.totalorder %s93, %s94
    %p103 = scmp.eq.s32.totalorder %s15, 0
    %p104 = por %p102, %p103
    %p105 = scmp.ne.s32.totalorder %s93, %s94
    %p106 = scmp.eq.s32.totalorder %s16, 1
    %p107 = por %p105, %p106
    %p109 = scmp.ne.s32.totalorder %s94, %s108
    %p110 = scmp.eq.s32.totalorder %s16, 0
    %p111 = por %p109, %p110
    %s112 = ssub.s32 %s10, %s17
    %p113 = scmp.eq.s32.totalorder %s112, 0
    %s115 = sadd.s32 %s114, 1
    %s116 = scalar_select %p113, %s114, %s115
    %p119 = pneg %p113
    %p120 = scmp.eq.s32.totalorder %s10, 1
    %p121 = por %p119, %p120
    %p122 = scmp.ne.s32.totalorder %s114, %s117
    %p123 = scmp.eq.s32.totalorder %s10, 0
    %p124 = por %p122, %p123
    %p125 = scmp.ne.s32.totalorder %s114, %s117
    %p126 = scmp.eq.s32.totalorder %s15, 1
    %p127 = por %p125, %p126
    %p128 = scmp.ne.s32.totalorder %s117, %s118
    %p129 = scmp.eq.s32.totalorder %s15, 0
    %p130 = por %p128, %p129
    %p131 = scmp.ne.s32.totalorder %s117, %s118
    %p132 = scmp.eq.s32.totalorder %s16, 1
    %p133 = por %p131, %p132
    %p135 = scmp.ne.s32.totalorder %s118, %s134
    %p136 = scmp.eq.s32.totalorder %s16, 0
    %p137 = por %p135, %p136
    %p138 = scmp.le.s32.totalorder 1, %s10
    %p139 = scmp.lt.s32.totalorder %s10, 3
    %p140 = pnand %p138, %p139
    %p141 = pneg %p140
    // Predicated region
    $region9: #{varnet_block.2} parent=5 // pred_check
      _
    $region10: #{varnet_block.2} parent=5 // pred_check_branch
      %143 = sbr.rel (%p140) target = $region12
    $region11: #{varnet_block.2} parent=5 // pred_region
      %s144 = ssub.s32 %s10, 1
      // Predicated region
      $region13: #{varnet_block.2} parent=11 // pred_check
        %p145 = pneg %p83
      $region14: #{varnet_block.2} parent=11 // pred_check_branch
        %147 = sbr.rel (%p145) target = $region16
      $region15: #{varnet_block.2} parent=11 // pred_region
        _
      $region16: #{varnet_block.2} parent=11 // pred_fallthru
        _
      // Predicated region
      $region17: #{varnet_block.2} parent=11 // pred_check
        %p148 = pneg %p104
      $region18: #{varnet_block.2} parent=11 // pred_check_branch
        %150 = sbr.rel (%p148) target = $region20
      $region19: #{varnet_block.2} parent=11 // pred_region
        _
      $region20: #{varnet_block.2} parent=11 // pred_fallthru
        _
    $region12: #{varnet_block.2} parent=5 // pred_fallthru
      _
    %p151 = scmp.lt.s32.totalorder %s10, 2
    // Predicated region
    $region21: #{varnet_block.2} parent=5 // pred_check
      %p152 = pneg %p151
    $region22: #{varnet_block.2} parent=5 // pred_check_branch
      %154 = sbr.rel (%p152) target = $region24
    $region23: #{varnet_block.2} parent=5 // pred_region
      // Predicated region
      $region25: #{varnet_block.2} parent=23 // pred_check
        %p155 = pneg %p30
      $region26: #{varnet_block.2} parent=23 // pred_check_branch
        %157 = sbr.rel (%p155) target = $region28
      $region27: #{varnet_block.2} parent=23 // pred_region
        %p158 = scmp.lt.s32.totalorder %s10, 1
        %s159 = scalar_select %p158, %s10, 1
        %s160 = smul.addr %s159, 16
        %s161 = smul.addr %s160, 8
        %s162 = scalar_lea.vmem %s0, %s161
      $region28: #{varnet_block.2} parent=23 // pred_fallthru
        _
      // Predicated region
      $region29: #{varnet_block.2} parent=23 // pred_check
        %p163 = pneg %p56
      $region30: #{varnet_block.2} parent=23 // pred_check_branch
        %165 = sbr.rel (%p163) target = $region32
      $region31: #{varnet_block.2} parent=23 // pred_region
        %p166 = scmp.lt.s32.totalorder %s10, 1
        %s167 = scalar_select %p166, %s10, 1
        %s168 = smul.addr %s167, 16
        %s169 = smul.addr %s168, 8
        %s170 = scalar_lea.vmem %s1, %s169
      $region32: #{varnet_block.2} parent=23 // pred_fallthru
        _
    $region24: #{varnet_block.2} parent=5 // pred_fallthru
      _
    %p171 = scmp.le.s32.totalorder 1, %s10
    %p172 = scmp.lt.s32.totalorder %s10, 3
    %p173 = pnand %p171, %p172
    %p174 = pneg %p173
    // Predicated region
    $region33: #{varnet_block.2} parent=5 // pred_check
      _
    $region34: #{varnet_block.2} parent=5 // pred_check_branch
      %176 = sbr.rel (%p173) target = $region36
    $region35: #{varnet_block.2} parent=5 // pred_region
      %s177 = ssub.s32 %s10, 1
      %p178 = scmp.lt.s32.totalorder %s15, 1
      %s179 = scalar_select %p178, %s15, 1
      %s180 = smul.addr %s179, 16
      %s181 = smul.addr %s180, 8
      %s182 = scalar_lea.vmem %s0, %s181
      %p183 = pneg %p36
      %p184 = pneg %p33
      %p185 = scmp.lt.s32.totalorder %s15, 1
      %s186 = scalar_select %p185, %s15, 1
      %s187 = smul.addr %s186, 16
      %s188 = smul.addr %s187, 8
      %s189 = scalar_lea.vmem %s1, %s188
      %p190 = pneg %p62
      %p191 = pneg %p59
      %p192 = pneg %p83
      %p193 = pneg %p80
      %p194 = pneg %p104
      %p195 = pneg %p101
      %p196 = pneg %p130
      %p197 = pneg %p127
      %p198 = scmp.lt.s32.totalorder %s15, 1
      %s199 = scalar_select %p198, %s15, 1
      %s200 = smul.addr %s199, 4
      %s201 = smul.addr %s200, 8
      %s202 = scalar_lea.vmem %s4, %s201
      %p203 = scmp.lt.s32.totalorder %s15, 1
      %s204 = scalar_select %p203, %s15, 1
      %s205 = smul.addr %s204, 16
      %s206 = smul.addr %s205, 8
      %s207 = scalar_lea.vmem %s0, %s206
      %p208 = scmp.lt.s32.totalorder %s15, 1
      %s209 = scalar_select %p208, %s15, 1
      %s210 = smul.addr %s209, 16
      %s211 = smul.addr %s210, 8
      %s212 = scalar_lea.vmem %s1, %s211
      %p213 = scmp.lt.s32.totalorder %s15, 1
      %s214 = scalar_select %p213, %s15, 1
      %s215 = smul.addr %s214, 4
      %s216 = smul.addr %s215, 8
      %s217 = scalar_lea.vmem %s4, %s216
      %v218 = vld [vmem:[%s207] sm:$0xff]
      %v219 = vld [vmem:[%s207 + $0x8] sm:$0xff]
      %v220 = vld [vmem:[%s207 + $0x10] sm:$0xff]
      %v221 = vld [vmem:[%s207 + $0x18] sm:$0xff]
      %v222 = vld [vmem:[%s207 + $0x20] sm:$0xff]
      %v223 = vld [vmem:[%s207 + $0x28] sm:$0xff]
      %v224 = vld [vmem:[%s207 + $0x30] sm:$0xff]
      %v225 = vld [vmem:[%s207 + $0x38] sm:$0xff]
      %s226 = scalar_lea.vmem %s207, 64
      %v227 = vld [vmem:[%s226] sm:$0xff]
      %v228 = vld [vmem:[%s226 + $0x8] sm:$0xff]
      %v229 = vld [vmem:[%s226 + $0x10] sm:$0xff]
      %v230 = vld [vmem:[%s226 + $0x18] sm:$0xff]
      %v231 = vld [vmem:[%s226 + $0x20] sm:$0xff]
      %v232 = vld [vmem:[%s226 + $0x28] sm:$0xff]
      %v233 = vld [vmem:[%s226 + $0x30] sm:$0xff]
      %v234 = vld [vmem:[%s226 + $0x38] sm:$0xff]
      %v235 = vld [vmem:[%s3] sm:$0xff]
      %v236 = vld [vmem:[%s3 + $0x8] sm:$0xff]
      %s237 = scalar_lea.vmem %s3, 16
      %v238 = vld [vmem:[%s237] sm:$0xff]
      %v239 = vld [vmem:[%s237 + $0x8] sm:$0xff]
      %vm240 = vcmask 130048
      %v242 = vsel %vm240, %v218, 0
      %v245 = vsel %vm240, %v219, 0
      %v248 = vsel %vm240, %v220, 0
      %v251 = vsel %vm240, %v221, 0
      %v254 = vsel %vm240, %v222, 0
      %v257 = vsel %vm240, %v223, 0
      %v260 = vsel %vm240, %v224, 0
      %v263 = vsel %vm240, %v225, 0
      %265 = vmatpush.msra.mxu0 0.0
      %266 = vmatpush.msra.mxu0 0.0
      %267 = vmatpush.msra.mxu0 0.0
      %268 = vmatpush.msra.mxu0 0.0
      %269 = vmatpush.msra.mxu0 0.0
      %270 = vmatpush.msra.mxu0 0.0
      %271 = vmatpush.msra.mxu0 0.0
      %272 = vmatpush.msra.mxu0 0.0
      %273 = vmatpush.msra.mxu0 0.0
      %274 = vmatpush.msra.mxu0 0.0
      %275 = vmatpush.msra.mxu0 0.0
      %276 = vmatpush.msra.mxu0 0.0
      %277 = vmatpush.msra.mxu0 0.0
      %278 = vmatpush.msra.mxu0 0.0
      %279 = vmatpush.msra.mxu0 %v236
      %280 = vmatpush.msra.mxu0 %v235
      %281 = vmatmul.f32.gmra.mxu0 %v242
      %v282 = vpop.f32.mrf.mxu0
      %v283 = vadd.f32 0.0, %v282
      %284 = vmatmul.f32.gmra.mxu0 %v245
      %v285 = vpop.f32.mrf.mxu0
      %v286 = vadd.f32 0.0, %v285
      %287 = vmatmul.f32.gmra.mxu0 %v248
      %v288 = vpop.f32.mrf.mxu0
      %v289 = vadd.f32 0.0, %v288
      %290 = vmatmul.f32.gmra.mxu0 %v251
      %v291 = vpop.f32.mrf.mxu0
      %v292 = vadd.f32 0.0, %v291
      %293 = vmatmul.f32.gmra.mxu0 %v254
      %v294 = vpop.f32.mrf.mxu0
      %v295 = vadd.f32 0.0, %v294
      %296 = vmatmul.f32.gmra.mxu0 %v257
      %v297 = vpop.f32.mrf.mxu0
      %v298 = vadd.f32 0.0, %v297
      %299 = vmatmul.f32.gmra.mxu0 %v260
      %v300 = vpop.f32.mrf.mxu0
      %v301 = vadd.f32 0.0, %v300
      %302 = vmatmul.f32.gmra.mxu0 %v263
      %v303 = vpop.f32.mrf.mxu0
      %v304 = vadd.f32 0.0, %v303
      %305 = vdwg.mxu0
      %v307 = vsel %vm240, %v227, 0
      %v310 = vsel %vm240, %v228, 0
      %v313 = vsel %vm240, %v229, 0
      %v316 = vsel %vm240, %v230, 0
      %v319 = vsel %vm240, %v231, 0
      %v322 = vsel %vm240, %v232, 0
      %v325 = vsel %vm240, %v233, 0
      %v328 = vsel %vm240, %v234, 0
      %330 = vmatpush.msra.mxu0 0.0
      %331 = vmatpush.msra.mxu0 0.0
      %332 = vmatpush.msra.mxu0 0.0
      %333 = vmatpush.msra.mxu0 0.0
      %334 = vmatpush.msra.mxu0 0.0
      %335 = vmatpush.msra.mxu0 0.0
      %336 = vmatpush.msra.mxu0 0.0
      %337 = vmatpush.msra.mxu0 0.0
      %338 = vmatpush.msra.mxu0 0.0
      %339 = vmatpush.msra.mxu0 0.0
      %340 = vmatpush.msra.mxu0 0.0
      %341 = vmatpush.msra.mxu0 0.0
      %342 = vmatpush.msra.mxu0 0.0
      %343 = vmatpush.msra.mxu0 0.0
      %344 = vmatpush.msra.mxu0 %v239
      %345 = vmatpush.msra.mxu0 %v238
      %346 = vmatmul.f32.gmra.mxu0 %v307
      %v347 = vpop.f32.mrf.mxu0
      %v348 = vadd.f32 0.0, %v347
      %349 = vmatmul.f32.gmra.mxu0 %v310
      %v350 = vpop.f32.mrf.mxu0
      %v351 = vadd.f32 0.0, %v350
      %352 = vmatmul.f32.gmra.mxu0 %v313
      %v353 = vpop.f32.mrf.mxu0
      %v354 = vadd.f32 0.0, %v353
      %355 = vmatmul.f32.gmra.mxu0 %v316
      %v356 = vpop.f32.mrf.mxu0
      %v357 = vadd.f32 0.0, %v356
      %358 = vmatmul.f32.gmra.mxu0 %v319
      %v359 = vpop.f32.mrf.mxu0
      %v360 = vadd.f32 0.0, %v359
      %361 = vmatmul.f32.gmra.mxu0 %v322
      %v362 = vpop.f32.mrf.mxu0
      %v363 = vadd.f32 0.0, %v362
      %364 = vmatmul.f32.gmra.mxu0 %v325
      %v365 = vpop.f32.mrf.mxu0
      %v366 = vadd.f32 0.0, %v365
      %367 = vmatmul.f32.gmra.mxu0 %v328
      %v368 = vpop.f32.mrf.mxu0
      %v369 = vadd.f32 0.0, %v368
      %370 = vdwg.mxu0
      %v371 = vadd.f32 %v218, %v227
      %v372 = vadd.f32 %v219, %v228
      %v373 = vadd.f32 %v220, %v229
      %v374 = vadd.f32 %v221, %v230
      %v375 = vadd.f32 %v222, %v231
      %v376 = vadd.f32 %v223, %v232
      %v377 = vadd.f32 %v224, %v233
      %v378 = vadd.f32 %v225, %v234
      %v379 = vadd.f32 %v235, %v238
      %v380 = vadd.f32 %v236, %v239
      %v382 = vsel %vm240, %v371, 0
      %v385 = vsel %vm240, %v372, 0
      %v388 = vsel %vm240, %v373, 0
      %v391 = vsel %vm240, %v374, 0
      %v394 = vsel %vm240, %v375, 0
      %v397 = vsel %vm240, %v376, 0
      %v400 = vsel %vm240, %v377, 0
      %v403 = vsel %vm240, %v378, 0
      %405 = vmatpush.msra.mxu0 0.0
      %406 = vmatpush.msra.mxu0 0.0
      %407 = vmatpush.msra.mxu0 0.0
      %408 = vmatpush.msra.mxu0 0.0
      %409 = vmatpush.msra.mxu0 0.0
      %410 = vmatpush.msra.mxu0 0.0
      %411 = vmatpush.msra.mxu0 0.0
      %412 = vmatpush.msra.mxu0 0.0
      %413 = vmatpush.msra.mxu0 0.0
      %414 = vmatpush.msra.mxu0 0.0
      %415 = vmatpush.msra.mxu0 0.0
      %416 = vmatpush.msra.mxu0 0.0
      %417 = vmatpush.msra.mxu0 0.0
      %418 = vmatpush.msra.mxu0 0.0
      %419 = vmatpush.msra.mxu0 %v380
      %420 = vmatpush.msra.mxu0 %v379
      %421 = vmatmul.f32.gmra.mxu0 %v382
      %v422 = vpop.f32.mrf.mxu0
      %v423 = vadd.f32 0.0, %v422
      %424 = vmatmul.f32.gmra.mxu0 %v385
      %v425 = vpop.f32.mrf.mxu0
      %v426 = vadd.f32 0.0, %v425
      %427 = vmatmul.f32.gmra.mxu0 %v388
      %v428 = vpop.f32.mrf.mxu0
      %v429 = vadd.f32 0.0, %v428
      %430 = vmatmul.f32.gmra.mxu0 %v391
      %v431 = vpop.f32.mrf.mxu0
      %v432 = vadd.f32 0.0, %v431
      %433 = vmatmul.f32.gmra.mxu0 %v394
      %v434 = vpop.f32.mrf.mxu0
      %v435 = vadd.f32 0.0, %v434
      %436 = vmatmul.f32.gmra.mxu0 %v397
      %v437 = vpop.f32.mrf.mxu0
      %v438 = vadd.f32 0.0, %v437
      %439 = vmatmul.f32.gmra.mxu0 %v400
      %v440 = vpop.f32.mrf.mxu0
      %v441 = vadd.f32 0.0, %v440
      %442 = vmatmul.f32.gmra.mxu0 %v403
      %v443 = vpop.f32.mrf.mxu0
      %v444 = vadd.f32 0.0, %v443
      %445 = vdwg.mxu0
      %v446 = vsub.f32 %v283, %v348
      %v447 = vsub.f32 %v286, %v351
      %v448 = vsub.f32 %v289, %v354
      %v449 = vsub.f32 %v292, %v357
      %v450 = vsub.f32 %v295, %v360
      %v451 = vsub.f32 %v298, %v363
      %v452 = vsub.f32 %v301, %v366
      %v453 = vsub.f32 %v304, %v369
      %v454 = vsub.f32 %v423, %v283
      %v455 = vsub.f32 %v426, %v286
      %v456 = vsub.f32 %v429, %v289
      %v457 = vsub.f32 %v432, %v292
      %v458 = vsub.f32 %v435, %v295
      %v459 = vsub.f32 %v438, %v298
      %v460 = vsub.f32 %v441, %v301
      %v461 = vsub.f32 %v444, %v304
      %v462 = vsub.f32 %v454, %v348
      %v463 = vsub.f32 %v455, %v351
      %v464 = vsub.f32 %v456, %v354
      %v465 = vsub.f32 %v457, %v357
      %v466 = vsub.f32 %v458, %v360
      %v467 = vsub.f32 %v459, %v363
      %v468 = vsub.f32 %v460, %v366
      %v469 = vsub.f32 %v461, %v369
      %v470 = vld [vmem:[%s2] sm:$0xff]
      %v471 = vld [vmem:[%s2 + $0x8] sm:$0xff]
      %s472 = scalar_lea.vmem %s2, 16
      %v473 = vld [vmem:[%s472] sm:$0xff]
      %v474 = vld [vmem:[%s472 + $0x8] sm:$0xff]
      %v476 = vsel %vm240, %v470, 0
      %v479 = vsel %vm240, %v471, 0
      %481 = vmatpush.msra.mxu0 0.0
      %482 = vmatpush.msra.mxu0 0.0
      %483 = vmatpush.msra.mxu0 0.0
      %484 = vmatpush.msra.mxu0 0.0
      %485 = vmatpush.msra.mxu0 0.0
      %486 = vmatpush.msra.mxu0 0.0
      %487 = vmatpush.msra.mxu0 0.0
      %488 = vmatpush.msra.mxu0 0.0
      %489 = vmatpush.msra.mxu0 0.0
      %490 = vmatpush.msra.mxu0 0.0
      %491 = vmatpush.msra.mxu0 0.0
      %492 = vmatpush.msra.mxu0 0.0
      %493 = vmatpush.msra.mxu0 0.0
      %494 = vmatpush.msra.mxu0 0.0
      %495 = vmatpush.msra.mxu0 %v447
      %496 = vmatpush.msra.mxu0 %v446
      %497 = vmatmul.f32.gmra.mxu0 %v476
      %v498 = vpop.f32.mrf.mxu0
      %v499 = vadd.f32 0.0, %v498
      %500 = vmatmul.f32.gmra.mxu0 %v479
      %v501 = vpop.f32.mrf.mxu0
      %v502 = vadd.f32 0.0, %v501
      %503 = vdwg.mxu0
      %v505 = vsel %vm240, %v473, 0
      %v508 = vsel %vm240, %v474, 0
      %510 = vmatpush.msra.mxu0 0.0
      %511 = vmatpush.msra.mxu0 0.0
      %512 = vmatpush.msra.mxu0 0.0
      %513 = vmatpush.msra.mxu0 0.0
      %514 = vmatpush.msra.mxu0 0.0
      %515 = vmatpush.msra.mxu0 0.0
      %516 = vmatpush.msra.mxu0 0.0
      %517 = vmatpush.msra.mxu0 0.0
      %518 = vmatpush.msra.mxu0 0.0
      %519 = vmatpush.msra.mxu0 0.0
      %520 = vmatpush.msra.mxu0 0.0
      %521 = vmatpush.msra.mxu0 0.0
      %522 = vmatpush.msra.mxu0 0.0
      %523 = vmatpush.msra.mxu0 0.0
      %524 = vmatpush.msra.mxu0 %v463
      %525 = vmatpush.msra.mxu0 %v462
      %526 = vmatmul.f32.gmra.mxu0 %v505
      %v527 = vpop.f32.mrf.mxu0
      %v528 = vadd.f32 0.0, %v527
      %529 = vmatmul.f32.gmra.mxu0 %v508
      %v530 = vpop.f32.mrf.mxu0
      %v531 = vadd.f32 0.0, %v530
      %532 = vdwg.mxu0
      %v533 = vadd.f32 %v470, %v473
      %v534 = vadd.f32 %v471, %v474
      %v535 = vadd.f32 %v446, %v462
      %v536 = vadd.f32 %v447, %v463
      %v538 = vsel %vm240, %v533, 0
      %v541 = vsel %vm240, %v534, 0
      %543 = vmatpush.msra.mxu0 0.0
      %544 = vmatpush.msra.mxu0 0.0
      %545 = vmatpush.msra.mxu0 0.0
      %546 = vmatpush.msra.mxu0 0.0
      %547 = vmatpush.msra.mxu0 0.0
      %548 = vmatpush.msra.mxu0 0.0
      %549 = vmatpush.msra.mxu0 0.0
      %550 = vmatpush.msra.mxu0 0.0
      %551 = vmatpush.msra.mxu0 0.0
      %552 = vmatpush.msra.mxu0 0.0
      %553 = vmatpush.msra.mxu0 0.0
      %554 = vmatpush.msra.mxu0 0.0
      %555 = vmatpush.msra.mxu0 0.0
      %556 = vmatpush.msra.mxu0 0.0
      %557 = vmatpush.msra.mxu0 %v536
      %558 = vmatpush.msra.mxu0 %v535
      %559 = vmatmul.f32.gmra.mxu0 %v538
      %v560 = vpop.f32.mrf.mxu0
      %v561 = vadd.f32 0.0, %v560
      %562 = vmatmul.f32.gmra.mxu0 %v541
      %v563 = vpop.f32.mrf.mxu0
      %v564 = vadd.f32 0.0, %v563
      %565 = vdwg.mxu0
      %v566 = vsub.f32 %v499, %v528
      %v567 = vsub.f32 %v502, %v531
      %v568 = vsub.f32 %v561, %v499
      %v569 = vsub.f32 %v564, %v502
      %v570 = vsub.f32 %v568, %v528
      %v571 = vsub.f32 %v569, %v531
      %v572 = vld [vmem:[%s212] sm:$0xff]
      %v573 = vld [vmem:[%s212 + $0x8] sm:$0xff]
      %s574 = scalar_lea.vmem %s212, 64
      %v575 = vld [vmem:[%s574] sm:$0xff]
      %v576 = vld [vmem:[%s574 + $0x8] sm:$0xff]
      %v577 = vmul.f32 %v566, %v572
      %v578 = vmul.f32 %v567, %v573
      %v579 = vmul.f32 %v570, %v575
      %v580 = vmul.f32 %v571, %v576
      %v581 = vsub.f32 %v577, %v579
      %v582 = vsub.f32 %v578, %v580
      %v583 = vadd.f32 %v581, 0.0
      %v584 = vadd.f32 %v582, 0.0
      %v585 = vmul.f32 %v566, %v575
      %v586 = vmul.f32 %v567, %v576
      %v587 = vmul.f32 %v570, %v572
      %v588 = vmul.f32 %v571, %v573
      %v589 = vadd.f32 %v585, %v587
      %v590 = vadd.f32 %v586, %v588
      %v591 = vadd.f32 %v589, 0.0
      %v592 = vadd.f32 %v590, 0.0
      %593 = vmatpush.msra.mxu0 0.0
      %594 = vmatpush.msra.mxu0 0.0
      %595 = vmatpush.msra.mxu0 0.0
      %596 = vmatpush.msra.mxu0 0.0
      %597 = vmatpush.msra.mxu0 0.0
      %598 = vmatpush.msra.mxu0 0.0
      %599 = vmatpush.msra.mxu0 0.0
      %600 = vmatpush.msra.mxu0 0.0
      %601 = vmatpush.msra.mxu0 0.0
      %602 = vmatpush.msra.mxu0 0.0
      %603 = vmatpush.msra.mxu0 0.0
      %604 = vmatpush.msra.mxu0 0.0
      %605 = vmatpush.msra.mxu0 0.0
      %606 = vmatpush.msra.mxu0 0.0
      %607 = vmatpush.msra.mxu0 %v449
      %608 = vmatpush.msra.mxu0 %v448
      %609 = vmatmul.f32.gmra.mxu0 %v476
      %v610 = vpop.f32.mrf.mxu0
      %v611 = vadd.f32 0.0, %v610
      %612 = vmatmul.f32.gmra.mxu0 %v479
      %v613 = vpop.f32.mrf.mxu0
      %v614 = vadd.f32 0.0, %v613
      %615 = vdwg.mxu0
      %616 = vmatpush.msra.mxu0 0.0
      %617 = vmatpush.msra.mxu0 0.0
      %618 = vmatpush.msra.mxu0 0.0
      %619 = vmatpush.msra.mxu0 0.0
      %620 = vmatpush.msra.mxu0 0.0
      %621 = vmatpush.msra.mxu0 0.0
      %622 = vmatpush.msra.mxu0 0.0
      %623 = vmatpush.msra.mxu0 0.0
      %624 = vmatpush.msra.mxu0 0.0
      %625 = vmatpush.msra.mxu0 0.0
      %626 = vmatpush.msra.mxu0 0.0
      %627 = vmatpush.msra.mxu0 0.0
      %628 = vmatpush.msra.mxu0 0.0
      %629 = vmatpush.msra.mxu0 0.0
      %630 = vmatpush.msra.mxu0 %v465
      %631 = vmatpush.msra.mxu0 %v464
      %632 = vmatmul.f32.gmra.mxu0 %v505
      %v633 = vpop.f32.mrf.mxu0
      %v634 = vadd.f32 0.0, %v633
      %635 = vmatmul.f32.gmra.mxu0 %v508
      %v636 = vpop.f32.mrf.mxu0
      %v637 = vadd.f32 0.0, %v636
      %638 = vdwg.mxu0
      %v639 = vadd.f32 %v448, %v464
      %v640 = vadd.f32 %v449, %v465
      %641 = vmatpush.msra.mxu0 0.0
      %642 = vmatpush.msra.mxu0 0.0
      %643 = vmatpush.msra.mxu0 0.0
      %644 = vmatpush.msra.mxu0 0.0
      %645 = vmatpush.msra.mxu0 0.0
      %646 = vmatpush.msra.mxu0 0.0
      %647 = vmatpush.msra.mxu0 0.0
      %648 = vmatpush.msra.mxu0 0.0
      %649 = vmatpush.msra.mxu0 0.0
      %650 = vmatpush.msra.mxu0 0.0
      %651 = vmatpush.msra.mxu0 0.0
      %652 = vmatpush.msra.mxu0 0.0
      %653 = vmatpush.msra.mxu0 0.0
      %654 = vmatpush.msra.mxu0 0.0
      %655 = vmatpush.msra.mxu0 %v640
      %656 = vmatpush.msra.mxu0 %v639
      %657 = vmatmul.f32.gmra.mxu0 %v538
      %v658 = vpop.f32.mrf.mxu0
      %v659 = vadd.f32 0.0, %v658
      %660 = vmatmul.f32.gmra.mxu0 %v541
      %v661 = vpop.f32.mrf.mxu0
      %v662 = vadd.f32 0.0, %v661
      %663 = vdwg.mxu0
      %v664 = vsub.f32 %v611, %v634
      %v665 = vsub.f32 %v614, %v637
      %v666 = vsub.f32 %v659, %v611
      %v667 = vsub.f32 %v662, %v614
      %v668 = vsub.f32 %v666, %v634
      %v669 = vsub.f32 %v667, %v637
      %v670 = vld [vmem:[%s212 + $0x10] sm:$0xff]
      %v671 = vld [vmem:[%s212 + $0x18] sm:$0xff]
      %v672 = vld [vmem:[%s574 + $0x10] sm:$0xff]
      %v673 = vld [vmem:[%s574 + $0x18] sm:$0xff]
      %v674 = vmul.f32 %v664, %v670
      %v675 = vmul.f32 %v665, %v671
      %v676 = vmul.f32 %v668, %v672
      %v677 = vmul.f32 %v669, %v673
      %v678 = vsub.f32 %v674, %v676
      %v679 = vsub.f32 %v675, %v677
      %v680 = vadd.f32 %v583, %v678
      %v681 = vadd.f32 %v584, %v679
      %v682 = vmul.f32 %v664, %v672
      %v683 = vmul.f32 %v665, %v673
      %v684 = vmul.f32 %v668, %v670
      %v685 = vmul.f32 %v669, %v671
      %v686 = vadd.f32 %v682, %v684
      %v687 = vadd.f32 %v683, %v685
      %v688 = vadd.f32 %v591, %v686
      %v689 = vadd.f32 %v592, %v687
      %690 = vmatpush.msra.mxu0 0.0
      %691 = vmatpush.msra.mxu0 0.0
      %692 = vmatpush.msra.mxu0 0.0
      %693 = vmatpush.msra.mxu0 0.0
      %694 = vmatpush.msra.mxu0 0.0
      %695 = vmatpush.msra.mxu0 0.0
      %696 = vmatpush.msra.mxu0 0.0
      %697 = vmatpush.msra.mxu0 0.0
      %698 = vmatpush.msra.mxu0 0.0
      %699 = vmatpush.msra.mxu0 0.0
      %700 = vmatpush.msra.mxu0 0.0
      %701 = vmatpush.msra.mxu0 0.0
      %702 = vmatpush.msra.mxu0 0.0
      %703 = vmatpush.msra.mxu0 0.0
      %704 = vmatpush.msra.mxu0 %v451
      %705 = vmatpush.msra.mxu0 %v450
      %706 = vmatmul.f32.gmra.mxu0 %v476
      %v707 = vpop.f32.mrf.mxu0
      %v708 = vadd.f32 0.0, %v707
      %709 = vmatmul.f32.gmra.mxu0 %v479
      %v710 = vpop.f32.mrf.mxu0
      %v711 = vadd.f32 0.0, %v710
      %712 = vdwg.mxu0
      %713 = vmatpush.msra.mxu0 0.0
      %714 = vmatpush.msra.mxu0 0.0
      %715 = vmatpush.msra.mxu0 0.0
      %716 = vmatpush.msra.mxu0 0.0
      %717 = vmatpush.msra.mxu0 0.0
      %718 = vmatpush.msra.mxu0 0.0
      %719 = vmatpush.msra.mxu0 0.0
      %720 = vmatpush.msra.mxu0 0.0
      %721 = vmatpush.msra.mxu0 0.0
      %722 = vmatpush.msra.mxu0 0.0
      %723 = vmatpush.msra.mxu0 0.0
      %724 = vmatpush.msra.mxu0 0.0
      %725 = vmatpush.msra.mxu0 0.0
      %726 = vmatpush.msra.mxu0 0.0
      %727 = vmatpush.msra.mxu0 %v467
      %728 = vmatpush.msra.mxu0 %v466
      %729 = vmatmul.f32.gmra.mxu0 %v505
      %v730 = vpop.f32.mrf.mxu0
      %v731 = vadd.f32 0.0, %v730
      %732 = vmatmul.f32.gmra.mxu0 %v508
      %v733 = vpop.f32.mrf.mxu0
      %v734 = vadd.f32 0.0, %v733
      %735 = vdwg.mxu0
      %v736 = vadd.f32 %v450, %v466
      %v737 = vadd.f32 %v451, %v467
      %738 = vmatpush.msra.mxu0 0.0
      %739 = vmatpush.msra.mxu0 0.0
      %740 = vmatpush.msra.mxu0 0.0
      %741 = vmatpush.msra.mxu0 0.0
      %742 = vmatpush.msra.mxu0 0.0
      %743 = vmatpush.msra.mxu0 0.0
      %744 = vmatpush.msra.mxu0 0.0
      %745 = vmatpush.msra.mxu0 0.0
      %746 = vmatpush.msra.mxu0 0.0
      %747 = vmatpush.msra.mxu0 0.0
      %748 = vmatpush.msra.mxu0 0.0
      %749 = vmatpush.msra.mxu0 0.0
      %750 = vmatpush.msra.mxu0 0.0
      %751 = vmatpush.msra.mxu0 0.0
      %752 = vmatpush.msra.mxu0 %v737
      %753 = vmatpush.msra.mxu0 %v736
      %754 = vmatmul.f32.gmra.mxu0 %v538
      %v755 = vpop.f32.mrf.mxu0
      %v756 = vadd.f32 0.0, %v755
      %757 = vmatmul.f32.gmra.mxu0 %v541
      %v758 = vpop.f32.mrf.mxu0
      %v759 = vadd.f32 0.0, %v758
      %760 = vdwg.mxu0
      %v761 = vsub.f32 %v708, %v731
      %v762 = vsub.f32 %v711, %v734
      %v763 = vsub.f32 %v756, %v708
      %v764 = vsub.f32 %v759, %v711
      %v765 = vsub.f32 %v763, %v731
      %v766 = vsub.f32 %v764, %v734
      %v767 = vld [vmem:[%s212 + $0x20] sm:$0xff]
      %v768 = vld [vmem:[%s212 + $0x28] sm:$0xff]
      %v769 = vld [vmem:[%s574 + $0x20] sm:$0xff]
      %v770 = vld [vmem:[%s574 + $0x28] sm:$0xff]
      %v771 = vmul.f32 %v761, %v767
      %v772 = vmul.f32 %v762, %v768
      %v773 = vmul.f32 %v765, %v769
      %v774 = vmul.f32 %v766, %v770
      %v775 = vsub.f32 %v771, %v773
      %v776 = vsub.f32 %v772, %v774
      %v777 = vadd.f32 %v680, %v775
      %v778 = vadd.f32 %v681, %v776
      %v779 = vmul.f32 %v761, %v769
      %v780 = vmul.f32 %v762, %v770
      %v781 = vmul.f32 %v765, %v767
      %v782 = vmul.f32 %v766, %v768
      %v783 = vadd.f32 %v779, %v781
      %v784 = vadd.f32 %v780, %v782
      %v785 = vadd.f32 %v688, %v783
      %v786 = vadd.f32 %v689, %v784
      %787 = vmatpush.msra.mxu0 0.0
      %788 = vmatpush.msra.mxu0 0.0
      %789 = vmatpush.msra.mxu0 0.0
      %790 = vmatpush.msra.mxu0 0.0
      %791 = vmatpush.msra.mxu0 0.0
      %792 = vmatpush.msra.mxu0 0.0
      %793 = vmatpush.msra.mxu0 0.0
      %794 = vmatpush.msra.mxu0 0.0
      %795 = vmatpush.msra.mxu0 0.0
      %796 = vmatpush.msra.mxu0 0.0
      %797 = vmatpush.msra.mxu0 0.0
      %798 = vmatpush.msra.mxu0 0.0
      %799 = vmatpush.msra.mxu0 0.0
      %800 = vmatpush.msra.mxu0 0.0
      %801 = vmatpush.msra.mxu0 %v453
      %802 = vmatpush.msra.mxu0 %v452
      %803 = vmatmul.f32.gmra.mxu0 %v476
      %v804 = vpop.f32.mrf.mxu0
      %v805 = vadd.f32 0.0, %v804
      %806 = vmatmul.f32.gmra.mxu0 %v479
      %v807 = vpop.f32.mrf.mxu0
      %v808 = vadd.f32 0.0, %v807
      %809 = vdwg.mxu0
      %810 = vmatpush.msra.mxu0 0.0
      %811 = vmatpush.msra.mxu0 0.0
      %812 = vmatpush.msra.mxu0 0.0
      %813 = vmatpush.msra.mxu0 0.0
      %814 = vmatpush.msra.mxu0 0.0
      %815 = vmatpush.msra.mxu0 0.0
      %816 = vmatpush.msra.mxu0 0.0
      %817 = vmatpush.msra.mxu0 0.0
      %818 = vmatpush.msra.mxu0 0.0
      %819 = vmatpush.msra.mxu0 0.0
      %820 = vmatpush.msra.mxu0 0.0
      %821 = vmatpush.msra.mxu0 0.0
      %822 = vmatpush.msra.mxu0 0.0
      %823 = vmatpush.msra.mxu0 0.0
      %824 = vmatpush.msra.mxu0 %v469
      %825 = vmatpush.msra.mxu0 %v468
      %826 = vmatmul.f32.gmra.mxu0 %v505
      %v827 = vpop.f32.mrf.mxu0
      %v828 = vadd.f32 0.0, %v827
      %829 = vmatmul.f32.gmra.mxu0 %v508
      %v830 = vpop.f32.mrf.mxu0
      %v831 = vadd.f32 0.0, %v830
      %832 = vdwg.mxu0
      %v833 = vadd.f32 %v452, %v468
      %v834 = vadd.f32 %v453, %v469
      %835 = vmatpush.msra.mxu0 0.0
      %836 = vmatpush.msra.mxu0 0.0
      %837 = vmatpush.msra.mxu0 0.0
      %838 = vmatpush.msra.mxu0 0.0
      %839 = vmatpush.msra.mxu0 0.0
      %840 = vmatpush.msra.mxu0 0.0
      %841 = vmatpush.msra.mxu0 0.0
      %842 = vmatpush.msra.mxu0 0.0
      %843 = vmatpush.msra.mxu0 0.0
      %844 = vmatpush.msra.mxu0 0.0
      %845 = vmatpush.msra.mxu0 0.0
      %846 = vmatpush.msra.mxu0 0.0
      %847 = vmatpush.msra.mxu0 0.0
      %848 = vmatpush.msra.mxu0 0.0
      %849 = vmatpush.msra.mxu0 %v834
      %850 = vmatpush.msra.mxu0 %v833
      %851 = vmatmul.f32.gmra.mxu0 %v538
      %v852 = vpop.f32.mrf.mxu0
      %v853 = vadd.f32 0.0, %v852
      %854 = vmatmul.f32.gmra.mxu0 %v541
      %v855 = vpop.f32.mrf.mxu0
      %v856 = vadd.f32 0.0, %v855
      %857 = vdwg.mxu0
      %v858 = vsub.f32 %v805, %v828
      %v859 = vsub.f32 %v808, %v831
      %v860 = vsub.f32 %v853, %v805
      %v861 = vsub.f32 %v856, %v808
      %v862 = vsub.f32 %v860, %v828
      %v863 = vsub.f32 %v861, %v831
      %v864 = vld [vmem:[%s212 + $0x30] sm:$0xff]
      %v865 = vld [vmem:[%s212 + $0x38] sm:$0xff]
      %v866 = vld [vmem:[%s574 + $0x30] sm:$0xff]
      %v867 = vld [vmem:[%s574 + $0x38] sm:$0xff]
      %v868 = vmul.f32 %v858, %v864
      %v869 = vmul.f32 %v859, %v865
      %v870 = vmul.f32 %v862, %v866
      %v871 = vmul.f32 %v863, %v867
      %v872 = vsub.f32 %v868, %v870
      %v873 = vsub.f32 %v869, %v871
      %v874 = vadd.f32 %v777, %v872
      %v875 = vadd.f32 %v778, %v873
      %v876 = vmul.f32 %v858, %v866
      %v877 = vmul.f32 %v859, %v867
      %v878 = vmul.f32 %v862, %v864
      %v879 = vmul.f32 %v863, %v865
      %v880 = vadd.f32 %v876, %v878
      %v881 = vadd.f32 %v877, %v879
      %v882 = vadd.f32 %v785, %v880
      %v883 = vadd.f32 %v786, %v881
      %884 = vst.msk [vmem:[%s217] sm:$0xff] %vm240, %v874
      %885 = vst.msk [vmem:[%s217 + $0x8] sm:$0xff] %vm240, %v875
      %s886 = scalar_lea.vmem %s217, 16
      %887 = vst.msk [vmem:[%s886] sm:$0xff] %vm240, %v882
      %888 = vst.msk [vmem:[%s886 + $0x8] sm:$0xff] %vm240, %v883
      %p889 = scmp.lt.s32.totalorder %s15, 1
      %s890 = scalar_select %p889, %s15, 1
      %s891 = smul.addr %s890, 4
      %s892 = smul.addr %s891, 8
      %s893 = scalar_lea.vmem %s4, %s892
      // Predicated region
      $region37: #{varnet_block.2} parent=35 // pred_check
        %p894 = pneg %p127
      $region38: #{varnet_block.2} parent=35 // pred_check_branch
        %896 = sbr.rel (%p894) target = $region40
      $region39: #{varnet_block.2} parent=35 // pred_region
        _
      $region40: #{varnet_block.2} parent=35 // pred_fallthru
        _
    $region36: #{varnet_block.2} parent=5 // pred_fallthru
      _
    %p897 = scmp.le.s32.totalorder 2, %s10
    // Predicated region
    $region41: #{varnet_block.2} parent=5 // pred_check
      %p898 = pneg %p897
    $region42: #{varnet_block.2} parent=5 // pred_check_branch
      %900 = sbr.rel (%p898) target = $region44
    $region43: #{varnet_block.2} parent=5 // pred_region
      %s901 = ssub.s32 %s10, 2
      // Predicated region
      $region45: #{varnet_block.2} parent=43 // pred_check
        %p902 = pneg %p133
      $region46: #{varnet_block.2} parent=43 // pred_check_branch
        %904 = sbr.rel (%p902) target = $region48
      $region47: #{varnet_block.2} parent=43 // pred_region
        %p905 = scmp.lt.s32.totalorder %s16, 1
        %s906 = scalar_select %p905, %s16, 1
        %s907 = smul.addr %s906, 4
        %s908 = smul.addr %s907, 8
        %s909 = scalar_lea.vmem %s4, %s908
      $region48: #{varnet_block.2} parent=43 // pred_fallthru
        _
    $region44: #{varnet_block.2} parent=5 // pred_fallthru
      _
  $region6: #{varnet_block.2} parent=0 // loop_footer
    %s14 = sadd.s32 1, %s10
  $region7: #{varnet_block.2} parent=0 // loop_footer_branch
    %9 = sbr.rel target = $region3
  $region8: #{varnet_block.2} parent=0 // loop_exit
    _

// kernel: varnet_block.3
$region0: #{varnet_block.3}
  #allocation0 [shape = 'u32[]', space=smem, size = 0x4, offset = 0x4, fixed_abs, tag = 'smem constant byte address 0x4 - core index']
  #allocation1 [shape = 'u32[72,128]{1,0:T(1,128)}', space=vmem, size = 0x9000, scoped, tag = 'internal scratch']
  #allocation2 [shape = 'f32[64,16]{1,0:T(8,128)}', space=vmem, size = 0x8000, scoped, tag = 'scratch operand']
  #allocation3 [shape = 'f32[64,16]{1,0:T(8,128)}', space=vmem, size = 0x8000, scoped, tag = 'scratch operand']
  %s0 = inlined_call_operand.vmem [shape: f32[2,32,16], index: 0, kind: input, shape index: {}]
  %s1 = inlined_call_operand.vmem [shape: f32[2,2,64,16], index: 1, kind: input, shape index: {}]
  %s2 = inlined_call_operand.vmem [shape: f32[3,128,32], index: 2, kind: input, shape index: {}]
  %s3 = inlined_call_operand.vmem [shape: f32[128,1], index: 3, kind: input, shape index: {}]
  %s4 = inlined_call_operand.vmem [shape: f32[3,32,128], index: 4, kind: input, shape index: {}]
  %s5 = inlined_call_operand.vmem [shape: f32[32,1], index: 5, kind: input, shape index: {}]
  %s6 = inlined_call_operand.vmem [shape: f32[3,16,16], index: 6, kind: input, shape index: {}]
  %s7 = inlined_call_operand.vmem [shape: f32[2,16,16], index: 7, kind: input, shape index: {}]
  %s8 = inlined_call_operand.vmem [shape: f32[2,16,16], index: 8, kind: input, shape index: {}]
  %s9 = inlined_call_operand.vmem [shape: f32[2,2,64,16], index: 9, kind: output, shape index: {}]
  %s10 = sld [smem:[#allocation0]]
  $region69: #{varnet_block.3} parent=0
    _
  %s12 = ssub.s32 1, %s10
  %s13 = scalar_select 0, %s12, %s10
  loop: start=0, step=1, limit=4
  $region2: #{varnet_block.3} parent=0 // loop_pre_header
    _
  $region3: #{varnet_block.3} parent=0 // loop_header
    %s15 = sphi 0, %s19
    %p16 = scmp.ge.s32.totalorder %s15, 4
    %s25 = sphi 0, %s27
    %s28 = sphi 0, %s25
    %s29 = sphi 0, %s28
    %s45 = sphi 0, %s29
    %s51 = sphi 0, %s53
    %s54 = sphi 0, %s51
    %s55 = sphi 0, %s54
    %s71 = sphi 0, %s55
    %s75 = sphi 0, %s75
    %s77 = sphi 0, %s75
    %s78 = sphi 0, %s77
    %s92 = sphi 0, %s78
    %s96 = sphi 0, %s96
    %s98 = sphi 0, %s96
    %s99 = sphi 0, %s98
    %s113 = sphi 0, %s99
    %s117 = sphi 0, %s117
    %s119 = sphi 0, %s117
    %s120 = sphi 0, %s119
    %s134 = sphi 0, %s120
    %s138 = sphi 0, %s138
    %s140 = sphi 0, %s138
    %s141 = sphi 0, %s140
    %s155 = sphi 0, %s141
    %s159 = sphi 0, %s159
    %s161 = sphi 0, %s159
    %s162 = sphi 0, %s161
    %s176 = sphi 0, %s162
    %s180 = sphi 0, %s180
    %s182 = sphi 0, %s180
    %s183 = sphi 0, %s182
    %s197 = sphi 0, %s183
    %s201 = sphi 0, %s201
    %s203 = sphi 0, %s201
    %s204 = sphi 0, %s203
    %s218 = sphi 0, %s204
    %s224 = sphi 0, %s226
    %s227 = sphi 0, %s224
    %s228 = sphi 0, %s227
    %s244 = sphi 0, %s228
  $region4: #{varnet_block.3} parent=0 // loop_header_branch
    %18 = sbr.rel (%p16) target = $region8
  $region5: #{varnet_block.3} parent=0 // loop_body
    %s20 = ssub.s32 %s15, 1
    %s21 = ssub.s32 %s15, 2
    %s22 = sadd.s32 %s15, 1
    %s23 = ssub.s32 %s15, %s22
    %p24 = scmp.eq.s32.totalorder %s23, 0
    %s26 = sadd.s32 %s25, 1
    %s27 = scalar_select %p24, %s25, %s26
    %p30 = pneg %p24
    %p31 = scmp.eq.s32.totalorder %s15, 1
    %p32 = por %p30, %p31
    %p33 = scmp.ne.s32.totalorder %s25, %s28
    %p34 = scmp.eq.s32.totalorder %s15, 0
    %p35 = por %p33, %p34
    %p36 = scmp.ne.s32.totalorder %s25, %s28
    %p37 = scmp.eq.s32.totalorder %s20, 1
    %p38 = por %p36, %p37
    %p39 = scmp.ne.s32.totalorder %s28, %s29
    %p40 = scmp.eq.s32.totalorder %s20, 0
    %p41 = por %p39, %p40
    %p42 = scmp.ne.s32.totalorder %s28, %s29
    %p43 = scmp.eq.s32.totalorder %s21, 1
    %p44 = por %p42, %p43
    %p46 = scmp.ne.s32.totalorder %s29, %s45
    %p47 = scmp.eq.s32.totalorder %s21, 0
    %p48 = por %p46, %p47
    %s49 = ssub.s32 %s15, %s22
    %p50 = scmp.eq.s32.totalorder %s49, 0
    %s52 = sadd.s32 %s51, 1
    %s53 = scalar_select %p50, %s51, %s52
    %p56 = pneg %p50
    %p57 = scmp.eq.s32.totalorder %s15, 1
    %p58 = por %p56, %p57
    %p59 = scmp.ne.s32.totalorder %s51, %s54
    %p60 = scmp.eq.s32.totalorder %s15, 0
    %p61 = por %p59, %p60
    %p62 = scmp.ne.s32.totalorder %s51, %s54
    %p63 = scmp.eq.s32.totalorder %s20, 1
    %p64 = por %p62, %p63
    %p65 = scmp.ne.s32.totalorder %s54, %s55
    %p66 = scmp.eq.s32.totalorder %s20, 0
    %p67 = por %p65, %p66
    %p68 = scmp.ne.s32.totalorder %s54, %s55
    %p69 = scmp.eq.s32.totalorder %s21, 1
    %p70 = por %p68, %p69
    %p72 = scmp.ne.s32.totalorder %s55, %s71
    %p73 = scmp.eq.s32.totalorder %s21, 0
    %p74 = por %p72, %p73
    %s76 = sadd.s32 %s75, 1
    %p79 = scmp.eq.s32.totalorder %s15, 1
    %p80 = scmp.ne.s32.totalorder %s75, %s77
    %p81 = scmp.eq.s32.totalorder %s15, 0
    %p82 = por %p80, %p81
    %p83 = scmp.ne.s32.totalorder %s75, %s77
    %p84 = scmp.eq.s32.totalorder %s20, 1
    %p85 = por %p83, %p84
    %p86 = scmp.ne.s32.totalorder %s77, %s78
    %p87 = scmp.eq.s32.totalorder %s20, 0
    %p88 = por %p86, %p87
    %p89 = scmp.ne.s32.totalorder %s77, %s78
    %p90 = scmp.eq.s32.totalorder %s21, 1
    %p91 = por %p89, %p90
    %p93 = scmp.ne.s32.totalorder %s78, %s92
    %p94 = scmp.eq.s32.totalorder %s21, 0
    %p95 = por %p93, %p94
    %s97 = sadd.s32 %s96, 1
    %p100 = scmp.eq.s32.totalorder %s15, 1
    %p101 = scmp.ne.s32.totalorder %s96, %s98
    %p102 = scmp.eq.s32.totalorder %s15, 0
    %p103 = por %p101, %p102
    %p104 = scmp.ne.s32.totalorder %s96, %s98
    %p105 = scmp.eq.s32.totalorder %s20, 1
    %p106 = por %p104, %p105
    %p107 = scmp.ne.s32.totalorder %s98, %s99
    %p108 = scmp.eq.s32.totalorder %s20, 0
    %p109 = por %p107, %p108
    %p110 = scmp.ne.s32.totalorder %s98, %s99
    %p111 = scmp.eq.s32.totalorder %s21, 1
    %p112 = por %p110, %p111
    %p114 = scmp.ne.s32.totalorder %s99, %s113
    %p115 = scmp.eq.s32.totalorder %s21, 0
    %p116 = por %p114, %p115
    %s118 = sadd.s32 %s117, 1
    %p121 = scmp.eq.s32.totalorder %s15, 1
    %p122 = scmp.ne.s32.totalorder %s117, %s119
    %p123 = scmp.eq.s32.totalorder %s15, 0
    %p124 = por %p122, %p123
    %p125 = scmp.ne.s32.totalorder %s117, %s119
    %p126 = scmp.eq.s32.totalorder %s20, 1
    %p127 = por %p125, %p126
    %p128 = scmp.ne.s32.totalorder %s119, %s120
    %p129 = scmp.eq.s32.totalorder %s20, 0
    %p130 = por %p128, %p129
    %p131 = scmp.ne.s32.totalorder %s119, %s120
    %p132 = scmp.eq.s32.totalorder %s21, 1
    %p133 = por %p131, %p132
    %p135 = scmp.ne.s32.totalorder %s120, %s134
    %p136 = scmp.eq.s32.totalorder %s21, 0
    %p137 = por %p135, %p136
    %s139 = sadd.s32 %s138, 1
    %p142 = scmp.eq.s32.totalorder %s15, 1
    %p143 = scmp.ne.s32.totalorder %s138, %s140
    %p144 = scmp.eq.s32.totalorder %s15, 0
    %p145 = por %p143, %p144
    %p146 = scmp.ne.s32.totalorder %s138, %s140
    %p147 = scmp.eq.s32.totalorder %s20, 1
    %p148 = por %p146, %p147
    %p149 = scmp.ne.s32.totalorder %s140, %s141
    %p150 = scmp.eq.s32.totalorder %s20, 0
    %p151 = por %p149, %p150
    %p152 = scmp.ne.s32.totalorder %s140, %s141
    %p153 = scmp.eq.s32.totalorder %s21, 1
    %p154 = por %p152, %p153
    %p156 = scmp.ne.s32.totalorder %s141, %s155
    %p157 = scmp.eq.s32.totalorder %s21, 0
    %p158 = por %p156, %p157
    %s160 = sadd.s32 %s159, 1
    %p163 = scmp.eq.s32.totalorder %s15, 1
    %p164 = scmp.ne.s32.totalorder %s159, %s161
    %p165 = scmp.eq.s32.totalorder %s15, 0
    %p166 = por %p164, %p165
    %p167 = scmp.ne.s32.totalorder %s159, %s161
    %p168 = scmp.eq.s32.totalorder %s20, 1
    %p169 = por %p167, %p168
    %p170 = scmp.ne.s32.totalorder %s161, %s162
    %p171 = scmp.eq.s32.totalorder %s20, 0
    %p172 = por %p170, %p171
    %p173 = scmp.ne.s32.totalorder %s161, %s162
    %p174 = scmp.eq.s32.totalorder %s21, 1
    %p175 = por %p173, %p174
    %p177 = scmp.ne.s32.totalorder %s162, %s176
    %p178 = scmp.eq.s32.totalorder %s21, 0
    %p179 = por %p177, %p178
    %s181 = sadd.s32 %s180, 1
    %p184 = scmp.eq.s32.totalorder %s15, 1
    %p185 = scmp.ne.s32.totalorder %s180, %s182
    %p186 = scmp.eq.s32.totalorder %s15, 0
    %p187 = por %p185, %p186
    %p188 = scmp.ne.s32.totalorder %s180, %s182
    %p189 = scmp.eq.s32.totalorder %s20, 1
    %p190 = por %p188, %p189
    %p191 = scmp.ne.s32.totalorder %s182, %s183
    %p192 = scmp.eq.s32.totalorder %s20, 0
    %p193 = por %p191, %p192
    %p194 = scmp.ne.s32.totalorder %s182, %s183
    %p195 = scmp.eq.s32.totalorder %s21, 1
    %p196 = por %p194, %p195
    %p198 = scmp.ne.s32.totalorder %s183, %s197
    %p199 = scmp.eq.s32.totalorder %s21, 0
    %p200 = por %p198, %p199
    %s202 = sadd.s32 %s201, 1
    %p205 = scmp.eq.s32.totalorder %s15, 1
    %p206 = scmp.ne.s32.totalorder %s201, %s203
    %p207 = scmp.eq.s32.totalorder %s15, 0
    %p208 = por %p206, %p207
    %p209 = scmp.ne.s32.totalorder %s201, %s203
    %p210 = scmp.eq.s32.totalorder %s20, 1
    %p211 = por %p209, %p210
    %p212 = scmp.ne.s32.totalorder %s203, %s204
    %p213 = scmp.eq.s32.totalorder %s20, 0
    %p214 = por %p212, %p213
    %p215 = scmp.ne.s32.totalorder %s203, %s204
    %p216 = scmp.eq.s32.totalorder %s21, 1
    %p217 = por %p215, %p216
    %p219 = scmp.ne.s32.totalorder %s204, %s218
    %p220 = scmp.eq.s32.totalorder %s21, 0
    %p221 = por %p219, %p220
    %s222 = ssub.s32 %s15, %s22
    %p223 = scmp.eq.s32.totalorder %s222, 0
    %s225 = sadd.s32 %s224, 1
    %s226 = scalar_select %p223, %s224, %s225
    %p229 = pneg %p223
    %p230 = scmp.eq.s32.totalorder %s15, 1
    %p231 = por %p229, %p230
    %p232 = scmp.ne.s32.totalorder %s224, %s227
    %p233 = scmp.eq.s32.totalorder %s15, 0
    %p234 = por %p232, %p233
    %p235 = scmp.ne.s32.totalorder %s224, %s227
    %p236 = scmp.eq.s32.totalorder %s20, 1
    %p237 = por %p235, %p236
    %p238 = scmp.ne.s32.totalorder %s227, %s228
    %p239 = scmp.eq.s32.totalorder %s20, 0
    %p240 = por %p238, %p239
    %p241 = scmp.ne.s32.totalorder %s227, %s228
    %p242 = scmp.eq.s32.totalorder %s21, 1
    %p243 = por %p241, %p242
    %p245 = scmp.ne.s32.totalorder %s228, %s244
    %p246 = scmp.eq.s32.totalorder %s21, 0
    %p247 = por %p245, %p246
    %p248 = scmp.le.s32.totalorder 1, %s15
    %p249 = scmp.lt.s32.totalorder %s15, 3
    %p250 = pnand %p248, %p249
    %p251 = pneg %p250
    // Predicated region
    $region9: #{varnet_block.3} parent=5 // pred_check
      _
    $region10: #{varnet_block.3} parent=5 // pred_check_branch
      %253 = sbr.rel (%p250) target = $region12
    $region11: #{varnet_block.3} parent=5 // pred_region
      %s254 = ssub.s32 %s15, 1
      // Predicated region
      $region13: #{varnet_block.3} parent=11 // pred_check
        %p255 = pneg %p88
      $region14: #{varnet_block.3} parent=11 // pred_check_branch
        %257 = sbr.rel (%p255) target = $region16
      $region15: #{varnet_block.3} parent=11 // pred_region
        _
      $region16: #{varnet_block.3} parent=11 // pred_fallthru
        _
      // Predicated region
      $region17: #{varnet_block.3} parent=11 // pred_check
        %p258 = pneg %p109
      $region18: #{varnet_block.3} parent=11 // pred_check_branch
        %260 = sbr.rel (%p258) target = $region20
      $region19: #{varnet_block.3} parent=11 // pred_region
        _
      $region20: #{varnet_block.3} parent=11 // pred_fallthru
        _
      // Predicated region
      $region21: #{varnet_block.3} parent=11 // pred_check
        %p261 = pneg %p130
      $region22: #{varnet_block.3} parent=11 // pred_check_branch
        %263 = sbr.rel (%p261) target = $region24
      $region23: #{varnet_block.3} parent=11 // pred_region
        _
      $region24: #{varnet_block.3} parent=11 // pred_fallthru
        _
      // Predicated region
      $region25: #{varnet_block.3} parent=11 // pred_check
        %p264 = pneg %p151
      $region26: #{varnet_block.3} parent=11 // pred_check_branch
        %266 = sbr.rel (%p264) target = $region28
      $region27: #{varnet_block.3} parent=11 // pred_region
        _
      $region28: #{varnet_block.3} parent=11 // pred_fallthru
        _
      // Predicated region
      $region29: #{varnet_block.3} parent=11 // pred_check
        %p267 = pneg %p172
      $region30: #{varnet_block.3} parent=11 // pred_check_branch
        %269 = sbr.rel (%p267) target = $region32
      $region31: #{varnet_block.3} parent=11 // pred_region
        _
      $region32: #{varnet_block.3} parent=11 // pred_fallthru
        _
      // Predicated region
      $region33: #{varnet_block.3} parent=11 // pred_check
        %p270 = pneg %p193
      $region34: #{varnet_block.3} parent=11 // pred_check_branch
        %272 = sbr.rel (%p270) target = $region36
      $region35: #{varnet_block.3} parent=11 // pred_region
        _
      $region36: #{varnet_block.3} parent=11 // pred_fallthru
        _
      // Predicated region
      $region37: #{varnet_block.3} parent=11 // pred_check
        %p273 = pneg %p214
      $region38: #{varnet_block.3} parent=11 // pred_check_branch
        %275 = sbr.rel (%p273) target = $region40
      $region39: #{varnet_block.3} parent=11 // pred_region
        _
      $region40: #{varnet_block.3} parent=11 // pred_fallthru
        _
    $region12: #{varnet_block.3} parent=5 // pred_fallthru
      _
    %p276 = scmp.lt.s32.totalorder %s15, 2
    // Predicated region
    $region41: #{varnet_block.3} parent=5 // pred_check
      %p277 = pneg %p276
    $region42: #{varnet_block.3} parent=5 // pred_check_branch
      %279 = sbr.rel (%p277) target = $region44
    $region43: #{varnet_block.3} parent=5 // pred_region
      // Predicated region
      $region45: #{varnet_block.3} parent=43 // pred_check
        %p280 = pneg %p35
      $region46: #{varnet_block.3} parent=43 // pred_check_branch
        %282 = sbr.rel (%p280) target = $region48
      $region47: #{varnet_block.3} parent=43 // pred_region
        %p283 = scmp.lt.s32.totalorder %s15, 1
        %s284 = scalar_select %p283, %s15, 1
        %s285 = smul.addr %s284, 4
        %s286 = smul.addr %s285, 8
        %s287 = scalar_lea.vmem %s0, %s286
      $region48: #{varnet_block.3} parent=43 // pred_fallthru
        _
      // Predicated region
      $region49: #{varnet_block.3} parent=43 // pred_check
        %p288 = pneg %p61
      $region50: #{varnet_block.3} parent=43 // pred_check_branch
        %290 = sbr.rel (%p288) target = $region52
      $region51: #{varnet_block.3} parent=43 // pred_region
        %p291 = scmp.lt.s32.totalorder %s15, 1
        %s292 = scalar_select %p291, %s15, 1
        %s293 = smul.addr %s292, 16
        %s294 = smul.addr %s293, 8
        %s295 = scalar_lea.vmem %s1, %s294
      $region52: #{varnet_block.3} parent=43 // pred_fallthru
        _
    $region44: #{varnet_block.3} parent=5 // pred_fallthru
      _
    %p296 = scmp.le.s32.totalorder 1, %s15
    %p297 = scmp.lt.s32.totalorder %s15, 3
    %p298 = pnand %p296, %p297
    %p299 = pneg %p298
    // Predicated region
    $region53: #{varnet_block.3} parent=5 // pred_check
      _
    $region54: #{varnet_block.3} parent=5 // pred_check_branch
      %301 = sbr.rel (%p298) target = $region56
    $region55: #{varnet_block.3} parent=5 // pred_region
      %s302 = ssub.s32 %s15, 1
      %p303 = scmp.lt.s32.totalorder %s20, 1
      %s304 = scalar_select %p303, %s20, 1
      %s305 = smul.addr %s304, 4
      %s306 = smul.addr %s305, 8
      %s307 = scalar_lea.vmem %s0, %s306
      %p308 = pneg %p41
      %p309 = pneg %p38
      %p310 = scmp.lt.s32.totalorder %s20, 1
      %s311 = scalar_select %p310, %s20, 1
      %s312 = smul.addr %s311, 16
      %s313 = smul.addr %s312, 8
      %s314 = scalar_lea.vmem %s1, %s313
      %p315 = pneg %p67
      %p316 = pneg %p64
      %p317 = pneg %p88
      %p318 = pneg %p85
      %p319 = pneg %p109
      %p320 = pneg %p106
      %p321 = pneg %p130
      %p322 = pneg %p127
      %p323 = pneg %p151
      %p324 = pneg %p148
      %p325 = pneg %p172
      %p326 = pneg %p169
      %p327 = pneg %p193
      %p328 = pneg %p190
      %p329 = pneg %p214
      %p330 = pneg %p211
      %p331 = pneg %p240
      %p332 = pneg %p237
      %p333 = scmp.lt.s32.totalorder %s20, 1
      %s334 = scalar_select %p333, %s20, 1
      %s335 = smul.addr %s334, 16
      %s336 = smul.addr %s335, 8
      %s337 = scalar_lea.vmem %s9, %s336
      %p338 = scmp.lt.s32.totalorder %s20, 1
      %s339 = scalar_select %p338, %s20, 1
      %s340 = smul.addr %s339, 4
      %s341 = smul.addr %s340, 8
      %s342 = scalar_lea.vmem %s0, %s341
      %p343 = scmp.lt.s32.totalorder %s20, 1
      %s344 = scalar_select %p343, %s20, 1
      %s345 = smul.addr %s344, 16
      %s346 = smul.addr %s345, 8
      %s347 = scalar_lea.vmem %s1, %s346
      %p348 = scmp.lt.s32.totalorder %s20, 1
      %s349 = scalar_select %p348, %s20, 1
      %s350 = smul.addr %s349, 16
      %s351 = smul.addr %s350, 8
      %s352 = scalar_lea.vmem %s9, %s351
      %v353 = vld [vmem:[%s342] sm:$0xff]
      %v354 = vld [vmem:[%s342 + $0x8] sm:$0xff]
      %v355 = vld [vmem:[%s342 + $0x10] sm:$0xff]
      %v356 = vld [vmem:[%s342 + $0x18] sm:$0xff]
      %v357 = vld [vmem:[%s6] sm:$0xff]
      %v358 = vld [vmem:[%s6 + $0x8] sm:$0xff]
      %vm359 = vcmask 130048
      %v361 = vsel %vm359, %v353, 0
      %v364 = vsel %vm359, %v354, 0
      %v367 = vsel %vm359, %v355, 0
      %v370 = vsel %vm359, %v356, 0
      %372 = vmatpush.msra.mxu0 0.0
      %373 = vmatpush.msra.mxu0 0.0
      %374 = vmatpush.msra.mxu0 0.0
      %375 = vmatpush.msra.mxu0 0.0
      %376 = vmatpush.msra.mxu0 0.0
      %377 = vmatpush.msra.mxu0 0.0
      %378 = vmatpush.msra.mxu0 0.0
      %379 = vmatpush.msra.mxu0 0.0
      %380 = vmatpush.msra.mxu0 0.0
      %381 = vmatpush.msra.mxu0 0.0
      %382 = vmatpush.msra.mxu0 0.0
      %383 = vmatpush.msra.mxu0 0.0
      %384 = vmatpush.msra.mxu0 0.0
      %385 = vmatpush.msra.mxu0 0.0
      %386 = vmatpush.msra.mxu0 %v358
      %387 = vmatpush.msra.mxu0 %v357
      %388 = vmatmul.f32.gmra.mxu0 %v361
      %v389 = vpop.f32.mrf.mxu0
      %v390 = vadd.f32 0.0, %v389
      %391 = vmatmul.f32.gmra.mxu0 %v364
      %v392 = vpop.f32.mrf.mxu0
      %v393 = vadd.f32 0.0, %v392
      %394 = vmatmul.f32.gmra.mxu0 %v367
      %v395 = vpop.f32.mrf.mxu0
      %v396 = vadd.f32 0.0, %v395
      %397 = vmatmul.f32.gmra.mxu0 %v370
      %v398 = vpop.f32.mrf.mxu0
      %v399 = vadd.f32 0.0, %v398
      %400 = vdwg.mxu0
      %v401 = vld [vmem:[%s2] sm:$0xff]
      %v402 = vld [vmem:[%s2 + $0x8] sm:$0xff]
      %v403 = vld [vmem:[%s2 + $0x10] sm:$0xff]
      %v404 = vld [vmem:[%s2 + $0x18] sm:$0xff]
      %v405 = vld [vmem:[%s2 + $0x20] sm:$0xff]
      %v406 = vld [vmem:[%s2 + $0x28] sm:$0xff]
      %v407 = vld [vmem:[%s2 + $0x30] sm:$0xff]
      %v408 = vld [vmem:[%s2 + $0x38] sm:$0xff]
      %v409 = vld [vmem:[%s2 + $0x40] sm:$0xff]
      %v410 = vld [vmem:[%s2 + $0x48] sm:$0xff]
      %v411 = vld [vmem:[%s2 + $0x50] sm:$0xff]
      %v412 = vld [vmem:[%s2 + $0x58] sm:$0xff]
      %v413 = vld [vmem:[%s2 + $0x60] sm:$0xff]
      %v414 = vld [vmem:[%s2 + $0x68] sm:$0xff]
      %v415 = vld [vmem:[%s2 + $0x70] sm:$0xff]
      %v416 = vld [vmem:[%s2 + $0x78] sm:$0xff]
      %s417 = scalar_lea.vmem %s6, 16
      %v418 = vld [vmem:[%s417] sm:$0xff]
      %v419 = vld [vmem:[%s417 + $0x8] sm:$0xff]
      %420 = vmatpush.msra.mxu0 0.0
      %421 = vmatpush.msra.mxu0 0.0
      %422 = vmatpush.msra.mxu0 0.0
      %423 = vmatpush.msra.mxu0 0.0
      %424 = vmatpush.msra.mxu0 0.0
      %425 = vmatpush.msra.mxu0 0.0
      %426 = vmatpush.msra.mxu0 0.0
      %427 = vmatpush.msra.mxu0 0.0
      %428 = vmatpush.msra.mxu0 0.0
      %429 = vmatpush.msra.mxu0 0.0
      %430 = vmatpush.msra.mxu0 0.0
      %431 = vmatpush.msra.mxu0 0.0
      %432 = vmatpush.msra.mxu0 0.0
      %433 = vmatpush.msra.mxu0 0.0
      %434 = vmatpush.msra.mxu0 %v419
      %435 = vmatpush.msra.mxu0 %v418
      %436 = vmatmul.f32.gmra.mxu0 %v361
      %v437 = vpop.f32.mrf.mxu0
      %v438 = vadd.f32 0.0, %v437
      %439 = vmatmul.f32.gmra.mxu0 %v364
      %v440 = vpop.f32.mrf.mxu0
      %v441 = vadd.f32 0.0, %v440
      %442 = vmatmul.f32.gmra.mxu0 %v367
      %v443 = vpop.f32.mrf.mxu0
      %v444 = vadd.f32 0.0, %v443
      %445 = vmatmul.f32.gmra.mxu0 %v370
      %v446 = vpop.f32.mrf.mxu0
      %v447 = vadd.f32 0.0, %v446
      %448 = vdwg.mxu0
      %s449 = scalar_lea.vmem %s2, 128
      %v450 = vld [vmem:[%s449] sm:$0xff]
      %v451 = vld [vmem:[%s449 + $0x8] sm:$0xff]
      %v452 = vld [vmem:[%s449 + $0x10] sm:$0xff]
      %v453 = vld [vmem:[%s449 + $0x18] sm:$0xff]
      %v454 = vld [vmem:[%s449 + $0x20] sm:$0xff]
      %v455 = vld [vmem:[%s449 + $0x28] sm:$0xff]
      %v456 = vld [vmem:[%s449 + $0x30] sm:$0xff]
      %v457 = vld [vmem:[%s449 + $0x38] sm:$0xff]
      %v458 = vld [vmem:[%s449 + $0x40] sm:$0xff]
      %v459 = vld [vmem:[%s449 + $0x48] sm:$0xff]
      %v460 = vld [vmem:[%s449 + $0x50] sm:$0xff]
      %v461 = vld [vmem:[%s449 + $0x58] sm:$0xff]
      %v462 = vld [vmem:[%s449 + $0x60] sm:$0xff]
      %v463 = vld [vmem:[%s449 + $0x68] sm:$0xff]
      %v464 = vld [vmem:[%s449 + $0x70] sm:$0xff]
      %v465 = vld [vmem:[%s449 + $0x78] sm:$0xff]
      %vm466 = vcmask 261120
      %v468 = vsel %vm466, %v450, 0
      %v471 = vsel %vm466, %v451, 0
      %v474 = vsel %vm466, %v452, 0
      %v477 = vsel %vm466, %v453, 0
      %v480 = vsel %vm466, %v454, 0
      %v483 = vsel %vm466, %v455, 0
      %v486 = vsel %vm466, %v456, 0
      %v489 = vsel %vm466, %v457, 0
      %v492 = vsel %vm466, %v458, 0
      %v495 = vsel %vm466, %v459, 0
      %v498 = vsel %vm466, %v460, 0
      %v501 = vsel %vm466, %v461, 0
      %v504 = vsel %vm466, %v462, 0
      %v507 = vsel %vm466, %v463, 0
      %v510 = vsel %vm466, %v464, 0
      %v513 = vsel %vm466, %v465, 0
      %515 = vmatpush.msra.mxu0 0.0
      %516 = vmatpush.msra.mxu0 0.0
      %517 = vmatpush.msra.mxu0 0.0
      %518 = vmatpush.msra.mxu0 0.0
      %519 = vmatpush.msra.mxu0 0.0
      %520 = vmatpush.msra.mxu0 0.0
      %521 = vmatpush.msra.mxu0 0.0
      %522 = vmatpush.msra.mxu0 0.0
      %523 = vmatpush.msra.mxu0 0.0
      %524 = vmatpush.msra.mxu0 0.0
      %525 = vmatpush.msra.mxu0 0.0
      %526 = vmatpush.msra.mxu0 0.0
      %527 = vmatpush.msra.mxu0 %v447
      %528 = vmatpush.msra.mxu0 %v444
      %529 = vmatpush.msra.mxu0 %v441
      %530 = vmatpush.msra.mxu0 %v438
      %531 = vmatmul.f32.gmra.mxu0 %v468
      %v532 = vpop.f32.mrf.mxu0
      %v533 = vadd.f32 0.0, %v532
      %534 = vmatmul.f32.gmra.mxu0 %v471
      %v535 = vpop.f32.mrf.mxu0
      %v536 = vadd.f32 0.0, %v535
      %537 = vmatmul.f32.gmra.mxu0 %v474
      %v538 = vpop.f32.mrf.mxu0
      %v539 = vadd.f32 0.0, %v538
      %540 = vmatmul.f32.gmra.mxu0 %v477
      %v541 = vpop.f32.mrf.mxu0
      %v542 = vadd.f32 0.0, %v541
      %543 = vmatmul.f32.gmra.mxu0 %v480
      %v544 = vpop.f32.mrf.mxu0
      %v545 = vadd.f32 0.0, %v544
      %546 = vmatmul.f32.gmra.mxu0 %v483
      %v547 = vpop.f32.mrf.mxu0
      %v548 = vadd.f32 0.0, %v547
      %549 = vmatmul.f32.gmra.mxu0 %v486
      %v550 = vpop.f32.mrf.mxu0
      %v551 = vadd.f32 0.0, %v550
      %552 = vmatmul.f32.gmra.mxu0 %v489
      %v553 = vpop.f32.mrf.mxu0
      %v554 = vadd.f32 0.0, %v553
      %555 = vmatmul.f32.gmra.mxu0 %v492
      %v556 = vpop.f32.mrf.mxu0
      %v557 = vadd.f32 0.0, %v556
      %558 = vmatmul.f32.gmra.mxu0 %v495
      %v559 = vpop.f32.mrf.mxu0
      %v560 = vadd.f32 0.0, %v559
      %561 = vmatmul.f32.gmra.mxu0 %v498
      %v562 = vpop.f32.mrf.mxu0
      %v563 = vadd.f32 0.0, %v562
      %564 = vmatmul.f32.gmra.mxu0 %v501
      %v565 = vpop.f32.mrf.mxu0
      %v566 = vadd.f32 0.0, %v565
      %567 = vmatmul.f32.gmra.mxu0 %v504
      %v568 = vpop.f32.mrf.mxu0
      %v569 = vadd.f32 0.0, %v568
      %570 = vmatmul.f32.gmra.mxu0 %v507
      %v571 = vpop.f32.mrf.mxu0
      %v572 = vadd.f32 0.0, %v571
      %573 = vmatmul.f32.gmra.mxu0 %v510
      %v574 = vpop.f32.mrf.mxu0
      %v575 = vadd.f32 0.0, %v574
      %576 = vmatmul.f32.gmra.mxu0 %v513
      %v577 = vpop.f32.mrf.mxu0
      %v578 = vadd.f32 0.0, %v577
      %579 = vdwg.mxu0
      %v581 = vsel %vm466, %v401, 0
      %v584 = vsel %vm466, %v402, 0
      %v587 = vsel %vm466, %v403, 0
      %v590 = vsel %vm466, %v404, 0
      %v593 = vsel %vm466, %v405, 0
      %v596 = vsel %vm466, %v406, 0
      %v599 = vsel %vm466, %v407, 0
      %v602 = vsel %vm466, %v408, 0
      %v605 = vsel %vm466, %v409, 0
      %v608 = vsel %vm466, %v410, 0
      %v611 = vsel %vm466, %v411, 0
      %v614 = vsel %vm466, %v412, 0
      %v617 = vsel %vm466, %v413, 0
      %v620 = vsel %vm466, %v414, 0
      %v623 = vsel %vm466, %v415, 0
      %v626 = vsel %vm466, %v416, 0
      %628 = vmatpush.msra.mxu0 0.0
      %629 = vmatpush.msra.mxu0 0.0
      %630 = vmatpush.msra.mxu0 0.0
      %631 = vmatpush.msra.mxu0 0.0
      %632 = vmatpush.msra.mxu0 0.0
      %633 = vmatpush.msra.mxu0 0.0
      %634 = vmatpush.msra.mxu0 0.0
      %635 = vmatpush.msra.mxu0 0.0
      %636 = vmatpush.msra.mxu0 0.0
      %637 = vmatpush.msra.mxu0 0.0
      %638 = vmatpush.msra.mxu0 0.0
      %639 = vmatpush.msra.mxu0 0.0
      %640 = vmatpush.msra.mxu0 %v399
      %641 = vmatpush.msra.mxu0 %v396
      %642 = vmatpush.msra.mxu0 %v393
      %643 = vmatpush.msra.mxu0 %v390
      %644 = vmatmul.f32.gmra.mxu0 %v581
      %v645 = vpop.f32.mrf.mxu0
      %v646 = vadd.f32 %v533, %v645
      %647 = vmatmul.f32.gmra.mxu0 %v584
      %v648 = vpop.f32.mrf.mxu0
      %v649 = vadd.f32 %v536, %v648
      %650 = vmatmul.f32.gmra.mxu0 %v587
      %v651 = vpop.f32.mrf.mxu0
      %v652 = vadd.f32 %v539, %v651
      %653 = vmatmul.f32.gmra.mxu0 %v590
      %v654 = vpop.f32.mrf.mxu0
      %v655 = vadd.f32 %v542, %v654
      %656 = vmatmul.f32.gmra.mxu0 %v593
      %v657 = vpop.f32.mrf.mxu0
      %v658 = vadd.f32 %v545, %v657
      %659 = vmatmul.f32.gmra.mxu0 %v596
      %v660 = vpop.f32.mrf.mxu0
      %v661 = vadd.f32 %v548, %v660
      %662 = vmatmul.f32.gmra.mxu0 %v599
      %v663 = vpop.f32.mrf.mxu0
      %v664 = vadd.f32 %v551, %v663
      %665 = vmatmul.f32.gmra.mxu0 %v602
      %v666 = vpop.f32.mrf.mxu0
      %v667 = vadd.f32 %v554, %v666
      %668 = vmatmul.f32.gmra.mxu0 %v605
      %v669 = vpop.f32.mrf.mxu0
      %v670 = vadd.f32 %v557, %v669
      %671 = vmatmul.f32.gmra.mxu0 %v608
      %v672 = vpop.f32.mrf.mxu0
      %v673 = vadd.f32 %v560, %v672
      %674 = vmatmul.f32.gmra.mxu0 %v611
      %v675 = vpop.f32.mrf.mxu0
      %v676 = vadd.f32 %v563, %v675
      %677 = vmatmul.f32.gmra.mxu0 %v614
      %v678 = vpop.f32.mrf.mxu0
      %v679 = vadd.f32 %v566, %v678
      %680 = vmatmul.f32.gmra.mxu0 %v617
      %v681 = vpop.f32.mrf.mxu0
      %v682 = vadd.f32 %v569, %v681
      %683 = vmatmul.f32.gmra.mxu0 %v620
      %v684 = vpop.f32.mrf.mxu0
      %v685 = vadd.f32 %v572, %v684
      %686 = vmatmul.f32.gmra.mxu0 %v623
      %v687 = vpop.f32.mrf.mxu0
      %v688 = vadd.f32 %v575, %v687
      %689 = vmatmul.f32.gmra.mxu0 %v626
      %v690 = vpop.f32.mrf.mxu0
      %v691 = vadd.f32 %v578, %v690
      %692 = vdwg.mxu0
      %s693 = scalar_lea.vmem %s6, 32
      %v694 = vld [vmem:[%s693] sm:$0xff]
      %v695 = vld [vmem:[%s693 + $0x8] sm:$0xff]
      %696 = vmatpush.msra.mxu0 0.0
      %697 = vmatpush.msra.mxu0 0.0
      %698 = vmatpush.msra.mxu0 0.0
      %699 = vmatpush.msra.mxu0 0.0
      %700 = vmatpush.msra.mxu0 0.0
      %701 = vmatpush.msra.mxu0 0.0
      %702 = vmatpush.msra.mxu0 0.0
      %703 = vmatpush.msra.mxu0 0.0
      %704 = vmatpush.msra.mxu0 0.0
      %705 = vmatpush.msra.mxu0 0.0
      %706 = vmatpush.msra.mxu0 0.0
      %707 = vmatpush.msra.mxu0 0.0
      %708 = vmatpush.msra.mxu0 0.0
      %709 = vmatpush.msra.mxu0 0.0
      %710 = vmatpush.msra.mxu0 %v695
      %711 = vmatpush.msra.mxu0 %v694
      %712 = vmatmul.f32.gmra.mxu0 %v361
      %v713 = vpop.f32.mrf.mxu0
      %v714 = vadd.f32 0.0, %v713
      %715 = vmatmul.f32.gmra.mxu0 %v364
      %v716 = vpop.f32.mrf.mxu0
      %v717 = vadd.f32 0.0, %v716
      %718 = vmatmul.f32.gmra.mxu0 %v367
      %v719 = vpop.f32.mrf.mxu0
      %v720 = vadd.f32 0.0, %v719
      %721 = vmatmul.f32.gmra.mxu0 %v370
      %v722 = vpop.f32.mrf.mxu0
      %v723 = vadd.f32 0.0, %v722
      %724 = vdwg.mxu0
      %s725 = scalar_lea.vmem %s2, 256
      %v726 = vld [vmem:[%s725] sm:$0xff]
      %v727 = vld [vmem:[%s725 + $0x8] sm:$0xff]
      %v728 = vld [vmem:[%s725 + $0x10] sm:$0xff]
      %v729 = vld [vmem:[%s725 + $0x18] sm:$0xff]
      %v730 = vld [vmem:[%s725 + $0x20] sm:$0xff]
      %v731 = vld [vmem:[%s725 + $0x28] sm:$0xff]
      %v732 = vld [vmem:[%s725 + $0x30] sm:$0xff]
      %v733 = vld [vmem:[%s725 + $0x38] sm:$0xff]
      %v734 = vld [vmem:[%s725 + $0x40] sm:$0xff]
      %v735 = vld [vmem:[%s725 + $0x48] sm:$0xff]
      %v736 = vld [vmem:[%s725 + $0x50] sm:$0xff]
      %v737 = vld [vmem:[%s725 + $0x58] sm:$0xff]
      %v738 = vld [vmem:[%s725 + $0x60] sm:$0xff]
      %v739 = vld [vmem:[%s725 + $0x68] sm:$0xff]
      %v740 = vld [vmem:[%s725 + $0x70] sm:$0xff]
      %v741 = vld [vmem:[%s725 + $0x78] sm:$0xff]
      %v743 = vsel %vm466, %v726, 0
      %v746 = vsel %vm466, %v727, 0
      %v749 = vsel %vm466, %v728, 0
      %v752 = vsel %vm466, %v729, 0
      %v755 = vsel %vm466, %v730, 0
      %v758 = vsel %vm466, %v731, 0
      %v761 = vsel %vm466, %v732, 0
      %v764 = vsel %vm466, %v733, 0
      %v767 = vsel %vm466, %v734, 0
      %v770 = vsel %vm466, %v735, 0
      %v773 = vsel %vm466, %v736, 0
      %v776 = vsel %vm466, %v737, 0
      %v779 = vsel %vm466, %v738, 0
      %v782 = vsel %vm466, %v739, 0
      %v785 = vsel %vm466, %v740, 0
      %v788 = vsel %vm466, %v741, 0
      %790 = vmatpush.msra.mxu0 0.0
      %791 = vmatpush.msra.mxu0 0.0
      %792 = vmatpush.msra.mxu0 0.0
      %793 = vmatpush.msra.mxu0 0.0
      %794 = vmatpush.msra.mxu0 0.0
      %795 = vmatpush.msra.mxu0 0.0
      %796 = vmatpush.msra.mxu0 0.0
      %797 = vmatpush.msra.mxu0 0.0
      %798 = vmatpush.msra.mxu0 0.0
      %799 = vmatpush.msra.mxu0 0.0
      %800 = vmatpush.msra.mxu0 0.0
      %801 = vmatpush.msra.mxu0 0.0
      %802 = vmatpush.msra.mxu0 %v723
      %803 = vmatpush.msra.mxu0 %v720
      %804 = vmatpush.msra.mxu0 %v717
      %805 = vmatpush.msra.mxu0 %v714
      %806 = vmatmul.f32.gmra.mxu0 %v743
      %v807 = vpop.f32.mrf.mxu0
      %v808 = vadd.f32 0.0, %v807
      %809 = vmatmul.f32.gmra.mxu0 %v746
      %v810 = vpop.f32.mrf.mxu0
      %v811 = vadd.f32 0.0, %v810
      %812 = vmatmul.f32.gmra.mxu0 %v749
      %v813 = vpop.f32.mrf.mxu0
      %v814 = vadd.f32 0.0, %v813
      %815 = vmatmul.f32.gmra.mxu0 %v752
      %v816 = vpop.f32.mrf.mxu0
      %v817 = vadd.f32 0.0, %v816
      %818 = vmatmul.f32.gmra.mxu0 %v755
      %v819 = vpop.f32.mrf.mxu0
      %v820 = vadd.f32 0.0, %v819
      %821 = vmatmul.f32.gmra.mxu0 %v758
      %v822 = vpop.f32.mrf.mxu0
      %v823 = vadd.f32 0.0, %v822
      %824 = vmatmul.f32.gmra.mxu0 %v761
      %v825 = vpop.f32.mrf.mxu0
      %v826 = vadd.f32 0.0, %v825
      %827 = vmatmul.f32.gmra.mxu0 %v764
      %v828 = vpop.f32.mrf.mxu0
      %v829 = vadd.f32 0.0, %v828
      %830 = vmatmul.f32.gmra.mxu0 %v767
      %v831 = vpop.f32.mrf.mxu0
      %v832 = vadd.f32 0.0, %v831
      %833 = vmatmul.f32.gmra.mxu0 %v770
      %v834 = vpop.f32.mrf.mxu0
      %v835 = vadd.f32 0.0, %v834
      %836 = vmatmul.f32.gmra.mxu0 %v773
      %v837 = vpop.f32.mrf.mxu0
      %v838 = vadd.f32 0.0, %v837
      %839 = vmatmul.f32.gmra.mxu0 %v776
      %v840 = vpop.f32.mrf.mxu0
      %v841 = vadd.f32 0.0, %v840
      %842 = vmatmul.f32.gmra.mxu0 %v779
      %v843 = vpop.f32.mrf.mxu0
      %v844 = vadd.f32 0.0, %v843
      %845 = vmatmul.f32.gmra.mxu0 %v782
      %v846 = vpop.f32.mrf.mxu0
      %v847 = vadd.f32 0.0, %v846
      %848 = vmatmul.f32.gmra.mxu0 %v785
      %v849 = vpop.f32.mrf.mxu0
      %v850 = vadd.f32 0.0, %v849
      %851 = vmatmul.f32.gmra.mxu0 %v788
      %v852 = vpop.f32.mrf.mxu0
      %v853 = vadd.f32 0.0, %v852
      %854 = vdwg.mxu0
      %v855 = vadd.f32 %v646, %v808
      %v856 = vadd.f32 %v649, %v811
      %v857 = vadd.f32 %v652, %v814
      %v858 = vadd.f32 %v655, %v817
      %v859 = vadd.f32 %v658, %v820
      %v860 = vadd.f32 %v661, %v823
      %v861 = vadd.f32 %v664, %v826
      %v862 = vadd.f32 %v667, %v829
      %v863 = vadd.f32 %v670, %v832
      %v864 = vadd.f32 %v673, %v835
      %v865 = vadd.f32 %v676, %v838
      %v866 = vadd.f32 %v679, %v841
      %v867 = vadd.f32 %v682, %v844
      %v868 = vadd.f32 %v685, %v847
      %v869 = vadd.f32 %v688, %v850
      %v870 = vadd.f32 %v691, %v853
      %v871 = vld [vmem:[%s3] sm:$0xff]
      %v872 = vld [vmem:[%s3 + $0x8] sm:$0xff]
      %v873 = vld [vmem:[%s3 + $0x10] sm:$0xff]
      %v874 = vld [vmem:[%s3 + $0x18] sm:$0xff]
      %v875 = vld [vmem:[%s3 + $0x20] sm:$0xff]
      %v876 = vld [vmem:[%s3 + $0x28] sm:$0xff]
      %v877 = vld [vmem:[%s3 + $0x30] sm:$0xff]
      %v878 = vld [vmem:[%s3 + $0x38] sm:$0xff]
      %v879 = vld [vmem:[%s3 + $0x40] sm:$0xff]
      %v880 = vld [vmem:[%s3 + $0x48] sm:$0xff]
      %v881 = vld [vmem:[%s3 + $0x50] sm:$0xff]
      %v882 = vld [vmem:[%s3 + $0x58] sm:$0xff]
      %v883 = vld [vmem:[%s3 + $0x60] sm:$0xff]
      %v884 = vld [vmem:[%s3 + $0x68] sm:$0xff]
      %v885 = vld [vmem:[%s3 + $0x70] sm:$0xff]
      %v886 = vld [vmem:[%s3 + $0x78] sm:$0xff]
      %888 = vset.pattern.permute.xlu0 0
      %889 = vperm.xlu0 %888, %v871
      %v890 = vpop.permute.xlu0 %889
      %893 = vset.pattern.permute.xlu0 0
      %894 = vperm.xlu0 %893, %v872
      %v895 = vpop.permute.xlu0 %894
      %898 = vset.pattern.permute.xlu0 0
      %899 = vperm.xlu0 %898, %v873
      %v900 = vpop.permute.xlu0 %899
      %903 = vset.pattern.permute.xlu0 0
      %904 = vperm.xlu0 %903, %v874
      %v905 = vpop.permute.xlu0 %904
      %908 = vset.pattern.permute.xlu0 0
      %909 = vperm.xlu0 %908, %v875
      %v910 = vpop.permute.xlu0 %909
      %913 = vset.pattern.permute.xlu0 0
      %914 = vperm.xlu0 %913, %v876
      %v915 = vpop.permute.xlu0 %914
      %918 = vset.pattern.permute.xlu0 0
      %919 = vperm.xlu0 %918, %v877
      %v920 = vpop.permute.xlu0 %919
      %923 = vset.pattern.permute.xlu0 0
      %924 = vperm.xlu0 %923, %v878
      %v925 = vpop.permute.xlu0 %924
      %928 = vset.pattern.permute.xlu0 0
      %929 = vperm.xlu0 %928, %v879
      %v930 = vpop.permute.xlu0 %929
      %933 = vset.pattern.permute.xlu0 0
      %934 = vperm.xlu0 %933, %v880
      %v935 = vpop.permute.xlu0 %934
      %938 = vset.pattern.permute.xlu0 0
      %939 = vperm.xlu0 %938, %v881
      %v940 = vpop.permute.xlu0 %939
      %943 = vset.pattern.permute.xlu0 0
      %944 = vperm.xlu0 %943, %v882
      %v945 = vpop.permute.xlu0 %944
      %948 = vset.pattern.permute.xlu0 0
      %949 = vperm.xlu0 %948, %v883
      %v950 = vpop.permute.xlu0 %949
      %953 = vset.pattern.permute.xlu0 0
      %954 = vperm.xlu0 %953, %v884
      %v955 = vpop.permute.xlu0 %954
      %958 = vset.pattern.permute.xlu0 0
      %959 = vperm.xlu0 %958, %v885
      %v960 = vpop.permute.xlu0 %959
      %963 = vset.pattern.permute.xlu0 0
      %964 = vperm.xlu0 %963, %v886
      %v965 = vpop.permute.xlu0 %964
      %v967 = vadd.f32 %v855, %v890
      %v968 = vadd.f32 %v856, %v895
      %v969 = vadd.f32 %v857, %v900
      %v970 = vadd.f32 %v858, %v905
      %v971 = vadd.f32 %v859, %v910
      %v972 = vadd.f32 %v860, %v915
      %v973 = vadd.f32 %v861, %v920
      %v974 = vadd.f32 %v862, %v925
      %v975 = vadd.f32 %v863, %v930
      %v976 = vadd.f32 %v864, %v935
      %v977 = vadd.f32 %v865, %v940
      %v978 = vadd.f32 %v866, %v945
      %v979 = vadd.f32 %v867, %v950
      %v980 = vadd.f32 %v868, %v955
      %v981 = vadd.f32 %v869, %v960
      %v982 = vadd.f32 %v870, %v965
      %v983 = vmax.f32 %v967, 0.0
      %v984 = vmax.f32 %v968, 0.0
      %v985 = vmax.f32 %v969, 0.0
      %v986 = vmax.f32 %v970, 0.0
      %v987 = vmax.f32 %v971, 0.0
      %v988 = vmax.f32 %v972, 0.0
      %v989 = vmax.f32 %v973, 0.0
      %v990 = vmax.f32 %v974, 0.0
      %v991 = vmax.f32 %v975, 0.0
      %v992 = vmax.f32 %v976, 0.0
      %v993 = vmax.f32 %v977, 0.0
      %v994 = vmax.f32 %v978, 0.0
      %v995 = vmax.f32 %v979, 0.0
      %v996 = vmax.f32 %v980, 0.0
      %v997 = vmax.f32 %v981, 0.0
      %v998 = vmax.f32 %v982, 0.0
      %v1000 = vsel %vm359, %v983, 0
      %v1003 = vsel %vm359, %v984, 0
      %v1006 = vsel %vm359, %v985, 0
      %v1009 = vsel %vm359, %v986, 0
      %v1012 = vsel %vm359, %v987, 0
      %v1015 = vsel %vm359, %v988, 0
      %v1018 = vsel %vm359, %v989, 0
      %v1021 = vsel %vm359, %v990, 0
      %v1024 = vsel %vm359, %v991, 0
      %v1027 = vsel %vm359, %v992, 0
      %v1030 = vsel %vm359, %v993, 0
      %v1033 = vsel %vm359, %v994, 0
      %v1036 = vsel %vm359, %v995, 0
      %v1039 = vsel %vm359, %v996, 0
      %v1042 = vsel %vm359, %v997, 0
      %v1045 = vsel %vm359, %v998, 0
      %1047 = vmatpush.msra.mxu0 0.0
      %1048 = vmatpush.msra.mxu0 0.0
      %1049 = vmatpush.msra.mxu0 0.0
      %1050 = vmatpush.msra.mxu0 0.0
      %1051 = vmatpush.msra.mxu0 0.0
      %1052 = vmatpush.msra.mxu0 0.0
      %1053 = vmatpush.msra.mxu0 0.0
      %1054 = vmatpush.msra.mxu0 0.0
      %1055 = vmatpush.msra.mxu0 0.0
      %1056 = vmatpush.msra.mxu0 0.0
      %1057 = vmatpush.msra.mxu0 0.0
      %1058 = vmatpush.msra.mxu0 0.0
      %1059 = vmatpush.msra.mxu0 0.0
      %1060 = vmatpush.msra.mxu0 0.0
      %1061 = vmatpush.msra.mxu0 %v358
      %1062 = vmatpush.msra.mxu0 %v357
      %1063 = vmatmul.f32.gmra.mxu0 %v1000
      %v1064 = vpop.f32.mrf.mxu0
      %v1065 = vadd.f32 0.0, %v1064
      %1066 = vmatmul.f32.gmra.mxu0 %v1003
      %v1067 = vpop.f32.mrf.mxu0
      %v1068 = vadd.f32 0.0, %v1067
      %1069 = vmatmul.f32.gmra.mxu0 %v1006
      %v1070 = vpop.f32.mrf.mxu0
      %v1071 = vadd.f32 0.0, %v1070
      %1072 = vmatmul.f32.gmra.mxu0 %v1009
      %v1073 = vpop.f32.mrf.mxu0
      %v1074 = vadd.f32 0.0, %v1073
      %1075 = vmatmul.f32.gmra.mxu0 %v1012
      %v1076 = vpop.f32.mrf.mxu0
      %v1077 = vadd.f32 0.0, %v1076
      %1078 = vmatmul.f32.gmra.mxu0 %v1015
      %v1079 = vpop.f32.mrf.mxu0
      %v1080 = vadd.f32 0.0, %v1079
      %1081 = vmatmul.f32.gmra.mxu0 %v1018
      %v1082 = vpop.f32.mrf.mxu0
      %v1083 = vadd.f32 0.0, %v1082
      %1084 = vmatmul.f32.gmra.mxu0 %v1021
      %v1085 = vpop.f32.mrf.mxu0
      %v1086 = vadd.f32 0.0, %v1085
      %1087 = vmatmul.f32.gmra.mxu0 %v1024
      %v1088 = vpop.f32.mrf.mxu0
      %v1089 = vadd.f32 0.0, %v1088
      %1090 = vmatmul.f32.gmra.mxu0 %v1027
      %v1091 = vpop.f32.mrf.mxu0
      %v1092 = vadd.f32 0.0, %v1091
      %1093 = vmatmul.f32.gmra.mxu0 %v1030
      %v1094 = vpop.f32.mrf.mxu0
      %v1095 = vadd.f32 0.0, %v1094
      %1096 = vmatmul.f32.gmra.mxu0 %v1033
      %v1097 = vpop.f32.mrf.mxu0
      %v1098 = vadd.f32 0.0, %v1097
      %1099 = vmatmul.f32.gmra.mxu0 %v1036
      %v1100 = vpop.f32.mrf.mxu0
      %v1101 = vadd.f32 0.0, %v1100
      %1102 = vmatmul.f32.gmra.mxu0 %v1039
      %v1103 = vpop.f32.mrf.mxu0
      %v1104 = vadd.f32 0.0, %v1103
      %1105 = vmatmul.f32.gmra.mxu0 %v1042
      %v1106 = vpop.f32.mrf.mxu0
      %v1107 = vadd.f32 0.0, %v1106
      %1108 = vmatmul.f32.gmra.mxu0 %v1045
      %v1109 = vpop.f32.mrf.mxu0
      %v1110 = vadd.f32 0.0, %v1109
      %1111 = vdwg.mxu0
      %v1112 = vld [vmem:[%s4] sm:$0xff]
      %v1113 = vld [vmem:[%s4 + $0x8] sm:$0xff]
      %v1114 = vld [vmem:[%s4 + $0x10] sm:$0xff]
      %v1115 = vld [vmem:[%s4 + $0x18] sm:$0xff]
      %1116 = vmatpush.msra.mxu0 0.0
      %1117 = vmatpush.msra.mxu0 0.0
      %1118 = vmatpush.msra.mxu0 0.0
      %1119 = vmatpush.msra.mxu0 0.0
      %1120 = vmatpush.msra.mxu0 0.0
      %1121 = vmatpush.msra.mxu0 0.0
      %1122 = vmatpush.msra.mxu0 0.0
      %1123 = vmatpush.msra.mxu0 0.0
      %1124 = vmatpush.msra.mxu0 0.0
      %1125 = vmatpush.msra.mxu0 0.0
      %1126 = vmatpush.msra.mxu0 0.0
      %1127 = vmatpush.msra.mxu0 0.0
      %1128 = vmatpush.msra.mxu0 0.0
      %1129 = vmatpush.msra.mxu0 0.0
      %1130 = vmatpush.msra.mxu0 %v419
      %1131 = vmatpush.msra.mxu0 %v418
      %1132 = vmatmul.f32.gmra.mxu0 %v1000
      %v1133 = vpop.f32.mrf.mxu0
      %v1134 = vadd.f32 0.0, %v1133
      %1135 = vmatmul.f32.gmra.mxu0 %v1003
      %v1136 = vpop.f32.mrf.mxu0
      %v1137 = vadd.f32 0.0, %v1136
      %1138 = vmatmul.f32.gmra.mxu0 %v1006
      %v1139 = vpop.f32.mrf.mxu0
      %v1140 = vadd.f32 0.0, %v1139
      %1141 = vmatmul.f32.gmra.mxu0 %v1009
      %v1142 = vpop.f32.mrf.mxu0
      %v1143 = vadd.f32 0.0, %v1142
      %1144 = vmatmul.f32.gmra.mxu0 %v1012
      %v1145 = vpop.f32.mrf.mxu0
      %v1146 = vadd.f32 0.0, %v1145
      %1147 = vmatmul.f32.gmra.mxu0 %v1015
      %v1148 = vpop.f32.mrf.mxu0
      %v1149 = vadd.f32 0.0, %v1148
      %1150 = vmatmul.f32.gmra.mxu0 %v1018
      %v1151 = vpop.f32.mrf.mxu0
      %v1152 = vadd.f32 0.0, %v1151
      %1153 = vmatmul.f32.gmra.mxu0 %v1021
      %v1154 = vpop.f32.mrf.mxu0
      %v1155 = vadd.f32 0.0, %v1154
      %1156 = vmatmul.f32.gmra.mxu0 %v1024
      %v1157 = vpop.f32.mrf.mxu0
      %v1158 = vadd.f32 0.0, %v1157
      %1159 = vmatmul.f32.gmra.mxu0 %v1027
      %v1160 = vpop.f32.mrf.mxu0
      %v1161 = vadd.f32 0.0, %v1160
      %1162 = vmatmul.f32.gmra.mxu0 %v1030
      %v1163 = vpop.f32.mrf.mxu0
      %v1164 = vadd.f32 0.0, %v1163
      %1165 = vmatmul.f32.gmra.mxu0 %v1033
      %v1166 = vpop.f32.mrf.mxu0
      %v1167 = vadd.f32 0.0, %v1166
      %1168 = vmatmul.f32.gmra.mxu0 %v1036
      %v1169 = vpop.f32.mrf.mxu0
      %v1170 = vadd.f32 0.0, %v1169
      %1171 = vmatmul.f32.gmra.mxu0 %v1039
      %v1172 = vpop.f32.mrf.mxu0
      %v1173 = vadd.f32 0.0, %v1172
      %1174 = vmatmul.f32.gmra.mxu0 %v1042
      %v1175 = vpop.f32.mrf.mxu0
      %v1176 = vadd.f32 0.0, %v1175
      %1177 = vmatmul.f32.gmra.mxu0 %v1045
      %v1178 = vpop.f32.mrf.mxu0
      %v1179 = vadd.f32 0.0, %v1178
      %1180 = vdwg.mxu0
      %s1181 = scalar_lea.vmem %s4, 32
      %v1182 = vld [vmem:[%s1181] sm:$0xff]
      %v1183 = vld [vmem:[%s1181 + $0x8] sm:$0xff]
      %v1184 = vld [vmem:[%s1181 + $0x10] sm:$0xff]
      %v1185 = vld [vmem:[%s1181 + $0x18] sm:$0xff]
      %1186 = vmatpush.msra.mxu0 %v1179
      %1187 = vmatpush.msra.mxu0 %v1176
      %1188 = vmatpush.msra.mxu0 %v1173
      %1189 = vmatpush.msra.mxu0 %v1170
      %1190 = vmatpush.msra.mxu0 %v1167
      %1191 = vmatpush.msra.mxu0 %v1164
      %1192 = vmatpush.msra.mxu0 %v1161
      %1193 = vmatpush.msra.mxu0 %v1158
      %1194 = vmatpush.msra.mxu0 %v1155
      %1195 = vmatpush.msra.mxu0 %v1152
      %1196 = vmatpush.msra.mxu0 %v1149
      %1197 = vmatpush.msra.mxu0 %v1146
      %1198 = vmatpush.msra.mxu0 %v1143
      %1199 = vmatpush.msra.mxu0 %v1140
      %1200 = vmatpush.msra.mxu0 %v1137
      %1201 = vmatpush.msra.mxu0 %v1134
      %1202 = vmatmul.f32.gmra.mxu0 %v1182
      %v1203 = vpop.f32.mrf.mxu0
      %v1204 = vadd.f32 0.0, %v1203
      %1205 = vmatmul.f32.gmra.mxu0 %v1183
      %v1206 = vpop.f32.mrf.mxu0
      %v1207 = vadd.f32 0.0, %v1206
      %1208 = vmatmul.f32.gmra.mxu0 %v1184
      %v1209 = vpop.f32.mrf.mxu0
      %v1210 = vadd.f32 0.0, %v1209
      %1211 = vmatmul.f32.gmra.mxu0 %v1185
      %v1212 = vpop.f32.mrf.mxu0
      %v1213 = vadd.f32 0.0, %v1212
      %1214 = vdwg.mxu0
      %1215 = vmatpush.msra.mxu0 %v1110
      %1216 = vmatpush.msra.mxu0 %v1107
      %1217 = vmatpush.msra.mxu0 %v1104
      %1218 = vmatpush.msra.mxu0 %v1101
      %1219 = vmatpush.msra.mxu0 %v1098
      %1220 = vmatpush.msra.mxu0 %v1095
      %1221 = vmatpush.msra.mxu0 %v1092
      %1222 = vmatpush.msra.mxu0 %v1089
      %1223 = vmatpush.msra.mxu0 %v1086
      %1224 = vmatpush.msra.mxu0 %v1083
      %1225 = vmatpush.msra.mxu0 %v1080
      %1226 = vmatpush.msra.mxu0 %v1077
      %1227 = vmatpush.msra.mxu0 %v1074
      %1228 = vmatpush.msra.mxu0 %v1071
      %1229 = vmatpush.msra.mxu0 %v1068
      %1230 = vmatpush.msra.mxu0 %v1065
      %1231 = vmatmul.f32.gmra.mxu0 %v1112
      %v1232 = vpop.f32.mrf.mxu0
      %v1233 = vadd.f32 %v1204, %v1232
      %1234 = vmatmul.f32.gmra.mxu0 %v1113
      %v1235 = vpop.f32.mrf.mxu0
      %v1236 = vadd.f32 %v1207, %v1235
      %1237 = vmatmul.f32.gmra.mxu0 %v1114
      %v1238 = vpop.f32.mrf.mxu0
      %v1239 = vadd.f32 %v1210, %v1238
      %1240 = vmatmul.f32.gmra.mxu0 %v1115
      %v1241 = vpop.f32.mrf.mxu0
      %v1242 = vadd.f32 %v1213, %v1241
      %1243 = vdwg.mxu0
      %1244 = vmatpush.msra.mxu0 0.0
      %1245 = vmatpush.msra.mxu0 0.0
      %1246 = vmatpush.msra.mxu0 0.0
      %1247 = vmatpush.msra.mxu0 0.0
      %1248 = vmatpush.msra.mxu0 0.0
      %1249 = vmatpush.msra.mxu0 0.0
      %1250 = vmatpush.msra.mxu0 0.0
      %1251 = vmatpush.msra.mxu0 0.0
      %1252 = vmatpush.msra.mxu0 0.0
      %1253 = vmatpush.msra.mxu0 0.0
      %1254 = vmatpush.msra.mxu0 0.0
      %1255 = vmatpush.msra.mxu0 0.0
      %1256 = vmatpush.msra.mxu0 0.0
      %1257 = vmatpush.msra.mxu0 0.0
      %1258 = vmatpush.msra.mxu0 %v695
      %1259 = vmatpush.msra.mxu0 %v694
      %1260 = vmatmul.f32.gmra.mxu0 %v1000
      %v1261 = vpop.f32.mrf.mxu0
      %v1262 = vadd.f32 0.0, %v1261
      %1263 = vmatmul.f32.gmra.mxu0 %v1003
      %v1264 = vpop.f32.mrf.mxu0
      %v1265 = vadd.f32 0.0, %v1264
      %1266 = vmatmul.f32.gmra.mxu0 %v1006
      %v1267 = vpop.f32.mrf.mxu0
      %v1268 = vadd.f32 0.0, %v1267
      %1269 = vmatmul.f32.gmra.mxu0 %v1009
      %v1270 = vpop.f32.mrf.mxu0
      %v1271 = vadd.f32 0.0, %v1270
      %1272 = vmatmul.f32.gmra.mxu0 %v1012
      %v1273 = vpop.f32.mrf.mxu0
      %v1274 = vadd.f32 0.0, %v1273
      %1275 = vmatmul.f32.gmra.mxu0 %v1015
      %v1276 = vpop.f32.mrf.mxu0
      %v1277 = vadd.f32 0.0, %v1276
      %1278 = vmatmul.f32.gmra.mxu0 %v1018
      %v1279 = vpop.f32.mrf.mxu0
      %v1280 = vadd.f32 0.0, %v1279
      %1281 = vmatmul.f32.gmra.mxu0 %v1021
      %v1282 = vpop.f32.mrf.mxu0
      %v1283 = vadd.f32 0.0, %v1282
      %1284 = vmatmul.f32.gmra.mxu0 %v1024
      %v1285 = vpop.f32.mrf.mxu0
      %v1286 = vadd.f32 0.0, %v1285
      %1287 = vmatmul.f32.gmra.mxu0 %v1027
      %v1288 = vpop.f32.mrf.mxu0
      %v1289 = vadd.f32 0.0, %v1288
      %1290 = vmatmul.f32.gmra.mxu0 %v1030
      %v1291 = vpop.f32.mrf.mxu0
      %v1292 = vadd.f32 0.0, %v1291
      %1293 = vmatmul.f32.gmra.mxu0 %v1033
      %v1294 = vpop.f32.mrf.mxu0
      %v1295 = vadd.f32 0.0, %v1294
      %1296 = vmatmul.f32.gmra.mxu0 %v1036
      %v1297 = vpop.f32.mrf.mxu0
      %v1298 = vadd.f32 0.0, %v1297
      %1299 = vmatmul.f32.gmra.mxu0 %v1039
      %v1300 = vpop.f32.mrf.mxu0
      %v1301 = vadd.f32 0.0, %v1300
      %1302 = vmatmul.f32.gmra.mxu0 %v1042
      %v1303 = vpop.f32.mrf.mxu0
      %v1304 = vadd.f32 0.0, %v1303
      %1305 = vmatmul.f32.gmra.mxu0 %v1045
      %v1306 = vpop.f32.mrf.mxu0
      %v1307 = vadd.f32 0.0, %v1306
      %1308 = vdwg.mxu0
      %s1309 = scalar_lea.vmem %s4, 64
      %v1310 = vld [vmem:[%s1309] sm:$0xff]
      %v1311 = vld [vmem:[%s1309 + $0x8] sm:$0xff]
      %v1312 = vld [vmem:[%s1309 + $0x10] sm:$0xff]
      %v1313 = vld [vmem:[%s1309 + $0x18] sm:$0xff]
      %1314 = vmatpush.msra.mxu0 %v1307
      %1315 = vmatpush.msra.mxu0 %v1304
      %1316 = vmatpush.msra.mxu0 %v1301
      %1317 = vmatpush.msra.mxu0 %v1298
      %1318 = vmatpush.msra.mxu0 %v1295
      %1319 = vmatpush.msra.mxu0 %v1292
      %1320 = vmatpush.msra.mxu0 %v1289
      %1321 = vmatpush.msra.mxu0 %v1286
      %1322 = vmatpush.msra.mxu0 %v1283
      %1323 = vmatpush.msra.mxu0 %v1280
      %1324 = vmatpush.msra.mxu0 %v1277
      %1325 = vmatpush.msra.mxu0 %v1274
      %1326 = vmatpush.msra.mxu0 %v1271
      %1327 = vmatpush.msra.mxu0 %v1268
      %1328 = vmatpush.msra.mxu0 %v1265
      %1329 = vmatpush.msra.mxu0 %v1262
      %1330 = vmatmul.f32.gmra.mxu0 %v1310
      %v1331 = vpop.f32.mrf.mxu0
      %v1332 = vadd.f32 0.0, %v1331
      %1333 = vmatmul.f32.gmra.mxu0 %v1311
      %v1334 = vpop.f32.mrf.mxu0
      %v1335 = vadd.f32 0.0, %v1334
      %1336 = vmatmul.f32.gmra.mxu0 %v1312
      %v1337 = vpop.f32.mrf.mxu0
      %v1338 = vadd.f32 0.0, %v1337
      %1339 = vmatmul.f32.gmra.mxu0 %v1313
      %v1340 = vpop.f32.mrf.mxu0
      %v1341 = vadd.f32 0.0, %v1340
      %1342 = vdwg.mxu0
      %v1343 = vadd.f32 %v1233, %v1332
      %v1344 = vadd.f32 %v1236, %v1335
      %v1345 = vadd.f32 %v1239, %v1338
      %v1346 = vadd.f32 %v1242, %v1341
      %v1347 = vld [vmem:[%s5] sm:$0xff]
      %v1348 = vld [vmem:[%s5 + $0x8] sm:$0xff]
      %v1349 = vld [vmem:[%s5 + $0x10] sm:$0xff]
      %v1350 = vld [vmem:[%s5 + $0x18] sm:$0xff]
      %1352 = vset.pattern.permute.xlu0 0
      %1353 = vperm.xlu0 %1352, %v1347
      %v1354 = vpop.permute.xlu0 %1353
      %1357 = vset.pattern.permute.xlu0 0
      %1358 = vperm.xlu0 %1357, %v1348
      %v1359 = vpop.permute.xlu0 %1358
      %1362 = vset.pattern.permute.xlu0 0
      %1363 = vperm.xlu0 %1362, %v1349
      %v1364 = vpop.permute.xlu0 %1363
      %1367 = vset.pattern.permute.xlu0 0
      %1368 = vperm.xlu0 %1367, %v1350
      %v1369 = vpop.permute.xlu0 %1368
      %v1371 = vadd.f32 %v1343, %v1354
      %v1372 = vadd.f32 %v1344, %v1359
      %v1373 = vadd.f32 %v1345, %v1364
      %v1374 = vadd.f32 %v1346, %v1369
      %v1375 = vld [vmem:[%s7] sm:$0xff]
      %v1376 = vld [vmem:[%s7 + $0x8] sm:$0xff]
      %s1377 = scalar_lea.vmem %s7, 16
      %v1378 = vld [vmem:[%s1377] sm:$0xff]
      %v1379 = vld [vmem:[%s1377 + $0x8] sm:$0xff]
      %v1380 = vld [vmem:[%s347] sm:$0xff]
      %v1381 = vld [vmem:[%s347 + $0x8] sm:$0xff]
      %s1382 = scalar_lea.vmem %s347, 64
      %v1383 = vld [vmem:[%s1382] sm:$0xff]
      %v1384 = vld [vmem:[%s1382 + $0x8] sm:$0xff]
      %v1385 = vmul.f32 %v1380, %v1371
      %v1386 = vmul.f32 %v1381, %v1372
      %v1387 = vmul.f32 %v1383, %v1373
      %v1388 = vmul.f32 %v1384, %v1374
      %v1389 = vsub.f32 %v1385, %v1387
      %v1390 = vsub.f32 %v1386, %v1388
      %v1391 = vmul.f32 %v1380, %v1373
      %v1392 = vmul.f32 %v1381, %v1374
      %v1393 = vmul.f32 %v1383, %v1371
      %v1394 = vmul.f32 %v1384, %v1372
      %v1395 = vadd.f32 %v1391, %v1393
      %v1396 = vadd.f32 %v1392, %v1394
      %v1398 = vsel %vm359, %v1375, 0
      %v1401 = vsel %vm359, %v1376, 0
      %1403 = vmatpush.msra.mxu0 0.0
      %1404 = vmatpush.msra.mxu0 0.0
      %1405 = vmatpush.msra.mxu0 0.0
      %1406 = vmatpush.msra.mxu0 0.0
      %1407 = vmatpush.msra.mxu0 0.0
      %1408 = vmatpush.msra.mxu0 0.0
      %1409 = vmatpush.msra.mxu0 0.0
      %1410 = vmatpush.msra.mxu0 0.0
      %1411 = vmatpush.msra.mxu0 0.0
      %1412 = vmatpush.msra.mxu0 0.0
      %1413 = vmatpush.msra.mxu0 0.0
      %1414 = vmatpush.msra.mxu0 0.0
      %1415 = vmatpush.msra.mxu0 0.0
      %1416 = vmatpush.msra.mxu0 0.0
      %1417 = vmatpush.msra.mxu0 %v1390
      %1418 = vmatpush.msra.mxu0 %v1389
      %1419 = vmatmul.f32.gmra.mxu0 %v1398
      %v1420 = vpop.f32.mrf.mxu0
      %v1421 = vadd.f32 0.0, %v1420
      %1422 = vmatmul.f32.gmra.mxu0 %v1401
      %v1423 = vpop.f32.mrf.mxu0
      %v1424 = vadd.f32 0.0, %v1423
      %1425 = vdwg.mxu0
      %v1427 = vsel %vm359, %v1378, 0
      %v1430 = vsel %vm359, %v1379, 0
      %1432 = vmatpush.msra.mxu0 0.0
      %1433 = vmatpush.msra.mxu0 0.0
      %1434 = vmatpush.msra.mxu0 0.0
      %1435 = vmatpush.msra.mxu0 0.0
      %1436 = vmatpush.msra.mxu0 0.0
      %1437 = vmatpush.msra.mxu0 0.0
      %1438 = vmatpush.msra.mxu0 0.0
      %1439 = vmatpush.msra.mxu0 0.0
      %1440 = vmatpush.msra.mxu0 0.0
      %1441 = vmatpush.msra.mxu0 0.0
      %1442 = vmatpush.msra.mxu0 0.0
      %1443 = vmatpush.msra.mxu0 0.0
      %1444 = vmatpush.msra.mxu0 0.0
      %1445 = vmatpush.msra.mxu0 0.0
      %1446 = vmatpush.msra.mxu0 %v1396
      %1447 = vmatpush.msra.mxu0 %v1395
      %1448 = vmatmul.f32.gmra.mxu0 %v1427
      %v1449 = vpop.f32.mrf.mxu0
      %v1450 = vadd.f32 0.0, %v1449
      %1451 = vmatmul.f32.gmra.mxu0 %v1430
      %v1452 = vpop.f32.mrf.mxu0
      %v1453 = vadd.f32 0.0, %v1452
      %1454 = vdwg.mxu0
      %v1455 = vadd.f32 %v1375, %v1378
      %v1456 = vadd.f32 %v1376, %v1379
      %v1457 = vadd.f32 %v1389, %v1395
      %v1458 = vadd.f32 %v1390, %v1396
      %v1460 = vsel %vm359, %v1455, 0
      %v1463 = vsel %vm359, %v1456, 0
      %1465 = vmatpush.msra.mxu0 0.0
      %1466 = vmatpush.msra.mxu0 0.0
      %1467 = vmatpush.msra.mxu0 0.0
      %1468 = vmatpush.msra.mxu0 0.0
      %1469 = vmatpush.msra.mxu0 0.0
      %1470 = vmatpush.msra.mxu0 0.0
      %1471 = vmatpush.msra.mxu0 0.0
      %1472 = vmatpush.msra.mxu0 0.0
      %1473 = vmatpush.msra.mxu0 0.0
      %1474 = vmatpush.msra.mxu0 0.0
      %1475 = vmatpush.msra.mxu0 0.0
      %1476 = vmatpush.msra.mxu0 0.0
      %1477 = vmatpush.msra.mxu0 0.0
      %1478 = vmatpush.msra.mxu0 0.0
      %1479 = vmatpush.msra.mxu0 %v1458
      %1480 = vmatpush.msra.mxu0 %v1457
      %1481 = vmatmul.f32.gmra.mxu0 %v1460
      %v1482 = vpop.f32.mrf.mxu0
      %v1483 = vadd.f32 0.0, %v1482
      %1484 = vmatmul.f32.gmra.mxu0 %v1463
      %v1485 = vpop.f32.mrf.mxu0
      %v1486 = vadd.f32 0.0, %v1485
      %1487 = vdwg.mxu0
      %v1488 = vsub.f32 %v1421, %v1450
      %v1489 = vsub.f32 %v1424, %v1453
      %v1490 = vsub.f32 %v1483, %v1421
      %v1491 = vsub.f32 %v1486, %v1424
      %v1492 = vsub.f32 %v1490, %v1450
      %v1493 = vsub.f32 %v1491, %v1453
      %1494 = vst.msk [vmem:[#allocation2] sm:$0xff] %vm359, %v1488
      %1495 = vst.msk [vmem:[#allocation2 + $0x8] sm:$0xff] %vm359, %v1489
      %1496 = vst.msk [vmem:[#allocation3] sm:$0xff] %vm359, %v1492
      %1497 = vst.msk [vmem:[#allocation3 + $0x8] sm:$0xff] %vm359, %v1493
      %v1498 = vld [vmem:[%s347 + $0x10] sm:$0xff]
      %v1499 = vld [vmem:[%s347 + $0x18] sm:$0xff]
      %v1500 = vld [vmem:[%s1382 + $0x10] sm:$0xff]
      %v1501 = vld [vmem:[%s1382 + $0x18] sm:$0xff]
      %v1502 = vmul.f32 %v1498, %v1371
      %v1503 = vmul.f32 %v1499, %v1372
      %v1504 = vmul.f32 %v1500, %v1373
      %v1505 = vmul.f32 %v1501, %v1374
      %v1506 = vsub.f32 %v1502, %v1504
      %v1507 = vsub.f32 %v1503, %v1505
      %v1508 = vmul.f32 %v1498, %v1373
      %v1509 = vmul.f32 %v1499, %v1374
      %v1510 = vmul.f32 %v1500, %v1371
      %v1511 = vmul.f32 %v1501, %v1372
      %v1512 = vadd.f32 %v1508, %v1510
      %v1513 = vadd.f32 %v1509, %v1511
      %1514 = vmatpush.msra.mxu0 0.0
      %1515 = vmatpush.msra.mxu0 0.0
      %1516 = vmatpush.msra.mxu0 0.0
      %1517 = vmatpush.msra.mxu0 0.0
      %1518 = vmatpush.msra.mxu0 0.0
      %1519 = vmatpush.msra.mxu0 0.0
      %1520 = vmatpush.msra.mxu0 0.0
      %1521 = vmatpush.msra.mxu0 0.0
      %1522 = vmatpush.msra.mxu0 0.0
      %1523 = vmatpush.msra.mxu0 0.0
      %1524 = vmatpush.msra.mxu0 0.0
      %1525 = vmatpush.msra.mxu0 0.0
      %1526 = vmatpush.msra.mxu0 0.0
      %1527 = vmatpush.msra.mxu0 0.0
      %1528 = vmatpush.msra.mxu0 %v1507
      %1529 = vmatpush.msra.mxu0 %v1506
      %1530 = vmatmul.f32.gmra.mxu0 %v1398
      %v1531 = vpop.f32.mrf.mxu0
      %v1532 = vadd.f32 0.0, %v1531
      %1533 = vmatmul.f32.gmra.mxu0 %v1401
      %v1534 = vpop.f32.mrf.mxu0
      %v1535 = vadd.f32 0.0, %v1534
      %1536 = vdwg.mxu0
      %1537 = vmatpush.msra.mxu0 0.0
      %1538 = vmatpush.msra.mxu0 0.0
      %1539 = vmatpush.msra.mxu0 0.0
      %1540 = vmatpush.msra.mxu0 0.0
      %1541 = vmatpush.msra.mxu0 0.0
      %1542 = vmatpush.msra.mxu0 0.0
      %1543 = vmatpush.msra.mxu0 0.0
      %1544 = vmatpush.msra.mxu0 0.0
      %1545 = vmatpush.msra.mxu0 0.0
      %1546 = vmatpush.msra.mxu0 0.0
      %1547 = vmatpush.msra.mxu0 0.0
      %1548 = vmatpush.msra.mxu0 0.0
      %1549 = vmatpush.msra.mxu0 0.0
      %1550 = vmatpush.msra.mxu0 0.0
      %1551 = vmatpush.msra.mxu0 %v1513
      %1552 = vmatpush.msra.mxu0 %v1512
      %1553 = vmatmul.f32.gmra.mxu0 %v1427
      %v1554 = vpop.f32.mrf.mxu0
      %v1555 = vadd.f32 0.0, %v1554
      %1556 = vmatmul.f32.gmra.mxu0 %v1430
      %v1557 = vpop.f32.mrf.mxu0
      %v1558 = vadd.f32 0.0, %v1557
      %1559 = vdwg.mxu0
      %v1560 = vadd.f32 %v1506, %v1512
      %v1561 = vadd.f32 %v1507, %v1513
      %1562 = vmatpush.msra.mxu0 0.0
      %1563 = vmatpush.msra.mxu0 0.0
      %1564 = vmatpush.msra.mxu0 0.0
      %1565 = vmatpush.msra.mxu0 0.0
      %1566 = vmatpush.msra.mxu0 0.0
      %1567 = vmatpush.msra.mxu0 0.0
      %1568 = vmatpush.msra.mxu0 0.0
      %1569 = vmatpush.msra.mxu0 0.0
      %1570 = vmatpush.msra.mxu0 0.0
      %1571 = vmatpush.msra.mxu0 0.0
      %1572 = vmatpush.msra.mxu0 0.0
      %1573 = vmatpush.msra.mxu0 0.0
      %1574 = vmatpush.msra.mxu0 0.0
      %1575 = vmatpush.msra.mxu0 0.0
      %1576 = vmatpush.msra.mxu0 %v1561
      %1577 = vmatpush.msra.mxu0 %v1560
      %1578 = vmatmul.f32.gmra.mxu0 %v1460
      %v1579 = vpop.f32.mrf.mxu0
      %v1580 = vadd.f32 0.0, %v1579
      %1581 = vmatmul.f32.gmra.mxu0 %v1463
      %v1582 = vpop.f32.mrf.mxu0
      %v1583 = vadd.f32 0.0, %v1582
      %1584 = vdwg.mxu0
      %v1585 = vsub.f32 %v1532, %v1555
      %v1586 = vsub.f32 %v1535, %v1558
      %v1587 = vsub.f32 %v1580, %v1532
      %v1588 = vsub.f32 %v1583, %v1535
      %v1589 = vsub.f32 %v1587, %v1555
      %v1590 = vsub.f32 %v1588, %v1558
      %1591 = vst.msk [vmem:[#allocation2 + $0x10] sm:$0xff] %vm359, %v1585
      %1592 = vst.msk [vmem:[#allocation2 + $0x18] sm:$0xff] %vm359, %v1586
      %1593 = vst.msk [vmem:[#allocation3 + $0x10] sm:$0xff] %vm359, %v1589
      %1594 = vst.msk [vmem:[#allocation3 + $0x18] sm:$0xff] %vm359, %v1590
      %v1595 = vld [vmem:[%s347 + $0x20] sm:$0xff]
      %v1596 = vld [vmem:[%s347 + $0x28] sm:$0xff]
      %v1597 = vld [vmem:[%s1382 + $0x20] sm:$0xff]
      %v1598 = vld [vmem:[%s1382 + $0x28] sm:$0xff]
      %v1599 = vmul.f32 %v1595, %v1371
      %v1600 = vmul.f32 %v1596, %v1372
      %v1601 = vmul.f32 %v1597, %v1373
      %v1602 = vmul.f32 %v1598, %v1374
      %v1603 = vsub.f32 %v1599, %v1601
      %v1604 = vsub.f32 %v1600, %v1602
      %v1605 = vmul.f32 %v1595, %v1373
      %v1606 = vmul.f32 %v1596, %v1374
      %v1607 = vmul.f32 %v1597, %v1371
      %v1608 = vmul.f32 %v1598, %v1372
      %v1609 = vadd.f32 %v1605, %v1607
      %v1610 = vadd.f32 %v1606, %v1608
      %1611 = vmatpush.msra.mxu0 0.0
      %1612 = vmatpush.msra.mxu0 0.0
      %1613 = vmatpush.msra.mxu0 0.0
      %1614 = vmatpush.msra.mxu0 0.0
      %1615 = vmatpush.msra.mxu0 0.0
      %1616 = vmatpush.msra.mxu0 0.0
      %1617 = vmatpush.msra.mxu0 0.0
      %1618 = vmatpush.msra.mxu0 0.0
      %1619 = vmatpush.msra.mxu0 0.0
      %1620 = vmatpush.msra.mxu0 0.0
      %1621 = vmatpush.msra.mxu0 0.0
      %1622 = vmatpush.msra.mxu0 0.0
      %1623 = vmatpush.msra.mxu0 0.0
      %1624 = vmatpush.msra.mxu0 0.0
      %1625 = vmatpush.msra.mxu0 %v1604
      %1626 = vmatpush.msra.mxu0 %v1603
      %1627 = vmatmul.f32.gmra.mxu0 %v1398
      %v1628 = vpop.f32.mrf.mxu0
      %v1629 = vadd.f32 0.0, %v1628
      %1630 = vmatmul.f32.gmra.mxu0 %v1401
      %v1631 = vpop.f32.mrf.mxu0
      %v1632 = vadd.f32 0.0, %v1631
      %1633 = vdwg.mxu0
      %1634 = vmatpush.msra.mxu0 0.0
      %1635 = vmatpush.msra.mxu0 0.0
      %1636 = vmatpush.msra.mxu0 0.0
      %1637 = vmatpush.msra.mxu0 0.0
      %1638 = vmatpush.msra.mxu0 0.0
      %1639 = vmatpush.msra.mxu0 0.0
      %1640 = vmatpush.msra.mxu0 0.0
      %1641 = vmatpush.msra.mxu0 0.0
      %1642 = vmatpush.msra.mxu0 0.0
      %1643 = vmatpush.msra.mxu0 0.0
      %1644 = vmatpush.msra.mxu0 0.0
      %1645 = vmatpush.msra.mxu0 0.0
      %1646 = vmatpush.msra.mxu0 0.0
      %1647 = vmatpush.msra.mxu0 0.0
      %1648 = vmatpush.msra.mxu0 %v1610
      %1649 = vmatpush.msra.mxu0 %v1609
      %1650 = vmatmul.f32.gmra.mxu0 %v1427
      %v1651 = vpop.f32.mrf.mxu0
      %v1652 = vadd.f32 0.0, %v1651
      %1653 = vmatmul.f32.gmra.mxu0 %v1430
      %v1654 = vpop.f32.mrf.mxu0
      %v1655 = vadd.f32 0.0, %v1654
      %1656 = vdwg.mxu0
      %v1657 = vadd.f32 %v1603, %v1609
      %v1658 = vadd.f32 %v1604, %v1610
      %1659 = vmatpush.msra.mxu0 0.0
      %1660 = vmatpush.msra.mxu0 0.0
      %1661 = vmatpush.msra.mxu0 0.0
      %1662 = vmatpush.msra.mxu0 0.0
      %1663 = vmatpush.msra.mxu0 0.0
      %1664 = vmatpush.msra.mxu0 0.0
      %1665 = vmatpush.msra.mxu0 0.0
      %1666 = vmatpush.msra.mxu0 0.0
      %1667 = vmatpush.msra.mxu0 0.0
      %1668 = vmatpush.msra.mxu0 0.0
      %1669 = vmatpush.msra.mxu0 0.0
      %1670 = vmatpush.msra.mxu0 0.0
      %1671 = vmatpush.msra.mxu0 0.0
      %1672 = vmatpush.msra.mxu0 0.0
      %1673 = vmatpush.msra.mxu0 %v1658
      %1674 = vmatpush.msra.mxu0 %v1657
      %1675 = vmatmul.f32.gmra.mxu0 %v1460
      %v1676 = vpop.f32.mrf.mxu0
      %v1677 = vadd.f32 0.0, %v1676
      %1678 = vmatmul.f32.gmra.mxu0 %v1463
      %v1679 = vpop.f32.mrf.mxu0
      %v1680 = vadd.f32 0.0, %v1679
      %1681 = vdwg.mxu0
      %v1682 = vsub.f32 %v1629, %v1652
      %v1683 = vsub.f32 %v1632, %v1655
      %v1684 = vsub.f32 %v1677, %v1629
      %v1685 = vsub.f32 %v1680, %v1632
      %v1686 = vsub.f32 %v1684, %v1652
      %v1687 = vsub.f32 %v1685, %v1655
      %1688 = vst.msk [vmem:[#allocation2 + $0x20] sm:$0xff] %vm359, %v1682
      %1689 = vst.msk [vmem:[#allocation2 + $0x28] sm:$0xff] %vm359, %v1683
      %1690 = vst.msk [vmem:[#allocation3 + $0x20] sm:$0xff] %vm359, %v1686
      %1691 = vst.msk [vmem:[#allocation3 + $0x28] sm:$0xff] %vm359, %v1687
      %v1692 = vld [vmem:[%s347 + $0x30] sm:$0xff]
      %v1693 = vld [vmem:[%s347 + $0x38] sm:$0xff]
      %v1694 = vld [vmem:[%s1382 + $0x30] sm:$0xff]
      %v1695 = vld [vmem:[%s1382 + $0x38] sm:$0xff]
      %v1696 = vmul.f32 %v1692, %v1371
      %v1697 = vmul.f32 %v1693, %v1372
      %v1698 = vmul.f32 %v1694, %v1373
      %v1699 = vmul.f32 %v1695, %v1374
      %v1700 = vsub.f32 %v1696, %v1698
      %v1701 = vsub.f32 %v1697, %v1699
      %v1702 = vmul.f32 %v1692, %v1373
      %v1703 = vmul.f32 %v1693, %v1374
      %v1704 = vmul.f32 %v1694, %v1371
      %v1705 = vmul.f32 %v1695, %v1372
      %v1706 = vadd.f32 %v1702, %v1704
      %v1707 = vadd.f32 %v1703, %v1705
      %1708 = vmatpush.msra.mxu0 0.0
      %1709 = vmatpush.msra.mxu0 0.0
      %1710 = vmatpush.msra.mxu0 0.0
      %1711 = vmatpush.msra.mxu0 0.0
      %1712 = vmatpush.msra.mxu0 0.0
      %1713 = vmatpush.msra.mxu0 0.0
      %1714 = vmatpush.msra.mxu0 0.0
      %1715 = vmatpush.msra.mxu0 0.0
      %1716 = vmatpush.msra.mxu0 0.0
      %1717 = vmatpush.msra.mxu0 0.0
      %1718 = vmatpush.msra.mxu0 0.0
      %1719 = vmatpush.msra.mxu0 0.0
      %1720 = vmatpush.msra.mxu0 0.0
      %1721 = vmatpush.msra.mxu0 0.0
      %1722 = vmatpush.msra.mxu0 %v1701
      %1723 = vmatpush.msra.mxu0 %v1700
      %1724 = vmatmul.f32.gmra.mxu0 %v1398
      %v1725 = vpop.f32.mrf.mxu0
      %v1726 = vadd.f32 0.0, %v1725
      %1727 = vmatmul.f32.gmra.mxu0 %v1401
      %v1728 = vpop.f32.mrf.mxu0
      %v1729 = vadd.f32 0.0, %v1728
      %1730 = vdwg.mxu0
      %1731 = vmatpush.msra.mxu0 0.0
      %1732 = vmatpush.msra.mxu0 0.0
      %1733 = vmatpush.msra.mxu0 0.0
      %1734 = vmatpush.msra.mxu0 0.0
      %1735 = vmatpush.msra.mxu0 0.0
      %1736 = vmatpush.msra.mxu0 0.0
      %1737 = vmatpush.msra.mxu0 0.0
      %1738 = vmatpush.msra.mxu0 0.0
      %1739 = vmatpush.msra.mxu0 0.0
      %1740 = vmatpush.msra.mxu0 0.0
      %1741 = vmatpush.msra.mxu0 0.0
      %1742 = vmatpush.msra.mxu0 0.0
      %1743 = vmatpush.msra.mxu0 0.0
      %1744 = vmatpush.msra.mxu0 0.0
      %1745 = vmatpush.msra.mxu0 %v1707
      %1746 = vmatpush.msra.mxu0 %v1706
      %1747 = vmatmul.f32.gmra.mxu0 %v1427
      %v1748 = vpop.f32.mrf.mxu0
      %v1749 = vadd.f32 0.0, %v1748
      %1750 = vmatmul.f32.gmra.mxu0 %v1430
      %v1751 = vpop.f32.mrf.mxu0
      %v1752 = vadd.f32 0.0, %v1751
      %1753 = vdwg.mxu0
      %v1754 = vadd.f32 %v1700, %v1706
      %v1755 = vadd.f32 %v1701, %v1707
      %1756 = vmatpush.msra.mxu0 0.0
      %1757 = vmatpush.msra.mxu0 0.0
      %1758 = vmatpush.msra.mxu0 0.0
      %1759 = vmatpush.msra.mxu0 0.0
      %1760 = vmatpush.msra.mxu0 0.0
      %1761 = vmatpush.msra.mxu0 0.0
      %1762 = vmatpush.msra.mxu0 0.0
      %1763 = vmatpush.msra.mxu0 0.0
      %1764 = vmatpush.msra.mxu0 0.0
      %1765 = vmatpush.msra.mxu0 0.0
      %1766 = vmatpush.msra.mxu0 0.0
      %1767 = vmatpush.msra.mxu0 0.0
      %1768 = vmatpush.msra.mxu0 0.0
      %1769 = vmatpush.msra.mxu0 0.0
      %1770 = vmatpush.msra.mxu0 %v1755
      %1771 = vmatpush.msra.mxu0 %v1754
      %1772 = vmatmul.f32.gmra.mxu0 %v1460
      %v1773 = vpop.f32.mrf.mxu0
      %v1774 = vadd.f32 0.0, %v1773
      %1775 = vmatmul.f32.gmra.mxu0 %v1463
      %v1776 = vpop.f32.mrf.mxu0
      %v1777 = vadd.f32 0.0, %v1776
      %1778 = vdwg.mxu0
      %v1779 = vsub.f32 %v1726, %v1749
      %v1780 = vsub.f32 %v1729, %v1752
      %v1781 = vsub.f32 %v1774, %v1726
      %v1782 = vsub.f32 %v1777, %v1729
      %v1783 = vsub.f32 %v1781, %v1749
      %v1784 = vsub.f32 %v1782, %v1752
      %1785 = vst.msk [vmem:[#allocation2 + $0x30] sm:$0xff] %vm359, %v1779
      %1786 = vst.msk [vmem:[#allocation2 + $0x38] sm:$0xff] %vm359, %v1780
      %1787 = vst.msk [vmem:[#allocation3 + $0x30] sm:$0xff] %vm359, %v1783
      %1788 = vst.msk [vmem:[#allocation3 + $0x38] sm:$0xff] %vm359, %v1784
      %v1789 = vld [vmem:[#allocation2] sm:$0xff]
      %v1790 = vld [vmem:[#allocation2 + $0x8] sm:$0xff]
      %v1791 = vld [vmem:[#allocation2 + $0x10] sm:$0xff]
      %v1792 = vld [vmem:[#allocation2 + $0x18] sm:$0xff]
      %v1793 = vld [vmem:[#allocation2 + $0x20] sm:$0xff]
      %v1794 = vld [vmem:[#allocation2 + $0x28] sm:$0xff]
      %v1795 = vld [vmem:[#allocation2 + $0x30] sm:$0xff]
      %v1796 = vld [vmem:[#allocation2 + $0x38] sm:$0xff]
      %v1797 = vld [vmem:[#allocation3] sm:$0xff]
      %v1798 = vld [vmem:[#allocation3 + $0x8] sm:$0xff]
      %v1799 = vld [vmem:[#allocation3 + $0x10] sm:$0xff]
      %v1800 = vld [vmem:[#allocation3 + $0x18] sm:$0xff]
      %v1801 = vld [vmem:[#allocation3 + $0x20] sm:$0xff]
      %v1802 = vld [vmem:[#allocation3 + $0x28] sm:$0xff]
      %v1803 = vld [vmem:[#allocation3 + $0x30] sm:$0xff]
      %v1804 = vld [vmem:[#allocation3 + $0x38] sm:$0xff]
      %v1805 = vld [vmem:[%s8] sm:$0xff]
      %v1806 = vld [vmem:[%s8 + $0x8] sm:$0xff]
      %s1807 = scalar_lea.vmem %s8, 16
      %v1808 = vld [vmem:[%s1807] sm:$0xff]
      %v1809 = vld [vmem:[%s1807 + $0x8] sm:$0xff]
      %v1811 = vsel %vm359, %v1789, 0
      %v1814 = vsel %vm359, %v1790, 0
      %v1817 = vsel %vm359, %v1791, 0
      %v1820 = vsel %vm359, %v1792, 0
      %v1823 = vsel %vm359, %v1793, 0
      %v1826 = vsel %vm359, %v1794, 0
      %v1829 = vsel %vm359, %v1795, 0
      %v1832 = vsel %vm359, %v1796, 0
      %1834 = vmatpush.msra.mxu0 0.0
      %1835 = vmatpush.msra.mxu0 0.0
      %1836 = vmatpush.msra.mxu0 0.0
      %1837 = vmatpush.msra.mxu0 0.0
      %1838 = vmatpush.msra.mxu0 0.0
      %1839 = vmatpush.msra.mxu0 0.0
      %1840 = vmatpush.msra.mxu0 0.0
      %1841 = vmatpush.msra.mxu0 0.0
      %1842 = vmatpush.msra.mxu0 0.0
      %1843 = vmatpush.msra.mxu0 0.0
      %1844 = vmatpush.msra.mxu0 0.0
      %1845 = vmatpush.msra.mxu0 0.0
      %1846 = vmatpush.msra.mxu0 0.0
      %1847 = vmatpush.msra.mxu0 0.0
      %1848 = vmatpush.msra.mxu0 %v1806
      %1849 = vmatpush.msra.mxu0 %v1805
      %1850 = vmatmul.f32.gmra.mxu0 %v1811
      %v1851 = vpop.f32.mrf.mxu0
      %v1852 = vadd.f32 0.0, %v1851
      %1853 = vmatmul.f32.gmra.mxu0 %v1814
      %v1854 = vpop.f32.mrf.mxu0
      %v1855 = vadd.f32 0.0, %v1854
      %1856 = vmatmul.f32.gmra.mxu0 %v1817
      %v1857 = vpop.f32.mrf.mxu0
      %v1858 = vadd.f32 0.0, %v1857
      %1859 = vmatmul.f32.gmra.mxu0 %v1820
      %v1860 = vpop.f32.mrf.mxu0
      %v1861 = vadd.f32 0.0, %v1860
      %1862 = vmatmul.f32.gmra.mxu0 %v1823
      %v1863 = vpop.f32.mrf.mxu0
      %v1864 = vadd.f32 0.0, %v1863
      %1865 = vmatmul.f32.gmra.mxu0 %v1826
      %v1866 = vpop.f32.mrf.mxu0
      %v1867 = vadd.f32 0.0, %v1866
      %1868 = vmatmul.f32.gmra.mxu0 %v1829
      %v1869 = vpop.f32.mrf.mxu0
      %v1870 = vadd.f32 0.0, %v1869
      %1871 = vmatmul.f32.gmra.mxu0 %v1832
      %v1872 = vpop.f32.mrf.mxu0
      %v1873 = vadd.f32 0.0, %v1872
      %1874 = vdwg.mxu0
      %v1876 = vsel %vm359, %v1797, 0
      %v1879 = vsel %vm359, %v1798, 0
      %v1882 = vsel %vm359, %v1799, 0
      %v1885 = vsel %vm359, %v1800, 0
      %v1888 = vsel %vm359, %v1801, 0
      %v1891 = vsel %vm359, %v1802, 0
      %v1894 = vsel %vm359, %v1803, 0
      %v1897 = vsel %vm359, %v1804, 0
      %1899 = vmatpush.msra.mxu0 0.0
      %1900 = vmatpush.msra.mxu0 0.0
      %1901 = vmatpush.msra.mxu0 0.0
      %1902 = vmatpush.msra.mxu0 0.0
      %1903 = vmatpush.msra.mxu0 0.0
      %1904 = vmatpush.msra.mxu0 0.0
      %1905 = vmatpush.msra.mxu0 0.0
      %1906 = vmatpush.msra.mxu0 0.0
      %1907 = vmatpush.msra.mxu0 0.0
      %1908 = vmatpush.msra.mxu0 0.0
      %1909 = vmatpush.msra.mxu0 0.0
      %1910 = vmatpush.msra.mxu0 0.0
      %1911 = vmatpush.msra.mxu0 0.0
      %1912 = vmatpush.msra.mxu0 0.0
      %1913 = vmatpush.msra.mxu0 %v1809
      %1914 = vmatpush.msra.mxu0 %v1808
      %1915 = vmatmul.f32.gmra.mxu0 %v1876
      %v1916 = vpop.f32.mrf.mxu0
      %v1917 = vadd.f32 0.0, %v1916
      %1918 = vmatmul.f32.gmra.mxu0 %v1879
      %v1919 = vpop.f32.mrf.mxu0
      %v1920 = vadd.f32 0.0, %v1919
      %1921 = vmatmul.f32.gmra.mxu0 %v1882
      %v1922 = vpop.f32.mrf.mxu0
      %v1923 = vadd.f32 0.0, %v1922
      %1924 = vmatmul.f32.gmra.mxu0 %v1885
      %v1925 = vpop.f32.mrf.mxu0
      %v1926 = vadd.f32 0.0, %v1925
      %1927 = vmatmul.f32.gmra.mxu0 %v1888
      %v1928 = vpop.f32.mrf.mxu0
      %v1929 = vadd.f32 0.0, %v1928
      %1930 = vmatmul.f32.gmra.mxu0 %v1891
      %v1931 = vpop.f32.mrf.mxu0
      %v1932 = vadd.f32 0.0, %v1931
      %1933 = vmatmul.f32.gmra.mxu0 %v1894
      %v1934 = vpop.f32.mrf.mxu0
      %v1935 = vadd.f32 0.0, %v1934
      %1936 = vmatmul.f32.gmra.mxu0 %v1897
      %v1937 = vpop.f32.mrf.mxu0
      %v1938 = vadd.f32 0.0, %v1937
      %1939 = vdwg.mxu0
      %v1940 = vadd.f32 %v1789, %v1797
      %v1941 = vadd.f32 %v1790, %v1798
      %v1942 = vadd.f32 %v1791, %v1799
      %v1943 = vadd.f32 %v1792, %v1800
      %v1944 = vadd.f32 %v1793, %v1801
      %v1945 = vadd.f32 %v1794, %v1802
      %v1946 = vadd.f32 %v1795, %v1803
      %v1947 = vadd.f32 %v1796, %v1804
      %v1948 = vadd.f32 %v1805, %v1808
      %v1949 = vadd.f32 %v1806, %v1809
      %v1951 = vsel %vm359, %v1940, 0
      %v1954 = vsel %vm359, %v1941, 0
      %v1957 = vsel %vm359, %v1942, 0
      %v1960 = vsel %vm359, %v1943, 0
      %v1963 = vsel %vm359, %v1944, 0
      %v1966 = vsel %vm359, %v1945, 0
      %v1969 = vsel %vm359, %v1946, 0
      %v1972 = vsel %vm359, %v1947, 0
      %1974 = vmatpush.msra.mxu0 0.0
      %1975 = vmatpush.msra.mxu0 0.0
      %1976 = vmatpush.msra.mxu0 0.0
      %1977 = vmatpush.msra.mxu0 0.0
      %1978 = vmatpush.msra.mxu0 0.0
      %1979 = vmatpush.msra.mxu0 0.0
      %1980 = vmatpush.msra.mxu0 0.0
      %1981 = vmatpush.msra.mxu0 0.0
      %1982 = vmatpush.msra.mxu0 0.0
      %1983 = vmatpush.msra.mxu0 0.0
      %1984 = vmatpush.msra.mxu0 0.0
      %1985 = vmatpush.msra.mxu0 0.0
      %1986 = vmatpush.msra.mxu0 0.0
      %1987 = vmatpush.msra.mxu0 0.0
      %1988 = vmatpush.msra.mxu0 %v1949
      %1989 = vmatpush.msra.mxu0 %v1948
      %1990 = vmatmul.f32.gmra.mxu0 %v1951
      %v1991 = vpop.f32.mrf.mxu0
      %v1992 = vadd.f32 0.0, %v1991
      %1993 = vmatmul.f32.gmra.mxu0 %v1954
      %v1994 = vpop.f32.mrf.mxu0
      %v1995 = vadd.f32 0.0, %v1994
      %1996 = vmatmul.f32.gmra.mxu0 %v1957
      %v1997 = vpop.f32.mrf.mxu0
      %v1998 = vadd.f32 0.0, %v1997
      %1999 = vmatmul.f32.gmra.mxu0 %v1960
      %v2000 = vpop.f32.mrf.mxu0
      %v2001 = vadd.f32 0.0, %v2000
      %2002 = vmatmul.f32.gmra.mxu0 %v1963
      %v2003 = vpop.f32.mrf.mxu0
      %v2004 = vadd.f32 0.0, %v2003
      %2005 = vmatmul.f32.gmra.mxu0 %v1966
      %v2006 = vpop.f32.mrf.mxu0
      %v2007 = vadd.f32 0.0, %v2006
      %2008 = vmatmul.f32.gmra.mxu0 %v1969
      %v2009 = vpop.f32.mrf.mxu0
      %v2010 = vadd.f32 0.0, %v2009
      %2011 = vmatmul.f32.gmra.mxu0 %v1972
      %v2012 = vpop.f32.mrf.mxu0
      %v2013 = vadd.f32 0.0, %v2012
      %2014 = vdwg.mxu0
      %v2015 = vsub.f32 %v1852, %v1917
      %v2016 = vsub.f32 %v1855, %v1920
      %v2017 = vsub.f32 %v1858, %v1923
      %v2018 = vsub.f32 %v1861, %v1926
      %v2019 = vsub.f32 %v1864, %v1929
      %v2020 = vsub.f32 %v1867, %v1932
      %v2021 = vsub.f32 %v1870, %v1935
      %v2022 = vsub.f32 %v1873, %v1938
      %v2023 = vsub.f32 %v1992, %v1852
      %v2024 = vsub.f32 %v1995, %v1855
      %v2025 = vsub.f32 %v1998, %v1858
      %v2026 = vsub.f32 %v2001, %v1861
      %v2027 = vsub.f32 %v2004, %v1864
      %v2028 = vsub.f32 %v2007, %v1867
      %v2029 = vsub.f32 %v2010, %v1870
      %v2030 = vsub.f32 %v2013, %v1873
      %v2031 = vsub.f32 %v2023, %v1917
      %v2032 = vsub.f32 %v2024, %v1920
      %v2033 = vsub.f32 %v2025, %v1923
      %v2034 = vsub.f32 %v2026, %v1926
      %v2035 = vsub.f32 %v2027, %v1929
      %v2036 = vsub.f32 %v2028, %v1932
      %v2037 = vsub.f32 %v2029, %v1935
      %v2038 = vsub.f32 %v2030, %v1938
      %2039 = vst.msk [vmem:[%s352] sm:$0xff] %vm359, %v2015
      %2040 = vst.msk [vmem:[%s352 + $0x8] sm:$0xff] %vm359, %v2016
      %2041 = vst.msk [vmem:[%s352 + $0x10] sm:$0xff] %vm359, %v2017
      %2042 = vst.msk [vmem:[%s352 + $0x18] sm:$0xff] %vm359, %v2018
      %2043 = vst.msk [vmem:[%s352 + $0x20] sm:$0xff] %vm359, %v2019
      %2044 = vst.msk [vmem:[%s352 + $0x28] sm:$0xff] %vm359, %v2020
      %2045 = vst.msk [vmem:[%s352 + $0x30] sm:$0xff] %vm359, %v2021
      %2046 = vst.msk [vmem:[%s352 + $0x38] sm:$0xff] %vm359, %v2022
      %s2047 = scalar_lea.vmem %s352, 64
      %2048 = vst.msk [vmem:[%s2047] sm:$0xff] %vm359, %v2031
      %2049 = vst.msk [vmem:[%s2047 + $0x8] sm:$0xff] %vm359, %v2032
      %2050 = vst.msk [vmem:[%s2047 + $0x10] sm:$0xff] %vm359, %v2033
      %2051 = vst.msk [vmem:[%s2047 + $0x18] sm:$0xff] %vm359, %v2034
      %2052 = vst.msk [vmem:[%s2047 + $0x20] sm:$0xff] %vm359, %v2035
      %2053 = vst.msk [vmem:[%s2047 + $0x28] sm:$0xff] %vm359, %v2036
      %2054 = vst.msk [vmem:[%s2047 + $0x30] sm:$0xff] %vm359, %v2037
      %2055 = vst.msk [vmem:[%s2047 + $0x38] sm:$0xff] %vm359, %v2038
      %p2056 = scmp.lt.s32.totalorder %s20, 1
      %s2057 = scalar_select %p2056, %s20, 1
      %s2058 = smul.addr %s2057, 16
      %s2059 = smul.addr %s2058, 8
      %s2060 = scalar_lea.vmem %s9, %s2059
      // Predicated region
      $region57: #{varnet_block.3} parent=55 // pred_check
        %p2061 = pneg %p237
      $region58: #{varnet_block.3} parent=55 // pred_check_branch
        %2063 = sbr.rel (%p2061) target = $region60
      $region59: #{varnet_block.3} parent=55 // pred_region
        _
      $region60: #{varnet_block.3} parent=55 // pred_fallthru
        _
    $region56: #{varnet_block.3} parent=5 // pred_fallthru
      _
    %p2064 = scmp.le.s32.totalorder 2, %s15
    // Predicated region
    $region61: #{varnet_block.3} parent=5 // pred_check
      %p2065 = pneg %p2064
    $region62: #{varnet_block.3} parent=5 // pred_check_branch
      %2067 = sbr.rel (%p2065) target = $region64
    $region63: #{varnet_block.3} parent=5 // pred_region
      %s2068 = ssub.s32 %s15, 2
      // Predicated region
      $region65: #{varnet_block.3} parent=63 // pred_check
        %p2069 = pneg %p243
      $region66: #{varnet_block.3} parent=63 // pred_check_branch
        %2071 = sbr.rel (%p2069) target = $region68
      $region67: #{varnet_block.3} parent=63 // pred_region
        %p2072 = scmp.lt.s32.totalorder %s21, 1
        %s2073 = scalar_select %p2072, %s21, 1
        %s2074 = smul.addr %s2073, 16
        %s2075 = smul.addr %s2074, 8
        %s2076 = scalar_lea.vmem %s9, %s2075
      $region68: #{varnet_block.3} parent=63 // pred_fallthru
        _
    $region64: #{varnet_block.3} parent=5 // pred_fallthru
      _
  $region6: #{varnet_block.3} parent=0 // loop_footer
    %s19 = sadd.s32 1, %s15
  $region7: #{varnet_block.3} parent=0 // loop_footer_branch
    %14 = sbr.rel target = $region3
  $region8: #{varnet_block.3} parent=0 // loop_exit
    _

</llo_original>
